<compile_context>
chip_gen: v5e
topology: v5e:2x2
jax: 0.10.0
libtpu: 0.0.40
codegen_flags: <defaults>
</compile_context>

<pallas_src>
import jax
import jax.numpy as jnp
from jax import lax
from jax.experimental import pallas as pl
from jax.experimental.pallas import tpu as pltpu

MODES = 6
EMBED = 256
HEADS = 4
HEAD_DIM = EMBED // HEADS          # 64
FFN_HIDDEN = 512
OUT_DIM = 256
SCORE_HIDDEN = 64
LN_EPS = 1e-5
NEG_INF = -1e9


def _layernorm(x, gamma, beta):
    mu = jnp.mean(x, axis=-1, keepdims=True)
    xc = x - mu
    var = jnp.mean(xc * xc, axis=-1, keepdims=True)
    return xc * lax.rsqrt(var + LN_EPS) * gamma + beta


def _elu(x):
    return jnp.where(x > 0, x, jnp.exp(jnp.minimum(x, 0.0)) - 1.0)


# ---------------------------------------------------------------------------
# Fused multi-head attention + FFN kernel.  One grid cell = one (mode, batch).
# ---------------------------------------------------------------------------
def mm_attn_ffn_kernel(q_ref, k_ref, v_ref, bias_ref,
                       inw_ref, inb_ref, outw_ref, outb_ref,
                       g1_ref, be1_ref, w1_ref, b1_ref,
                       w2_ref, b2_ref, g2_ref, be2_ref,
                       o_ref):
    q = q_ref[...]                       # (Lq, 256)
    k = k_ref[...]                       # (Lk, 256)
    v = v_ref[...]                       # (Lk, 256)
    bias = bias_ref[...]                 # (1, Lk) additive key-padding bias

    # Input projections (per-mode in_proj, already transposed to (256, 768)).
    qp = jnp.dot(q, inw_ref[:, 0 * EMBED:1 * EMBED],
                 preferred_element_type=jnp.float32) + inb_ref[:, 0 * EMBED:1 * EMBED]
    kp = jnp.dot(k, inw_ref[:, 1 * EMBED:2 * EMBED],
                 preferred_element_type=jnp.float32) + inb_ref[:, 1 * EMBED:2 * EMBED]
    vp = jnp.dot(v, inw_ref[:, 2 * EMBED:3 * EMBED],
                 preferred_element_type=jnp.float32) + inb_ref[:, 2 * EMBED:3 * EMBED]

    # Scaled dot-product attention, unrolled over the 4 heads (static slices).
    scale = 1.0 / (HEAD_DIM ** 0.5)
    ctx_heads = []
    for h in range(HEADS):
        lo, hi = h * HEAD_DIM, (h + 1) * HEAD_DIM
        qh, kh, vh = qp[:, lo:hi], kp[:, lo:hi], vp[:, lo:hi]
        s = lax.dot_general(qh, kh, (((1,), (1,)), ((), ())),
                            preferred_element_type=jnp.float32) * scale   # (Lq, Lk)
        s = s + bias
        s = s - jnp.max(s, axis=-1, keepdims=True)
        e = jnp.exp(s)
        p = e / jnp.sum(e, axis=-1, keepdims=True)
        ctx_heads.append(jnp.dot(p, vh, preferred_element_type=jnp.float32))
    ctx = jnp.concatenate(ctx_heads, axis=-1)                              # (Lq, 256)

    attn = jnp.dot(ctx, outw_ref[...],
                   preferred_element_type=jnp.float32) + outb_ref[...]     # (Lq, 256)

    # Shared FFN: LN -> Linear(256,512) -> ReLU -> Linear(512,256) -> LN.
    hdd = _layernorm(attn, g1_ref[...], be1_ref[...])
    hdd = jnp.dot(hdd, w1_ref[...], preferred_element_type=jnp.float32) + b1_ref[...]
    hdd = jnp.maximum(hdd, 0.0)
    hdd = jnp.dot(hdd, w2_ref[...], preferred_element_type=jnp.float32) + b2_ref[...]
    hdd = _layernorm(hdd, g2_ref[...], be2_ref[...])

    o_ref[...] = hdd.astype(o_ref.dtype)                                   # (Lq, 256)


# ---------------------------------------------------------------------------
# Score head kernel: Linear(256,64) -> ELU -> Linear(64,1), broadcast to modes.
# ---------------------------------------------------------------------------
def score_kernel(q_ref, ws1_ref, bs1_ref, ws2_ref, bs2_ref, o_ref):
    q = q_ref[...]                                                         # (N, 256)
    h = jnp.dot(q, ws1_ref[...], preferred_element_type=jnp.float32) + bs1_ref[...]
    h = _elu(h)                                                            # (N, 64)
    s = jnp.sum(h * ws2_ref[...], axis=-1, keepdims=True) + bs2_ref[...]   # (N, 1)
    o_ref[...] = jnp.broadcast_to(s, o_ref.shape).astype(o_ref.dtype)      # (N, modes)


# ---------------------------------------------------------------------------
# Wrapper
# ---------------------------------------------------------------------------
def multimodal_transformer_pallas(query, key, value, params, mask=None):
    """query: (B, Lq, 256); key/value: (B, Lk, 256); mask: optional (B, Lk) bool."""
    p = params
    B, Lq, E = query.shape
    Lk = key.shape[1]
    assert E == EMBED

    if mask is None:
        bias = jnp.zeros((B, 1, Lk), jnp.float32)
    else:
        bias = jnp.where(mask, NEG_INF, 0.0).astype(jnp.float32).reshape(B, 1, Lk)

    query = query.astype(jnp.float32)
    key = key.astype(jnp.float32)
    value = value.astype(jnp.float32)

    in_specs = [
        pl.BlockSpec((None, Lq, EMBED), lambda m, b: (b, 0, 0)),             # query
        pl.BlockSpec((None, Lk, EMBED), lambda m, b: (b, 0, 0)),             # key
        pl.BlockSpec((None, Lk, EMBED), lambda m, b: (b, 0, 0)),             # value
        pl.BlockSpec((None, 1, Lk), lambda m, b: (b, 0, 0)),                 # mask bias
        pl.BlockSpec((None, EMBED, 3 * EMBED), lambda m, b: (m, 0, 0)),      # in_proj W
        pl.BlockSpec((None, 1, 3 * EMBED), lambda m, b: (m, 0, 0)),          # in_proj b
        pl.BlockSpec((None, EMBED, EMBED), lambda m, b: (m, 0, 0)),          # out_proj W
        pl.BlockSpec((None, 1, EMBED), lambda m, b: (m, 0, 0)),              # out_proj b
        pl.BlockSpec((1, EMBED), lambda m, b: (0, 0)),                       # LN1 gamma
        pl.BlockSpec((1, EMBED), lambda m, b: (0, 0)),                       # LN1 beta
        pl.BlockSpec((EMBED, FFN_HIDDEN), lambda m, b: (0, 0)),              # W1
        pl.BlockSpec((1, FFN_HIDDEN), lambda m, b: (0, 0)),                  # b1
        pl.BlockSpec((FFN_HIDDEN, OUT_DIM), lambda m, b: (0, 0)),            # W2
        pl.BlockSpec((1, OUT_DIM), lambda m, b: (0, 0)),                     # b2
        pl.BlockSpec((1, OUT_DIM), lambda m, b: (0, 0)),                     # LN2 gamma
        pl.BlockSpec((1, OUT_DIM), lambda m, b: (0, 0)),                     # LN2 beta
    ]
    out_spec = pl.BlockSpec((None, None, Lq, OUT_DIM), lambda m, b: (b, m, 0, 0))

    # Kernel writes (B, modes, Lq, out_dim); PyTorch's .transpose(1, 2) is done
    # in the wrapper (pure layout op) to keep kernel output tiles lane-dense.
    out_bm = pl.pallas_call(
        mm_attn_ffn_kernel,
        out_shape=jax.ShapeDtypeStruct((B, MODES, Lq, OUT_DIM), jnp.float32),
        grid=(MODES, B),
        in_specs=in_specs,
        out_specs=out_spec,
        compiler_params=pltpu.CompilerParams(
            dimension_semantics=("parallel", "parallel")),
    )(query, key, value, bias,
      p["in_w"], p["in_b"], p["out_w"], p["out_b"],
      p["g1"], p["be1"], p["w1"], p["b1"], p["w2"], p["b2"], p["g2"], p["be2"])

    output = jnp.transpose(out_bm, (0, 2, 1, 3))                           # (B, Lq, modes, 256)

    # Score head (mode-independent -> compute once, broadcast to 6 modes).
    qflat = query.reshape(B * Lq, EMBED)
    score_flat = pl.pallas_call(
        score_kernel,
        out_shape=jax.ShapeDtypeStruct((B * Lq, MODES), jnp.float32),
    )(qflat, p["ws1"], p["bs1"], p["ws2"], p["bs2"])
    score = score_flat.reshape(B, Lq, MODES)

    return output, score


# ---------------------------------------------------------------------------
# Deterministic parameter init (weights pre-transposed for x @ W matmuls).
# ---------------------------------------------------------------------------
def init_params(key):
    ks = jax.random.split(key, 12)

    def u(k, shape, scale):
        return jax.random.uniform(k, shape, jnp.float32, -scale, scale)

    s_e = (1.0 / EMBED) ** 0.5
    s_f = (1.0 / FFN_HIDDEN) ** 0.5
    s_s = (1.0 / SCORE_HIDDEN) ** 0.5

    return dict(
        # Per-mode MultiheadAttention params (stacked over the 6 modes).
        in_w=u(ks[0], (MODES, EMBED, 3 * EMBED), s_e),     # x @ W, (q|k|v) concat on cols
        in_b=u(ks[1], (MODES, 1, 3 * EMBED), s_e),
        out_w=u(ks[2], (MODES, EMBED, EMBED), s_e),
        out_b=u(ks[3], (MODES, 1, EMBED), s_e),
        # Shared FFN.
        g1=jnp.ones((1, EMBED), jnp.float32),
        be1=jnp.zeros((1, EMBED), jnp.float32),
        w1=u(ks[4], (EMBED, FFN_HIDDEN), s_e),
        b1=u(ks[5], (1, FFN_HIDDEN), s_e),
        w2=u(ks[6], (FFN_HIDDEN, OUT_DIM), s_f),
        b2=u(ks[7], (1, OUT_DIM), s_f),
        g2=jnp.ones((1, OUT_DIM), jnp.float32),
        be2=jnp.zeros((1, OUT_DIM), jnp.float32),
        # Score head.
        ws1=u(ks[8], (EMBED, SCORE_HIDDEN), s_e),
        bs1=u(ks[9], (1, SCORE_HIDDEN), s_e),
        ws2=u(ks[10], (1, SCORE_HIDDEN), s_s),             # row vector: reduce instead of 1-lane matmul
        bs2=u(ks[11], (1, 1), s_s),
    )


# ---------------------------------------------------------------------------
# Pure-JAX reference (same math as the PyTorch module, dropout = identity).
# ---------------------------------------------------------------------------
def multimodal_transformer_reference(query, key, value, params, mask=None):
    p = params
    B, Lq, E = query.shape
    Lk = key.shape[1]
    bias = (jnp.zeros((B, Lk), jnp.float32) if mask is None
            else jnp.where(mask, NEG_INF, 0.0).astype(jnp.float32))
    scale = 1.0 / (HEAD_DIM ** 0.5)

    per_mode = []
    for m in range(MODES):
        qp = query @ p["in_w"][m, :, 0 * E:1 * E] + p["in_b"][m, :, 0 * E:1 * E]
        kp = key @ p["in_w"][m, :, 1 * E:2 * E] + p["in_b"][m, :, 1 * E:2 * E]
        vp = value @ p["in_w"][m, :, 2 * E:3 * E] + p["in_b"][m, :, 2 * E:3 * E]
        qh = qp.reshape(B, Lq, HEADS, HEAD_DIM)
        kh = kp.reshape(B, Lk, HEADS, HEAD_DIM)
        vh = vp.reshape(B, Lk, HEADS, HEAD_DIM)
        s = jnp.einsum("bqhd,bkhd->bhqk", qh, kh) * scale + bias[:, None, None, :]
        w = jax.nn.softmax(s, axis=-1)
        ctx = jnp.einsum("bhqk,bkhd->bqhd", w, vh).reshape(B, Lq, E)
        per_mode.append(ctx @ p["out_w"][m] + p["out_b"][m])
    x = jnp.stack(per_mode, axis=1)                                        # (B, modes, Lq, 256)

    h = _layernorm(x, p["g1"], p["be1"])
    h = jnp.maximum(h @ p["w1"] + p["b1"], 0.0)
    h = h @ p["w2"] + p["b2"]
    h = _layernorm(h, p["g2"], p["be2"])
    output = jnp.transpose(h, (0, 2, 1, 3))                                # (B, Lq, modes, 256)

    s1 = _elu(query @ p["ws1"] + p["bs1"])                                 # (B, Lq, 64)
    sc = jnp.sum(s1 * p["ws2"], axis=-1, keepdims=True) + p["bs2"]         # (B, Lq, 1)
    score = jnp.broadcast_to(sc, (B, Lq, MODES))
    return output, score


if __name__ == "__main__":
    key0 = jax.random.PRNGKey(0)
    kp, kq, kk, kv = jax.random.split(key0, 4)

    B, Lq, Lk = 2, 8, 16
    params = init_params(kp)
    query = jax.random.normal(kq, (B, Lq, EMBED), jnp.float32)
    key_ = jax.random.normal(kk, (B, Lk, EMBED), jnp.float32)
    value = jax.random.normal(kv, (B, Lk, EMBED), jnp.float32)

    # No mask.
    out, score = multimodal_transformer_pallas(query, key_, value, params, mask=None)
    out = jax.block_until_ready(out)
    score = jax.block_until_ready(score)
    assert out.shape == (B, Lq, MODES, OUT_DIM)
    assert score.shape == (B, Lq, MODES)

    ref_out, ref_score = multimodal_transformer_reference(query, key_, value, params, mask=None)
    assert jnp.allclose(out, ref_out, atol=2e-3, rtol=2e-3), "output mismatch (no mask)"
    assert jnp.allclose(score, ref_score, atol=2e-3, rtol=2e-3), "score mismatch (no mask)"

    # With a key-padding mask (last 4 keys of batch 1 masked out).
    mask = jnp.zeros((B, Lk), bool).at[1, Lk - 4:].set(True)
    out_m, score_m = multimodal_transformer_pallas(query, key_, value, params, mask=mask)
    out_m = jax.block_until_ready(out_m)
    ref_out_m, ref_score_m = multimodal_transformer_reference(query, key_, value, params, mask=mask)
    assert jnp.allclose(out_m, ref_out_m, atol=2e-3, rtol=2e-3), "output mismatch (mask)"
    assert jnp.allclose(score_m, ref_score_m, atol=2e-3, rtol=2e-3), "score mismatch (mask)"

    print("KERNEL_OK")
</pallas_src>

<mosaic_0001>
module attributes {stable_mosaic.version = 11 : i64} {
  func.func @mm_attn_ffn_kernel(%arg0: i32, %arg1: i32, %arg2: memref<1x8x256xf32, #tpu.memory_space<vmem>>, %arg3: memref<1x16x256xf32, #tpu.memory_space<vmem>>, %arg4: memref<1x16x256xf32, #tpu.memory_space<vmem>>, %arg5: memref<1x1x16xf32, #tpu.memory_space<vmem>>, %arg6: memref<1x256x768xf32, #tpu.memory_space<vmem>>, %arg7: memref<1x1x768xf32, #tpu.memory_space<vmem>>, %arg8: memref<1x256x256xf32, #tpu.memory_space<vmem>>, %arg9: memref<1x1x256xf32, #tpu.memory_space<vmem>>, %arg10: memref<1x256xf32, #tpu.memory_space<vmem>>, %arg11: memref<1x256xf32, #tpu.memory_space<vmem>>, %arg12: memref<256x512xf32, #tpu.memory_space<vmem>>, %arg13: memref<1x512xf32, #tpu.memory_space<vmem>>, %arg14: memref<512x256xf32, #tpu.memory_space<vmem>>, %arg15: memref<1x256xf32, #tpu.memory_space<vmem>>, %arg16: memref<1x256xf32, #tpu.memory_space<vmem>>, %arg17: memref<1x256xf32, #tpu.memory_space<vmem>>, %arg18: memref<1x1x8x256xf32, #tpu.memory_space<vmem>>) attributes {dimension_semantics = [#tpu.dimension_semantics<parallel>, #tpu.dimension_semantics<parallel>], iteration_bounds = array<i64: 6, 2>, scalar_prefetch = 0 : i64, scratch_operands = 0 : i64, tpu.core_type = #tpu.core_type<tc>, window_params = [{transform_indices = @transform_0, window_bounds = array<i64: 1, 8, 256>}, {transform_indices = @transform_1, window_bounds = array<i64: 1, 16, 256>}, {transform_indices = @transform_2, window_bounds = array<i64: 1, 16, 256>}, {transform_indices = @transform_3, window_bounds = array<i64: 1, 1, 16>}, {transform_indices = @transform_4, window_bounds = array<i64: 1, 256, 768>}, {transform_indices = @transform_5, window_bounds = array<i64: 1, 1, 768>}, {transform_indices = @transform_6, window_bounds = array<i64: 1, 256, 256>}, {transform_indices = @transform_7, window_bounds = array<i64: 1, 1, 256>}, {pipeline_mode = #tpu.pipeline_mode<synchronous>, transform_indices = @transform_8, window_bounds = array<i64: 1, 256>}, {pipeline_mode = #tpu.pipeline_mode<synchronous>, transform_indices = @transform_9, window_bounds = array<i64: 1, 256>}, {pipeline_mode = #tpu.pipeline_mode<synchronous>, transform_indices = @transform_10, window_bounds = array<i64: 256, 512>}, {pipeline_mode = #tpu.pipeline_mode<synchronous>, transform_indices = @transform_11, window_bounds = array<i64: 1, 512>}, {pipeline_mode = #tpu.pipeline_mode<synchronous>, transform_indices = @transform_12, window_bounds = array<i64: 512, 256>}, {pipeline_mode = #tpu.pipeline_mode<synchronous>, transform_indices = @transform_13, window_bounds = array<i64: 1, 256>}, {pipeline_mode = #tpu.pipeline_mode<synchronous>, transform_indices = @transform_14, window_bounds = array<i64: 1, 256>}, {pipeline_mode = #tpu.pipeline_mode<synchronous>, transform_indices = @transform_15, window_bounds = array<i64: 1, 256>}, {transform_indices = @transform_16, window_bounds = array<i64: 1, 1, 8, 256>}]} {
    %c0 = arith.constant 0 : index
    %c0_0 = arith.constant 0 : index
    %c0_1 = arith.constant 0 : index
    %0 = vector.load %arg2[%c0, %c0_0, %c0_1] : memref<1x8x256xf32, #tpu.memory_space<vmem>>, vector<1x8x256xf32>
    %1 = vector.shape_cast %0 : vector<1x8x256xf32> to vector<8x256xf32>
    %c0_2 = arith.constant 0 : index
    %c0_3 = arith.constant 0 : index
    %c0_4 = arith.constant 0 : index
    %2 = vector.load %arg3[%c0_2, %c0_3, %c0_4] : memref<1x16x256xf32, #tpu.memory_space<vmem>>, vector<1x16x256xf32>
    %3 = vector.shape_cast %2 : vector<1x16x256xf32> to vector<16x256xf32>
    %c0_5 = arith.constant 0 : index
    %c0_6 = arith.constant 0 : index
    %c0_7 = arith.constant 0 : index
    %4 = vector.load %arg4[%c0_5, %c0_6, %c0_7] : memref<1x16x256xf32, #tpu.memory_space<vmem>>, vector<1x16x256xf32>
    %5 = vector.shape_cast %4 : vector<1x16x256xf32> to vector<16x256xf32>
    %c0_8 = arith.constant 0 : index
    %c0_9 = arith.constant 0 : index
    %c0_10 = arith.constant 0 : index
    %6 = vector.load %arg5[%c0_8, %c0_9, %c0_10] : memref<1x1x16xf32, #tpu.memory_space<vmem>>, vector<1x1x16xf32>
    %7 = vector.shape_cast %6 : vector<1x1x16xf32> to vector<1x16xf32>
    %c0_11 = arith.constant 0 : index
    %c0_12 = arith.constant 0 : index
    %c0_13 = arith.constant 0 : index
    %8 = vector.load %arg6[%c0_11, %c0_12, %c0_13] : memref<1x256x768xf32, #tpu.memory_space<vmem>>, vector<1x256x256xf32>
    %9 = vector.shape_cast %8 : vector<1x256x256xf32> to vector<256x256xf32>
    %cst = arith.constant dense<0.000000e+00> : vector<8x256xf32>
    %10 = tpu.matmul %1, %9, %cst {dimension_numbers = #tpu.dot_dimension_numbers<[1], [0], [0], [1], [0, 0, 1, 1], [], []>} : vector<8x256xf32>, vector<256x256xf32>, vector<8x256xf32> -> vector<8x256xf32>
    %c0_14 = arith.constant 0 : index
    %c0_15 = arith.constant 0 : index
    %c0_16 = arith.constant 0 : index
    %11 = vector.load %arg7[%c0_14, %c0_15, %c0_16] : memref<1x1x768xf32, #tpu.memory_space<vmem>>, vector<1x1x256xf32>
    %12 = vector.shape_cast %11 : vector<1x1x256xf32> to vector<1x256xf32>
    %13 = vector.broadcast %12 : vector<1x256xf32> to vector<8x256xf32>
    %14 = arith.addf %10, %13 : vector<8x256xf32>
    %c0_17 = arith.constant 0 : index
    %c0_18 = arith.constant 0 : index
    %c256 = arith.constant 256 : index
    %15 = vector.load %arg6[%c0_17, %c0_18, %c256] : memref<1x256x768xf32, #tpu.memory_space<vmem>>, vector<1x256x256xf32>
    %16 = vector.shape_cast %15 : vector<1x256x256xf32> to vector<256x256xf32>
    %cst_19 = arith.constant dense<0.000000e+00> : vector<16x256xf32>
    %17 = tpu.matmul %3, %16, %cst_19 {dimension_numbers = #tpu.dot_dimension_numbers<[1], [0], [0], [1], [0, 0, 1, 1], [], []>} : vector<16x256xf32>, vector<256x256xf32>, vector<16x256xf32> -> vector<16x256xf32>
    %c0_20 = arith.constant 0 : index
    %c0_21 = arith.constant 0 : index
    %c256_22 = arith.constant 256 : index
    %18 = vector.load %arg7[%c0_20, %c0_21, %c256_22] : memref<1x1x768xf32, #tpu.memory_space<vmem>>, vector<1x1x256xf32>
    %19 = vector.shape_cast %18 : vector<1x1x256xf32> to vector<1x256xf32>
    %20 = vector.broadcast %19 : vector<1x256xf32> to vector<16x256xf32>
    %21 = arith.addf %17, %20 : vector<16x256xf32>
    %c0_23 = arith.constant 0 : index
    %c0_24 = arith.constant 0 : index
    %c512 = arith.constant 512 : index
    %22 = vector.load %arg6[%c0_23, %c0_24, %c512] : memref<1x256x768xf32, #tpu.memory_space<vmem>>, vector<1x256x256xf32>
    %23 = vector.shape_cast %22 : vector<1x256x256xf32> to vector<256x256xf32>
    %cst_25 = arith.constant dense<0.000000e+00> : vector<16x256xf32>
    %24 = tpu.matmul %5, %23, %cst_25 {dimension_numbers = #tpu.dot_dimension_numbers<[1], [0], [0], [1], [0, 0, 1, 1], [], []>} : vector<16x256xf32>, vector<256x256xf32>, vector<16x256xf32> -> vector<16x256xf32>
    %c0_26 = arith.constant 0 : index
    %c0_27 = arith.constant 0 : index
    %c512_28 = arith.constant 512 : index
    %25 = vector.load %arg7[%c0_26, %c0_27, %c512_28] : memref<1x1x768xf32, #tpu.memory_space<vmem>>, vector<1x1x256xf32>
    %26 = vector.shape_cast %25 : vector<1x1x256xf32> to vector<1x256xf32>
    %27 = vector.broadcast %26 : vector<1x256xf32> to vector<16x256xf32>
    %28 = arith.addf %24, %27 : vector<16x256xf32>
    %29 = vector.extract_strided_slice %14 {offsets = [0, 0], sizes = [8, 64], strides = [1, 1]} : vector<8x256xf32> to vector<8x64xf32>
    %30 = vector.extract_strided_slice %21 {offsets = [0, 0], sizes = [16, 64], strides = [1, 1]} : vector<16x256xf32> to vector<16x64xf32>
    %31 = vector.extract_strided_slice %28 {offsets = [0, 0], sizes = [16, 64], strides = [1, 1]} : vector<16x256xf32> to vector<16x64xf32>
    %cst_29 = arith.constant dense<0.000000e+00> : vector<8x16xf32>
    %32 = tpu.matmul %29, %30, %cst_29 {dimension_numbers = #tpu.dot_dimension_numbers<[1], [1], [0], [0], [0, 0, 1, 0], [], []>} : vector<8x64xf32>, vector<16x64xf32>, vector<8x16xf32> -> vector<8x16xf32>
    %cst_30 = arith.constant 1.250000e-01 : f32
    %33 = vector.broadcast %cst_30 : f32 to vector<8x16xf32>
    %34 = arith.mulf %32, %33 : vector<8x16xf32>
    %35 = vector.broadcast %7 : vector<1x16xf32> to vector<8x16xf32>
    %36 = arith.addf %34, %35 : vector<8x16xf32>
    %cst_31 = arith.constant dense<0xFF800000> : vector<8xf32>
    %37 = vector.multi_reduction <maximumf>, %36, %cst_31 [1] : vector<8x16xf32> to vector<8xf32>
    %38 = vector.shape_cast %37 : vector<8xf32> to vector<8x1xf32>
    %39 = vector.broadcast %38 : vector<8x1xf32> to vector<8x16xf32>
    %40 = arith.subf %36, %39 : vector<8x16xf32>
    %41 = math.exp %40 : vector<8x16xf32>
    %cst_32 = arith.constant dense<0.000000e+00> : vector<8xf32>
    %42 = vector.multi_reduction <add>, %41, %cst_32 [1] : vector<8x16xf32> to vector<8xf32>
    %43 = vector.shape_cast %42 : vector<8xf32> to vector<8x1xf32>
    %44 = vector.broadcast %43 : vector<8x1xf32> to vector<8x16xf32>
    %45 = arith.divf %41, %44 : vector<8x16xf32>
    %cst_33 = arith.constant dense<0.000000e+00> : vector<8x64xf32>
    %46 = tpu.matmul %45, %31, %cst_33 {dimension_numbers = #tpu.dot_dimension_numbers<[1], [0], [0], [1], [0, 0, 1, 1], [], []>} : vector<8x16xf32>, vector<16x64xf32>, vector<8x64xf32> -> vector<8x64xf32>
    %47 = vector.extract_strided_slice %14 {offsets = [0, 64], sizes = [8, 64], strides = [1, 1]} : vector<8x256xf32> to vector<8x64xf32>
    %48 = vector.extract_strided_slice %21 {offsets = [0, 64], sizes = [16, 64], strides = [1, 1]} : vector<16x256xf32> to vector<16x64xf32>
    %49 = vector.extract_strided_slice %28 {offsets = [0, 64], sizes = [16, 64], strides = [1, 1]} : vector<16x256xf32> to vector<16x64xf32>
    %cst_34 = arith.constant dense<0.000000e+00> : vector<8x16xf32>
    %50 = tpu.matmul %47, %48, %cst_34 {dimension_numbers = #tpu.dot_dimension_numbers<[1], [1], [0], [0], [0, 0, 1, 0], [], []>} : vector<8x64xf32>, vector<16x64xf32>, vector<8x16xf32> -> vector<8x16xf32>
    %cst_35 = arith.constant 1.250000e-01 : f32
    %51 = vector.broadcast %cst_35 : f32 to vector<8x16xf32>
    %52 = arith.mulf %50, %51 : vector<8x16xf32>
    %53 = vector.broadcast %7 : vector<1x16xf32> to vector<8x16xf32>
    %54 = arith.addf %52, %53 : vector<8x16xf32>
    %cst_36 = arith.constant dense<0xFF800000> : vector<8xf32>
    %55 = vector.multi_reduction <maximumf>, %54, %cst_36 [1] : vector<8x16xf32> to vector<8xf32>
    %56 = vector.shape_cast %55 : vector<8xf32> to vector<8x1xf32>
    %57 = vector.broadcast %56 : vector<8x1xf32> to vector<8x16xf32>
    %58 = arith.subf %54, %57 : vector<8x16xf32>
    %59 = math.exp %58 : vector<8x16xf32>
    %cst_37 = arith.constant dense<0.000000e+00> : vector<8xf32>
    %60 = vector.multi_reduction <add>, %59, %cst_37 [1] : vector<8x16xf32> to vector<8xf32>
    %61 = vector.shape_cast %60 : vector<8xf32> to vector<8x1xf32>
    %62 = vector.broadcast %61 : vector<8x1xf32> to vector<8x16xf32>
    %63 = arith.divf %59, %62 : vector<8x16xf32>
    %cst_38 = arith.constant dense<0.000000e+00> : vector<8x64xf32>
    %64 = tpu.matmul %63, %49, %cst_38 {dimension_numbers = #tpu.dot_dimension_numbers<[1], [0], [0], [1], [0, 0, 1, 1], [], []>} : vector<8x16xf32>, vector<16x64xf32>, vector<8x64xf32> -> vector<8x64xf32>
    %65 = vector.extract_strided_slice %14 {offsets = [0, 128], sizes = [8, 64], strides = [1, 1]} : vector<8x256xf32> to vector<8x64xf32>
    %66 = vector.extract_strided_slice %21 {offsets = [0, 128], sizes = [16, 64], strides = [1, 1]} : vector<16x256xf32> to vector<16x64xf32>
    %67 = vector.extract_strided_slice %28 {offsets = [0, 128], sizes = [16, 64], strides = [1, 1]} : vector<16x256xf32> to vector<16x64xf32>
    %cst_39 = arith.constant dense<0.000000e+00> : vector<8x16xf32>
    %68 = tpu.matmul %65, %66, %cst_39 {dimension_numbers = #tpu.dot_dimension_numbers<[1], [1], [0], [0], [0, 0, 1, 0], [], []>} : vector<8x64xf32>, vector<16x64xf32>, vector<8x16xf32> -> vector<8x16xf32>
    %cst_40 = arith.constant 1.250000e-01 : f32
    %69 = vector.broadcast %cst_40 : f32 to vector<8x16xf32>
    %70 = arith.mulf %68, %69 : vector<8x16xf32>
    %71 = vector.broadcast %7 : vector<1x16xf32> to vector<8x16xf32>
    %72 = arith.addf %70, %71 : vector<8x16xf32>
    %cst_41 = arith.constant dense<0xFF800000> : vector<8xf32>
    %73 = vector.multi_reduction <maximumf>, %72, %cst_41 [1] : vector<8x16xf32> to vector<8xf32>
    %74 = vector.shape_cast %73 : vector<8xf32> to vector<8x1xf32>
    %75 = vector.broadcast %74 : vector<8x1xf32> to vector<8x16xf32>
    %76 = arith.subf %72, %75 : vector<8x16xf32>
    %77 = math.exp %76 : vector<8x16xf32>
    %cst_42 = arith.constant dense<0.000000e+00> : vector<8xf32>
    %78 = vector.multi_reduction <add>, %77, %cst_42 [1] : vector<8x16xf32> to vector<8xf32>
    %79 = vector.shape_cast %78 : vector<8xf32> to vector<8x1xf32>
    %80 = vector.broadcast %79 : vector<8x1xf32> to vector<8x16xf32>
    %81 = arith.divf %77, %80 : vector<8x16xf32>
    %cst_43 = arith.constant dense<0.000000e+00> : vector<8x64xf32>
    %82 = tpu.matmul %81, %67, %cst_43 {dimension_numbers = #tpu.dot_dimension_numbers<[1], [0], [0], [1], [0, 0, 1, 1], [], []>} : vector<8x16xf32>, vector<16x64xf32>, vector<8x64xf32> -> vector<8x64xf32>
    %83 = vector.extract_strided_slice %14 {offsets = [0, 192], sizes = [8, 64], strides = [1, 1]} : vector<8x256xf32> to vector<8x64xf32>
    %84 = vector.extract_strided_slice %21 {offsets = [0, 192], sizes = [16, 64], strides = [1, 1]} : vector<16x256xf32> to vector<16x64xf32>
    %85 = vector.extract_strided_slice %28 {offsets = [0, 192], sizes = [16, 64], strides = [1, 1]} : vector<16x256xf32> to vector<16x64xf32>
    %cst_44 = arith.constant dense<0.000000e+00> : vector<8x16xf32>
    %86 = tpu.matmul %83, %84, %cst_44 {dimension_numbers = #tpu.dot_dimension_numbers<[1], [1], [0], [0], [0, 0, 1, 0], [], []>} : vector<8x64xf32>, vector<16x64xf32>, vector<8x16xf32> -> vector<8x16xf32>
    %cst_45 = arith.constant 1.250000e-01 : f32
    %87 = vector.broadcast %cst_45 : f32 to vector<8x16xf32>
    %88 = arith.mulf %86, %87 : vector<8x16xf32>
    %89 = vector.broadcast %7 : vector<1x16xf32> to vector<8x16xf32>
    %90 = arith.addf %88, %89 : vector<8x16xf32>
    %cst_46 = arith.constant dense<0xFF800000> : vector<8xf32>
    %91 = vector.multi_reduction <maximumf>, %90, %cst_46 [1] : vector<8x16xf32> to vector<8xf32>
    %92 = vector.shape_cast %91 : vector<8xf32> to vector<8x1xf32>
    %93 = vector.broadcast %92 : vector<8x1xf32> to vector<8x16xf32>
    %94 = arith.subf %90, %93 : vector<8x16xf32>
    %95 = math.exp %94 : vector<8x16xf32>
    %cst_47 = arith.constant dense<0.000000e+00> : vector<8xf32>
    %96 = vector.multi_reduction <add>, %95, %cst_47 [1] : vector<8x16xf32> to vector<8xf32>
    %97 = vector.shape_cast %96 : vector<8xf32> to vector<8x1xf32>
    %98 = vector.broadcast %97 : vector<8x1xf32> to vector<8x16xf32>
    %99 = arith.divf %95, %98 : vector<8x16xf32>
    %cst_48 = arith.constant dense<0.000000e+00> : vector<8x64xf32>
    %100 = tpu.matmul %99, %85, %cst_48 {dimension_numbers = #tpu.dot_dimension_numbers<[1], [0], [0], [1], [0, 0, 1, 1], [], []>} : vector<8x16xf32>, vector<16x64xf32>, vector<8x64xf32> -> vector<8x64xf32>
    %101 = tpu.concatenate %46, %64, %82, %100 in 1 : vector<8x64xf32>, vector<8x64xf32>, vector<8x64xf32>, vector<8x64xf32> -> vector<8x256xf32>
    %c0_49 = arith.constant 0 : index
    %c0_50 = arith.constant 0 : index
    %c0_51 = arith.constant 0 : index
    %102 = vector.load %arg8[%c0_49, %c0_50, %c0_51] : memref<1x256x256xf32, #tpu.memory_space<vmem>>, vector<1x256x256xf32>
    %103 = vector.shape_cast %102 : vector<1x256x256xf32> to vector<256x256xf32>
    %cst_52 = arith.constant dense<0.000000e+00> : vector<8x256xf32>
    %104 = tpu.matmul %101, %103, %cst_52 {dimension_numbers = #tpu.dot_dimension_numbers<[1], [0], [0], [1], [0, 0, 1, 1], [], []>} : vector<8x256xf32>, vector<256x256xf32>, vector<8x256xf32> -> vector<8x256xf32>
    %c0_53 = arith.constant 0 : index
    %c0_54 = arith.constant 0 : index
    %c0_55 = arith.constant 0 : index
    %105 = vector.load %arg9[%c0_53, %c0_54, %c0_55] : memref<1x1x256xf32, #tpu.memory_space<vmem>>, vector<1x1x256xf32>
    %106 = vector.shape_cast %105 : vector<1x1x256xf32> to vector<1x256xf32>
    %107 = vector.broadcast %106 : vector<1x256xf32> to vector<8x256xf32>
    %108 = arith.addf %104, %107 : vector<8x256xf32>
    %c0_56 = arith.constant 0 : index
    %c0_57 = arith.constant 0 : index
    %109 = vector.load %arg10[%c0_56, %c0_57] : memref<1x256xf32, #tpu.memory_space<vmem>>, vector<1x256xf32>
    %c0_58 = arith.constant 0 : index
    %c0_59 = arith.constant 0 : index
    %110 = vector.load %arg11[%c0_58, %c0_59] : memref<1x256xf32, #tpu.memory_space<vmem>>, vector<1x256xf32>
    %cst_60 = arith.constant dense<0.000000e+00> : vector<8xf32>
    %111 = vector.multi_reduction <add>, %108, %cst_60 [1] : vector<8x256xf32> to vector<8xf32>
    %112 = vector.shape_cast %111 : vector<8xf32> to vector<8x1xf32>
    %cst_61 = arith.constant 2.560000e+02 : f32
    %113 = vector.broadcast %cst_61 : f32 to vector<8x1xf32>
    %114 = arith.divf %112, %113 : vector<8x1xf32>
    %115 = vector.broadcast %114 : vector<8x1xf32> to vector<8x256xf32>
    %116 = arith.subf %108, %115 : vector<8x256xf32>
    %117 = arith.mulf %116, %116 : vector<8x256xf32>
    %cst_62 = arith.constant dense<0.000000e+00> : vector<8xf32>
    %118 = vector.multi_reduction <add>, %117, %cst_62 [1] : vector<8x256xf32> to vector<8xf32>
    %119 = vector.shape_cast %118 : vector<8xf32> to vector<8x1xf32>
    %cst_63 = arith.constant 2.560000e+02 : f32
    %120 = vector.broadcast %cst_63 : f32 to vector<8x1xf32>
    %121 = arith.divf %119, %120 : vector<8x1xf32>
    %cst_64 = arith.constant 9.99999974E-6 : f32
    %122 = vector.broadcast %cst_64 : f32 to vector<8x1xf32>
    %123 = arith.addf %121, %122 : vector<8x1xf32>
    %124 = math.rsqrt %123 : vector<8x1xf32>
    %125 = vector.broadcast %124 : vector<8x1xf32> to vector<8x256xf32>
    %126 = arith.mulf %116, %125 : vector<8x256xf32>
    %127 = vector.broadcast %109 : vector<1x256xf32> to vector<8x256xf32>
    %128 = arith.mulf %126, %127 : vector<8x256xf32>
    %129 = vector.broadcast %110 : vector<1x256xf32> to vector<8x256xf32>
    %130 = arith.addf %128, %129 : vector<8x256xf32>
    %c0_65 = arith.constant 0 : index
    %c0_66 = arith.constant 0 : index
    %131 = vector.load %arg12[%c0_65, %c0_66] : memref<256x512xf32, #tpu.memory_space<vmem>>, vector<256x512xf32>
    %cst_67 = arith.constant dense<0.000000e+00> : vector<8x512xf32>
    %132 = tpu.matmul %130, %131, %cst_67 {dimension_numbers = #tpu.dot_dimension_numbers<[1], [0], [0], [1], [0, 0, 1, 1], [], []>} : vector<8x256xf32>, vector<256x512xf32>, vector<8x512xf32> -> vector<8x512xf32>
    %c0_68 = arith.constant 0 : index
    %c0_69 = arith.constant 0 : index
    %133 = vector.load %arg13[%c0_68, %c0_69] : memref<1x512xf32, #tpu.memory_space<vmem>>, vector<1x512xf32>
    %134 = vector.broadcast %133 : vector<1x512xf32> to vector<8x512xf32>
    %135 = arith.addf %132, %134 : vector<8x512xf32>
    %cst_70 = arith.constant 0.000000e+00 : f32
    %136 = vector.broadcast %cst_70 : f32 to vector<8x512xf32>
    %137 = arith.maximumf %135, %136 : vector<8x512xf32>
    %c0_71 = arith.constant 0 : index
    %c0_72 = arith.constant 0 : index
    %138 = vector.load %arg14[%c0_71, %c0_72] : memref<512x256xf32, #tpu.memory_space<vmem>>, vector<512x256xf32>
    %cst_73 = arith.constant dense<0.000000e+00> : vector<8x256xf32>
    %139 = tpu.matmul %137, %138, %cst_73 {dimension_numbers = #tpu.dot_dimension_numbers<[1], [0], [0], [1], [0, 0, 1, 1], [], []>} : vector<8x512xf32>, vector<512x256xf32>, vector<8x256xf32> -> vector<8x256xf32>
    %c0_74 = arith.constant 0 : index
    %c0_75 = arith.constant 0 : index
    %140 = vector.load %arg15[%c0_74, %c0_75] : memref<1x256xf32, #tpu.memory_space<vmem>>, vector<1x256xf32>
    %141 = vector.broadcast %140 : vector<1x256xf32> to vector<8x256xf32>
    %142 = arith.addf %139, %141 : vector<8x256xf32>
    %c0_76 = arith.constant 0 : index
    %c0_77 = arith.constant 0 : index
    %143 = vector.load %arg16[%c0_76, %c0_77] : memref<1x256xf32, #tpu.memory_space<vmem>>, vector<1x256xf32>
    %c0_78 = arith.constant 0 : index
    %c0_79 = arith.constant 0 : index
    %144 = vector.load %arg17[%c0_78, %c0_79] : memref<1x256xf32, #tpu.memory_space<vmem>>, vector<1x256xf32>
    %cst_80 = arith.constant dense<0.000000e+00> : vector<8xf32>
    %145 = vector.multi_reduction <add>, %142, %cst_80 [1] : vector<8x256xf32> to vector<8xf32>
    %146 = vector.shape_cast %145 : vector<8xf32> to vector<8x1xf32>
    %cst_81 = arith.constant 2.560000e+02 : f32
    %147 = vector.broadcast %cst_81 : f32 to vector<8x1xf32>
    %148 = arith.divf %146, %147 : vector<8x1xf32>
    %149 = vector.broadcast %148 : vector<8x1xf32> to vector<8x256xf32>
    %150 = arith.subf %142, %149 : vector<8x256xf32>
    %151 = arith.mulf %150, %150 : vector<8x256xf32>
    %cst_82 = arith.constant dense<0.000000e+00> : vector<8xf32>
    %152 = vector.multi_reduction <add>, %151, %cst_82 [1] : vector<8x256xf32> to vector<8xf32>
    %153 = vector.shape_cast %152 : vector<8xf32> to vector<8x1xf32>
    %cst_83 = arith.constant 2.560000e+02 : f32
    %154 = vector.broadcast %cst_83 : f32 to vector<8x1xf32>
    %155 = arith.divf %153, %154 : vector<8x1xf32>
    %cst_84 = arith.constant 9.99999974E-6 : f32
    %156 = vector.broadcast %cst_84 : f32 to vector<8x1xf32>
    %157 = arith.addf %155, %156 : vector<8x1xf32>
    %158 = math.rsqrt %157 : vector<8x1xf32>
    %159 = vector.broadcast %158 : vector<8x1xf32> to vector<8x256xf32>
    %160 = arith.mulf %150, %159 : vector<8x256xf32>
    %161 = vector.broadcast %143 : vector<1x256xf32> to vector<8x256xf32>
    %162 = arith.mulf %160, %161 : vector<8x256xf32>
    %163 = vector.broadcast %144 : vector<1x256xf32> to vector<8x256xf32>
    %164 = arith.addf %162, %163 : vector<8x256xf32>
    %c0_85 = arith.constant 0 : index
    %c0_86 = arith.constant 0 : index
    %c0_87 = arith.constant 0 : index
    %c0_88 = arith.constant 0 : index
    %165 = vector.load %arg18[%c0_85, %c0_86, %c0_87, %c0_88] : memref<1x1x8x256xf32, #tpu.memory_space<vmem>>, vector<1x1x8x256xf32>
    %166 = vector.shape_cast %165 : vector<1x1x8x256xf32> to vector<8x256xf32>
    %167 = vector.shape_cast %164 : vector<8x256xf32> to vector<1x1x8x256xf32>
    tpu.vector_store %arg18[%c0_85, %c0_86, %c0_87, %c0_88], %167 {strides = array<i32>} : memref<1x1x8x256xf32, #tpu.memory_space<vmem>>, vector<1x1x8x256xf32>,
    return
  }
  func.func @transform_0(%arg0: i32, %arg1: i32) -> (i32, i32, i32) {
    %c0_i32 = arith.constant 0 : i32
    %c0_i32_0 = arith.constant 0 : i32
    %c0_i32_1 = arith.constant 0 : i32
    return %arg1, %c0_i32, %c0_i32_0 : i32, i32, i32
  }
  func.func @transform_1(%arg0: i32, %arg1: i32) -> (i32, i32, i32) {
    %c0_i32 = arith.constant 0 : i32
    %c0_i32_0 = arith.constant 0 : i32
    %c0_i32_1 = arith.constant 0 : i32
    return %arg1, %c0_i32, %c0_i32_0 : i32, i32, i32
  }
  func.func @transform_2(%arg0: i32, %arg1: i32) -> (i32, i32, i32) {
    %c0_i32 = arith.constant 0 : i32
    %c0_i32_0 = arith.constant 0 : i32
    %c0_i32_1 = arith.constant 0 : i32
    return %arg1, %c0_i32, %c0_i32_0 : i32, i32, i32
  }
  func.func @transform_3(%arg0: i32, %arg1: i32) -> (i32, i32, i32) {
    %c0_i32 = arith.constant 0 : i32
    %c0_i32_0 = arith.constant 0 : i32
    %c0_i32_1 = arith.constant 0 : i32
    return %arg1, %c0_i32, %c0_i32_0 : i32, i32, i32
  }
  func.func @transform_4(%arg0: i32, %arg1: i32) -> (i32, i32, i32) {
    %c0_i32 = arith.constant 0 : i32
    %c0_i32_0 = arith.constant 0 : i32
    %c0_i32_1 = arith.constant 0 : i32
    return %arg0, %c0_i32, %c0_i32_0 : i32, i32, i32
  }
  func.func @transform_5(%arg0: i32, %arg1: i32) -> (i32, i32, i32) {
    %c0_i32 = arith.constant 0 : i32
    %c0_i32_0 = arith.constant 0 : i32
    %c0_i32_1 = arith.constant 0 : i32
    return %arg0, %c0_i32, %c0_i32_0 : i32, i32, i32
  }
  func.func @transform_6(%arg0: i32, %arg1: i32) -> (i32, i32, i32) {
    %c0_i32 = arith.constant 0 : i32
    %c0_i32_0 = arith.constant 0 : i32
    %c0_i32_1 = arith.constant 0 : i32
    return %arg0, %c0_i32, %c0_i32_0 : i32, i32, i32
  }
  func.func @transform_7(%arg0: i32, %arg1: i32) -> (i32, i32, i32) {
    %c0_i32 = arith.constant 0 : i32
    %c0_i32_0 = arith.constant 0 : i32
    %c0_i32_1 = arith.constant 0 : i32
    return %arg0, %c0_i32, %c0_i32_0 : i32, i32, i32
  }
  func.func @transform_8(%arg0: i32, %arg1: i32) -> (i32, i32) {
    %c0_i32 = arith.constant 0 : i32
    %c0_i32_0 = arith.constant 0 : i32
    %c0_i32_1 = arith.constant 0 : i32
    return %c0_i32, %c0_i32_0 : i32, i32
  }
  func.func @transform_9(%arg0: i32, %arg1: i32) -> (i32, i32) {
    %c0_i32 = arith.constant 0 : i32
    %c0_i32_0 = arith.constant 0 : i32
    %c0_i32_1 = arith.constant 0 : i32
    return %c0_i32, %c0_i32_0 : i32, i32
  }
  func.func @transform_10(%arg0: i32, %arg1: i32) -> (i32, i32) {
    %c0_i32 = arith.constant 0 : i32
    %c0_i32_0 = arith.constant 0 : i32
    %c0_i32_1 = arith.constant 0 : i32
    return %c0_i32, %c0_i32_0 : i32, i32
  }
  func.func @transform_11(%arg0: i32, %arg1: i32) -> (i32, i32) {
    %c0_i32 = arith.constant 0 : i32
    %c0_i32_0 = arith.constant 0 : i32
    %c0_i32_1 = arith.constant 0 : i32
    return %c0_i32, %c0_i32_0 : i32, i32
  }
  func.func @transform_12(%arg0: i32, %arg1: i32) -> (i32, i32) {
    %c0_i32 = arith.constant 0 : i32
    %c0_i32_0 = arith.constant 0 : i32
    %c0_i32_1 = arith.constant 0 : i32
    return %c0_i32, %c0_i32_0 : i32, i32
  }
  func.func @transform_13(%arg0: i32, %arg1: i32) -> (i32, i32) {
    %c0_i32 = arith.constant 0 : i32
    %c0_i32_0 = arith.constant 0 : i32
    %c0_i32_1 = arith.constant 0 : i32
    return %c0_i32, %c0_i32_0 : i32, i32
  }
  func.func @transform_14(%arg0: i32, %arg1: i32) -> (i32, i32) {
    %c0_i32 = arith.constant 0 : i32
    %c0_i32_0 = arith.constant 0 : i32
    %c0_i32_1 = arith.constant 0 : i32
    return %c0_i32, %c0_i32_0 : i32, i32
  }
  func.func @transform_15(%arg0: i32, %arg1: i32) -> (i32, i32) {
    %c0_i32 = arith.constant 0 : i32
    %c0_i32_0 = arith.constant 0 : i32
    %c0_i32_1 = arith.constant 0 : i32
    return %c0_i32, %c0_i32_0 : i32, i32
  }
  func.func @transform_16(%arg0: i32, %arg1: i32) -> (i32, i32, i32, i32) {
    %c0_i32 = arith.constant 0 : i32
    %c0_i32_0 = arith.constant 0 : i32
    %c0_i32_1 = arith.constant 0 : i32
    return %arg1, %arg0, %c0_i32, %c0_i32_0 : i32, i32, i32, i32
  }
}

</mosaic_0001>

<llo_original>
// kernel: tpu_custom_call.1
$region0: #{tpu_custom_call.1}
  #allocation0 [shape = 'u32[]', space=smem, size = 0x4, offset = 0x4, fixed_abs, tag = 'smem constant byte address 0x4 - core index']
  #allocation1 [shape = 'u32[72,128]{1,0:T(1,128)}', space=vmem, size = 0x9000, scoped, tag = 'internal scratch']
  %s0 = inlined_call_operand.hbm [shape: f32[2,8,256], index: 0, kind: input, shape index: {}]
  %s1 = inlined_call_operand.hbm [shape: f32[2,16,256], index: 1, kind: input, shape index: {}]
  %s2 = inlined_call_operand.hbm [shape: f32[2,16,256], index: 2, kind: input, shape index: {}]
  %s3 = inlined_call_operand.hbm [shape: f32[2,1,16], index: 3, kind: input, shape index: {}]
  %s4 = inlined_call_operand.hbm [shape: f32[6,256,768], index: 4, kind: input, shape index: {}]
  %s5 = inlined_call_operand.hbm [shape: f32[6,1,768], index: 5, kind: input, shape index: {}]
  %s6 = inlined_call_operand.hbm [shape: f32[6,256,256], index: 6, kind: input, shape index: {}]
  %s7 = inlined_call_operand.hbm [shape: f32[6,1,256], index: 7, kind: input, shape index: {}]
  %s8 = inlined_call_operand.hbm [shape: f32[1,256], index: 8, kind: input, shape index: {}]
  %s9 = inlined_call_operand.hbm [shape: f32[1,256], index: 9, kind: input, shape index: {}]
  %s10 = inlined_call_operand.hbm [shape: f32[256,512], index: 10, kind: input, shape index: {}]
  %s11 = inlined_call_operand.hbm [shape: f32[1,512], index: 11, kind: input, shape index: {}]
  %s12 = inlined_call_operand.hbm [shape: f32[512,256], index: 12, kind: input, shape index: {}]
  %s13 = inlined_call_operand.hbm [shape: f32[1,256], index: 13, kind: input, shape index: {}]
  %s14 = inlined_call_operand.hbm [shape: f32[1,256], index: 14, kind: input, shape index: {}]
  %s15 = inlined_call_operand.hbm [shape: f32[1,256], index: 15, kind: input, shape index: {}]
  %s16 = inlined_call_operand.hbm [shape: f32[2,6,8,256], index: 16, kind: output, shape index: {}]
  %s17 = sld [smem:[#allocation0]]
  $region161: #{tpu_custom_call.1} parent=0
    _
  %s19 = ssub.s32 1, %s17
  %s20 = scalar_select 0, %s19, %s17
  $region1: #{tpu_custom_call.1} parent=0
    #allocation2 [shape = 'u8[16384]{0}', space=vmem, size = 0x4000, scoped, tag = 'input window, operand 0']
    #allocation3 [shape = 's32[2]{0}', space=sflag, size = 0x8, scoped, tag = 'scoped memory for tpu_custom_call.1']
    #allocation4 [shape = 's32[2]{0}', space=sflag, size = 0x8, scoped, tag = 'scoped memory for tpu_custom_call.1']
    #allocation5 [shape = 'u8[32768]{0}', space=vmem, size = 0x8000, scoped, tag = 'input window, operand 1']
    #allocation6 [shape = 's32[2]{0}', space=sflag, size = 0x8, scoped, tag = 'scoped memory for tpu_custom_call.1']
    #allocation7 [shape = 'u8[32768]{0}', space=vmem, size = 0x8000, scoped, tag = 'input window, operand 2']
    #allocation8 [shape = 'u8[1024]{0}', space=vmem, size = 0x400, scoped, tag = 'input window, operand 3']
    #allocation9 [shape = 's32[2]{0}', space=sflag, size = 0x8, scoped, tag = 'scoped memory for tpu_custom_call.1']
    #allocation10 [shape = 'u8[1572864]{0}', space=vmem, size = 0x180000, scoped, tag = 'input window, operand 4']
    #allocation11 [shape = 'u8[6144]{0}', space=vmem, size = 0x1800, scoped, tag = 'input window, operand 5']
    #allocation12 [shape = 's32[2]{0}', space=sflag, size = 0x8, scoped, tag = 'scoped memory for tpu_custom_call.1']
    #allocation13 [shape = 'u8[524288]{0}', space=vmem, size = 0x80000, scoped, tag = 'input window, operand 6']
    #allocation14 [shape = 'u8[2048]{0}', space=vmem, size = 0x800, scoped, tag = 'input window, operand 7']
    #allocation15 [shape = 's32[2]{0}', space=sflag, size = 0x8, scoped, tag = 'scoped memory for tpu_custom_call.1']
    #allocation16 [shape = 'u8[1024]{0}', space=vmem, size = 0x400, scoped, tag = 'input window, operand 8, single buffered']
    #allocation17 [shape = 'u8[1024]{0}', space=vmem, size = 0x400, scoped, tag = 'input window, operand 9, single buffered']
    #allocation18 [shape = 's32[1]{0}', space=sflag, size = 0x4, scoped, tag = 'scoped memory for tpu_custom_call.1']
    #allocation19 [shape = 'u8[524288]{0}', space=vmem, size = 0x80000, scoped, tag = 'input window, operand 10, single buffered']
    #allocation20 [shape = 'u8[2048]{0}', space=vmem, size = 0x800, scoped, tag = 'input window, operand 11, single buffered']
    #allocation21 [shape = 's32[1]{0}', space=sflag, size = 0x4, scoped, tag = 'scoped memory for tpu_custom_call.1']
    #allocation22 [shape = 'u8[524288]{0}', space=vmem, size = 0x80000, scoped, tag = 'input window, operand 12, single buffered']
    #allocation23 [shape = 'u8[1024]{0}', space=vmem, size = 0x400, scoped, tag = 'input window, operand 13, single buffered']
    #allocation24 [shape = 's32[1]{0}', space=sflag, size = 0x4, scoped, tag = 'scoped memory for tpu_custom_call.1']
    #allocation25 [shape = 'u8[1024]{0}', space=vmem, size = 0x400, scoped, tag = 'input window, operand 14, single buffered']
    #allocation26 [shape = 'u8[1024]{0}', space=vmem, size = 0x400, scoped, tag = 'input window, operand 15, single buffered']
    #allocation27 [shape = 's32[1]{0}', space=sflag, size = 0x4, scoped, tag = 'scoped memory for tpu_custom_call.1']
    #allocation28 [shape = 'u8[16384]{0}', space=vmem, size = 0x4000, scoped, tag = 'output window, operand 0']
    %21 = vsyncpa [#allocation3], 0
    %s22 = scalar_lea.sflag [#allocation3], 1
    %23 = vsyncpa %s22, 0
    %24 = vsyncpa [#allocation6], 0
    %s25 = scalar_lea.sflag [#allocation6], 1
    %26 = vsyncpa %s25, 0
    %27 = vsyncpa [#allocation9], 0
    %s28 = scalar_lea.sflag [#allocation9], 1
    %29 = vsyncpa %s28, 0
    %30 = vsyncpa [#allocation12], 0
    %s31 = scalar_lea.sflag [#allocation12], 1
    %32 = vsyncpa %s31, 0
    %33 = vsyncpa [#allocation15], 0
    %s34 = scalar_lea.sflag [#allocation15], 1
    %35 = vsyncpa %s34, 0
    %36 = vsyncpa [#allocation18], 0
    %37 = vsyncpa [#allocation21], 0
    %38 = vsyncpa [#allocation24], 0
    %39 = vsyncpa [#allocation27], 0
    %40 = vsyncpa [#allocation4], 0
    %s41 = scalar_lea.sflag [#allocation4], 1
    %42 = vsyncpa %s41, 0
    loop: start=0, step=1, limit=14
    $region2: #{tpu_custom_call.1} parent=1 // loop_pre_header
      _
    $region3: #{tpu_custom_call.1} parent=1 // loop_header
      %s44 = sphi 0, %s48
      %p45 = scmp.ge.s32.totalorder %s44, 14
      %s51 = sphi 0, %s63
      %s52 = sphi 0, %s59
      %s53 = sphi 0, %s51
      %s54 = sphi 0, %s52
      %s55 = sphi 0, %s53
      %s56 = sphi 0, %s54
      %s66 = sphi 0, %s68
      %s69 = sphi 0, %s66
      %s70 = sphi 0, %s69
      %s86 = sphi 0, %s70
      %s92 = sphi 0, %s94
      %s95 = sphi 0, %s92
      %s96 = sphi 0, %s95
      %s112 = sphi 0, %s96
      %s118 = sphi 0, %s120
      %s121 = sphi 0, %s118
      %s122 = sphi 0, %s121
      %s138 = sphi 0, %s122
      %s144 = sphi 0, %s146
      %s147 = sphi 0, %s144
      %s148 = sphi 0, %s147
      %s164 = sphi 0, %s148
      %s170 = sphi 0, %s172
      %s173 = sphi 0, %s170
      %s174 = sphi 0, %s173
      %s190 = sphi 0, %s174
      %s196 = sphi 0, %s198
      %s199 = sphi 0, %s196
      %s200 = sphi 0, %s199
      %s216 = sphi 0, %s200
      %s222 = sphi 0, %s224
      %s225 = sphi 0, %s222
      %s226 = sphi 0, %s225
      %s242 = sphi 0, %s226
      %s248 = sphi 0, %s250
      %s251 = sphi 0, %s248
      %s252 = sphi 0, %s251
      %s268 = sphi 0, %s252
      %s272 = sphi 0, %s272
      %s274 = sphi 0, %s272
      %s275 = sphi 0, %s274
      %s289 = sphi 0, %s275
      %s293 = sphi 0, %s293
      %s295 = sphi 0, %s293
      %s296 = sphi 0, %s295
      %s310 = sphi 0, %s296
      %s314 = sphi 0, %s314
      %s316 = sphi 0, %s314
      %s317 = sphi 0, %s316
      %s331 = sphi 0, %s317
      %s335 = sphi 0, %s335
      %s337 = sphi 0, %s335
      %s338 = sphi 0, %s337
      %s352 = sphi 0, %s338
      %s356 = sphi 0, %s356
      %s358 = sphi 0, %s356
      %s359 = sphi 0, %s358
      %s373 = sphi 0, %s359
      %s377 = sphi 0, %s377
      %s379 = sphi 0, %s377
      %s380 = sphi 0, %s379
      %s394 = sphi 0, %s380
      %s398 = sphi 0, %s398
      %s400 = sphi 0, %s398
      %s401 = sphi 0, %s400
      %s415 = sphi 0, %s401
      %s419 = sphi 0, %s419
      %s421 = sphi 0, %s419
      %s422 = sphi 0, %s421
      %s436 = sphi 0, %s422
      %s444 = sphi 0, %s446
      %s447 = sphi 0, %s444
      %s448 = sphi 0, %s447
      %s464 = sphi 0, %s448
    $region4: #{tpu_custom_call.1} parent=1 // loop_header_branch
      %47 = sbr.rel (%p45) target = $region8
    $region5: #{tpu_custom_call.1} parent=1 // loop_body
      %s49 = ssub.s32 %s44, 1
      %s50 = ssub.s32 %s44, 2
      %s57 = sadd.s32 1, %s52
      %p58 = scmp.ge.s32.totalorder %s57, 2
      %s59 = scalar_select %p58, 0, %s57
      %s60 = sadd.s32 1, %s51
      %s61 = scalar_select %p58, %s60, %s51
      %p62 = scmp.ge.s32.totalorder %s61, 6
      %s63 = scalar_select %p62, 0, %s61
      %s64 = ssub.s32 %s52, %s59
      %p65 = scmp.eq.s32.totalorder %s64, 0
      %s67 = sadd.s32 %s66, 1
      %s68 = scalar_select %p65, %s66, %s67
      %p71 = pneg %p65
      %p72 = scmp.eq.s32.totalorder %s44, 11
      %p73 = por %p71, %p72
      %p74 = scmp.ne.s32.totalorder %s66, %s69
      %p75 = scmp.eq.s32.totalorder %s44, 0
      %p76 = por %p74, %p75
      %p77 = scmp.ne.s32.totalorder %s66, %s69
      %p78 = scmp.eq.s32.totalorder %s49, 11
      %p79 = por %p77, %p78
      %p80 = scmp.ne.s32.totalorder %s69, %s70
      %p81 = scmp.eq.s32.totalorder %s49, 0
      %p82 = por %p80, %p81
      %p83 = scmp.ne.s32.totalorder %s69, %s70
      %p84 = scmp.eq.s32.totalorder %s50, 11
      %p85 = por %p83, %p84
      %p87 = scmp.ne.s32.totalorder %s70, %s86
      %p88 = scmp.eq.s32.totalorder %s50, 0
      %p89 = por %p87, %p88
      %s90 = ssub.s32 %s52, %s59
      %p91 = scmp.eq.s32.totalorder %s90, 0
      %s93 = sadd.s32 %s92, 1
      %s94 = scalar_select %p91, %s92, %s93
      %p97 = pneg %p91
      %p98 = scmp.eq.s32.totalorder %s44, 11
      %p99 = por %p97, %p98
      %p100 = scmp.ne.s32.totalorder %s92, %s95
      %p101 = scmp.eq.s32.totalorder %s44, 0
      %p102 = por %p100, %p101
      %p103 = scmp.ne.s32.totalorder %s92, %s95
      %p104 = scmp.eq.s32.totalorder %s49, 11
      %p105 = por %p103, %p104
      %p106 = scmp.ne.s32.totalorder %s95, %s96
      %p107 = scmp.eq.s32.totalorder %s49, 0
      %p108 = por %p106, %p107
      %p109 = scmp.ne.s32.totalorder %s95, %s96
      %p110 = scmp.eq.s32.totalorder %s50, 11
      %p111 = por %p109, %p110
      %p113 = scmp.ne.s32.totalorder %s96, %s112
      %p114 = scmp.eq.s32.totalorder %s50, 0
      %p115 = por %p113, %p114
      %s116 = ssub.s32 %s52, %s59
      %p117 = scmp.eq.s32.totalorder %s116, 0
      %s119 = sadd.s32 %s118, 1
      %s120 = scalar_select %p117, %s118, %s119
      %p123 = pneg %p117
      %p124 = scmp.eq.s32.totalorder %s44, 11
      %p125 = por %p123, %p124
      %p126 = scmp.ne.s32.totalorder %s118, %s121
      %p127 = scmp.eq.s32.totalorder %s44, 0
      %p128 = por %p126, %p127
      %p129 = scmp.ne.s32.totalorder %s118, %s121
      %p130 = scmp.eq.s32.totalorder %s49, 11
      %p131 = por %p129, %p130
      %p132 = scmp.ne.s32.totalorder %s121, %s122
      %p133 = scmp.eq.s32.totalorder %s49, 0
      %p134 = por %p132, %p133
      %p135 = scmp.ne.s32.totalorder %s121, %s122
      %p136 = scmp.eq.s32.totalorder %s50, 11
      %p137 = por %p135, %p136
      %p139 = scmp.ne.s32.totalorder %s122, %s138
      %p140 = scmp.eq.s32.totalorder %s50, 0
      %p141 = por %p139, %p140
      %s142 = ssub.s32 %s52, %s59
      %p143 = scmp.eq.s32.totalorder %s142, 0
      %s145 = sadd.s32 %s144, 1
      %s146 = scalar_select %p143, %s144, %s145
      %p149 = pneg %p143
      %p150 = scmp.eq.s32.totalorder %s44, 11
      %p151 = por %p149, %p150
      %p152 = scmp.ne.s32.totalorder %s144, %s147
      %p153 = scmp.eq.s32.totalorder %s44, 0
      %p154 = por %p152, %p153
      %p155 = scmp.ne.s32.totalorder %s144, %s147
      %p156 = scmp.eq.s32.totalorder %s49, 11
      %p157 = por %p155, %p156
      %p158 = scmp.ne.s32.totalorder %s147, %s148
      %p159 = scmp.eq.s32.totalorder %s49, 0
      %p160 = por %p158, %p159
      %p161 = scmp.ne.s32.totalorder %s147, %s148
      %p162 = scmp.eq.s32.totalorder %s50, 11
      %p163 = por %p161, %p162
      %p165 = scmp.ne.s32.totalorder %s148, %s164
      %p166 = scmp.eq.s32.totalorder %s50, 0
      %p167 = por %p165, %p166
      %s168 = ssub.s32 %s51, %s63
      %p169 = scmp.eq.s32.totalorder %s168, 0
      %s171 = sadd.s32 %s170, 1
      %s172 = scalar_select %p169, %s170, %s171
      %p175 = pneg %p169
      %p176 = scmp.eq.s32.totalorder %s44, 11
      %p177 = por %p175, %p176
      %p178 = scmp.ne.s32.totalorder %s170, %s173
      %p179 = scmp.eq.s32.totalorder %s44, 0
      %p180 = por %p178, %p179
      %p181 = scmp.ne.s32.totalorder %s170, %s173
      %p182 = scmp.eq.s32.totalorder %s49, 11
      %p183 = por %p181, %p182
      %p184 = scmp.ne.s32.totalorder %s173, %s174
      %p185 = scmp.eq.s32.totalorder %s49, 0
      %p186 = por %p184, %p185
      %p187 = scmp.ne.s32.totalorder %s173, %s174
      %p188 = scmp.eq.s32.totalorder %s50, 11
      %p189 = por %p187, %p188
      %p191 = scmp.ne.s32.totalorder %s174, %s190
      %p192 = scmp.eq.s32.totalorder %s50, 0
      %p193 = por %p191, %p192
      %s194 = ssub.s32 %s51, %s63
      %p195 = scmp.eq.s32.totalorder %s194, 0
      %s197 = sadd.s32 %s196, 1
      %s198 = scalar_select %p195, %s196, %s197
      %p201 = pneg %p195
      %p202 = scmp.eq.s32.totalorder %s44, 11
      %p203 = por %p201, %p202
      %p204 = scmp.ne.s32.totalorder %s196, %s199
      %p205 = scmp.eq.s32.totalorder %s44, 0
      %p206 = por %p204, %p205
      %p207 = scmp.ne.s32.totalorder %s196, %s199
      %p208 = scmp.eq.s32.totalorder %s49, 11
      %p209 = por %p207, %p208
      %p210 = scmp.ne.s32.totalorder %s199, %s200
      %p211 = scmp.eq.s32.totalorder %s49, 0
      %p212 = por %p210, %p211
      %p213 = scmp.ne.s32.totalorder %s199, %s200
      %p214 = scmp.eq.s32.totalorder %s50, 11
      %p215 = por %p213, %p214
      %p217 = scmp.ne.s32.totalorder %s200, %s216
      %p218 = scmp.eq.s32.totalorder %s50, 0
      %p219 = por %p217, %p218
      %s220 = ssub.s32 %s51, %s63
      %p221 = scmp.eq.s32.totalorder %s220, 0
      %s223 = sadd.s32 %s222, 1
      %s224 = scalar_select %p221, %s222, %s223
      %p227 = pneg %p221
      %p228 = scmp.eq.s32.totalorder %s44, 11
      %p229 = por %p227, %p228
      %p230 = scmp.ne.s32.totalorder %s222, %s225
      %p231 = scmp.eq.s32.totalorder %s44, 0
      %p232 = por %p230, %p231
      %p233 = scmp.ne.s32.totalorder %s222, %s225
      %p234 = scmp.eq.s32.totalorder %s49, 11
      %p235 = por %p233, %p234
      %p236 = scmp.ne.s32.totalorder %s225, %s226
      %p237 = scmp.eq.s32.totalorder %s49, 0
      %p238 = por %p236, %p237
      %p239 = scmp.ne.s32.totalorder %s225, %s226
      %p240 = scmp.eq.s32.totalorder %s50, 11
      %p241 = por %p239, %p240
      %p243 = scmp.ne.s32.totalorder %s226, %s242
      %p244 = scmp.eq.s32.totalorder %s50, 0
      %p245 = por %p243, %p244
      %s246 = ssub.s32 %s51, %s63
      %p247 = scmp.eq.s32.totalorder %s246, 0
      %s249 = sadd.s32 %s248, 1
      %s250 = scalar_select %p247, %s248, %s249
      %p253 = pneg %p247
      %p254 = scmp.eq.s32.totalorder %s44, 11
      %p255 = por %p253, %p254
      %p256 = scmp.ne.s32.totalorder %s248, %s251
      %p257 = scmp.eq.s32.totalorder %s44, 0
      %p258 = por %p256, %p257
      %p259 = scmp.ne.s32.totalorder %s248, %s251
      %p260 = scmp.eq.s32.totalorder %s49, 11
      %p261 = por %p259, %p260
      %p262 = scmp.ne.s32.totalorder %s251, %s252
      %p263 = scmp.eq.s32.totalorder %s49, 0
      %p264 = por %p262, %p263
      %p265 = scmp.ne.s32.totalorder %s251, %s252
      %p266 = scmp.eq.s32.totalorder %s50, 11
      %p267 = por %p265, %p266
      %p269 = scmp.ne.s32.totalorder %s252, %s268
      %p270 = scmp.eq.s32.totalorder %s50, 0
      %p271 = por %p269, %p270
      %s273 = sadd.s32 %s272, 1
      %p276 = scmp.eq.s32.totalorder %s44, 11
      %p277 = scmp.ne.s32.totalorder %s272, %s274
      %p278 = scmp.eq.s32.totalorder %s44, 0
      %p279 = por %p277, %p278
      %p280 = scmp.ne.s32.totalorder %s272, %s274
      %p281 = scmp.eq.s32.totalorder %s49, 11
      %p282 = por %p280, %p281
      %p283 = scmp.ne.s32.totalorder %s274, %s275
      %p284 = scmp.eq.s32.totalorder %s49, 0
      %p285 = por %p283, %p284
      %p286 = scmp.ne.s32.totalorder %s274, %s275
      %p287 = scmp.eq.s32.totalorder %s50, 11
      %p288 = por %p286, %p287
      %p290 = scmp.ne.s32.totalorder %s275, %s289
      %p291 = scmp.eq.s32.totalorder %s50, 0
      %p292 = por %p290, %p291
      %s294 = sadd.s32 %s293, 1
      %p297 = scmp.eq.s32.totalorder %s44, 11
      %p298 = scmp.ne.s32.totalorder %s293, %s295
      %p299 = scmp.eq.s32.totalorder %s44, 0
      %p300 = por %p298, %p299
      %p301 = scmp.ne.s32.totalorder %s293, %s295
      %p302 = scmp.eq.s32.totalorder %s49, 11
      %p303 = por %p301, %p302
      %p304 = scmp.ne.s32.totalorder %s295, %s296
      %p305 = scmp.eq.s32.totalorder %s49, 0
      %p306 = por %p304, %p305
      %p307 = scmp.ne.s32.totalorder %s295, %s296
      %p308 = scmp.eq.s32.totalorder %s50, 11
      %p309 = por %p307, %p308
      %p311 = scmp.ne.s32.totalorder %s296, %s310
      %p312 = scmp.eq.s32.totalorder %s50, 0
      %p313 = por %p311, %p312
      %s315 = sadd.s32 %s314, 1
      %p318 = scmp.eq.s32.totalorder %s44, 11
      %p319 = scmp.ne.s32.totalorder %s314, %s316
      %p320 = scmp.eq.s32.totalorder %s44, 0
      %p321 = por %p319, %p320
      %p322 = scmp.ne.s32.totalorder %s314, %s316
      %p323 = scmp.eq.s32.totalorder %s49, 11
      %p324 = por %p322, %p323
      %p325 = scmp.ne.s32.totalorder %s316, %s317
      %p326 = scmp.eq.s32.totalorder %s49, 0
      %p327 = por %p325, %p326
      %p328 = scmp.ne.s32.totalorder %s316, %s317
      %p329 = scmp.eq.s32.totalorder %s50, 11
      %p330 = por %p328, %p329
      %p332 = scmp.ne.s32.totalorder %s317, %s331
      %p333 = scmp.eq.s32.totalorder %s50, 0
      %p334 = por %p332, %p333
      %s336 = sadd.s32 %s335, 1
      %p339 = scmp.eq.s32.totalorder %s44, 11
      %p340 = scmp.ne.s32.totalorder %s335, %s337
      %p341 = scmp.eq.s32.totalorder %s44, 0
      %p342 = por %p340, %p341
      %p343 = scmp.ne.s32.totalorder %s335, %s337
      %p344 = scmp.eq.s32.totalorder %s49, 11
      %p345 = por %p343, %p344
      %p346 = scmp.ne.s32.totalorder %s337, %s338
      %p347 = scmp.eq.s32.totalorder %s49, 0
      %p348 = por %p346, %p347
      %p349 = scmp.ne.s32.totalorder %s337, %s338
      %p350 = scmp.eq.s32.totalorder %s50, 11
      %p351 = por %p349, %p350
      %p353 = scmp.ne.s32.totalorder %s338, %s352
      %p354 = scmp.eq.s32.totalorder %s50, 0
      %p355 = por %p353, %p354
      %s357 = sadd.s32 %s356, 1
      %p360 = scmp.eq.s32.totalorder %s44, 11
      %p361 = scmp.ne.s32.totalorder %s356, %s358
      %p362 = scmp.eq.s32.totalorder %s44, 0
      %p363 = por %p361, %p362
      %p364 = scmp.ne.s32.totalorder %s356, %s358
      %p365 = scmp.eq.s32.totalorder %s49, 11
      %p366 = por %p364, %p365
      %p367 = scmp.ne.s32.totalorder %s358, %s359
      %p368 = scmp.eq.s32.totalorder %s49, 0
      %p369 = por %p367, %p368
      %p370 = scmp.ne.s32.totalorder %s358, %s359
      %p371 = scmp.eq.s32.totalorder %s50, 11
      %p372 = por %p370, %p371
      %p374 = scmp.ne.s32.totalorder %s359, %s373
      %p375 = scmp.eq.s32.totalorder %s50, 0
      %p376 = por %p374, %p375
      %s378 = sadd.s32 %s377, 1
      %p381 = scmp.eq.s32.totalorder %s44, 11
      %p382 = scmp.ne.s32.totalorder %s377, %s379
      %p383 = scmp.eq.s32.totalorder %s44, 0
      %p384 = por %p382, %p383
      %p385 = scmp.ne.s32.totalorder %s377, %s379
      %p386 = scmp.eq.s32.totalorder %s49, 11
      %p387 = por %p385, %p386
      %p388 = scmp.ne.s32.totalorder %s379, %s380
      %p389 = scmp.eq.s32.totalorder %s49, 0
      %p390 = por %p388, %p389
      %p391 = scmp.ne.s32.totalorder %s379, %s380
      %p392 = scmp.eq.s32.totalorder %s50, 11
      %p393 = por %p391, %p392
      %p395 = scmp.ne.s32.totalorder %s380, %s394
      %p396 = scmp.eq.s32.totalorder %s50, 0
      %p397 = por %p395, %p396
      %s399 = sadd.s32 %s398, 1
      %p402 = scmp.eq.s32.totalorder %s44, 11
      %p403 = scmp.ne.s32.totalorder %s398, %s400
      %p404 = scmp.eq.s32.totalorder %s44, 0
      %p405 = por %p403, %p404
      %p406 = scmp.ne.s32.totalorder %s398, %s400
      %p407 = scmp.eq.s32.totalorder %s49, 11
      %p408 = por %p406, %p407
      %p409 = scmp.ne.s32.totalorder %s400, %s401
      %p410 = scmp.eq.s32.totalorder %s49, 0
      %p411 = por %p409, %p410
      %p412 = scmp.ne.s32.totalorder %s400, %s401
      %p413 = scmp.eq.s32.totalorder %s50, 11
      %p414 = por %p412, %p413
      %p416 = scmp.ne.s32.totalorder %s401, %s415
      %p417 = scmp.eq.s32.totalorder %s50, 0
      %p418 = por %p416, %p417
      %s420 = sadd.s32 %s419, 1
      %p423 = scmp.eq.s32.totalorder %s44, 11
      %p424 = scmp.ne.s32.totalorder %s419, %s421
      %p425 = scmp.eq.s32.totalorder %s44, 0
      %p426 = por %p424, %p425
      %p427 = scmp.ne.s32.totalorder %s419, %s421
      %p428 = scmp.eq.s32.totalorder %s49, 11
      %p429 = por %p427, %p428
      %p430 = scmp.ne.s32.totalorder %s421, %s422
      %p431 = scmp.eq.s32.totalorder %s49, 0
      %p432 = por %p430, %p431
      %p433 = scmp.ne.s32.totalorder %s421, %s422
      %p434 = scmp.eq.s32.totalorder %s50, 11
      %p435 = por %p433, %p434
      %p437 = scmp.ne.s32.totalorder %s422, %s436
      %p438 = scmp.eq.s32.totalorder %s50, 0
      %p439 = por %p437, %p438
      %s440 = ssub.s32 %s52, %s59
      %s441 = ssub.s32 %s51, %s63
      %s442 = sor.u32 %s440, %s441
      %p443 = scmp.eq.s32.totalorder %s442, 0
      %s445 = sadd.s32 %s444, 1
      %s446 = scalar_select %p443, %s444, %s445
      %p449 = pneg %p443
      %p450 = scmp.eq.s32.totalorder %s44, 11
      %p451 = por %p449, %p450
      %p452 = scmp.ne.s32.totalorder %s444, %s447
      %p453 = scmp.eq.s32.totalorder %s44, 0
      %p454 = por %p452, %p453
      %p455 = scmp.ne.s32.totalorder %s444, %s447
      %p456 = scmp.eq.s32.totalorder %s49, 11
      %p457 = por %p455, %p456
      %p458 = scmp.ne.s32.totalorder %s447, %s448
      %p459 = scmp.eq.s32.totalorder %s49, 0
      %p460 = por %p458, %p459
      %p461 = scmp.ne.s32.totalorder %s447, %s448
      %p462 = scmp.eq.s32.totalorder %s50, 11
      %p463 = por %p461, %p462
      %p465 = scmp.ne.s32.totalorder %s448, %s464
      %p466 = scmp.eq.s32.totalorder %s50, 0
      %p467 = por %p465, %p466
      %p468 = scmp.le.s32.totalorder 1, %s44
      %p469 = scmp.lt.s32.totalorder %s44, 13
      %p470 = pnand %p468, %p469
      %p471 = pneg %p470
      // Predicated region
      $region9: #{tpu_custom_call.1} parent=5 // pred_check
        _
      $region10: #{tpu_custom_call.1} parent=5 // pred_check_branch
        %473 = sbr.rel (%p470) target = $region12
      $region11: #{tpu_custom_call.1} parent=5 // pred_region
        %s474 = ssub.s32 %s44, 1
        // Predicated region
        $region13: #{tpu_custom_call.1} parent=11 // pred_check
          %p475 = pneg %p285
        $region14: #{tpu_custom_call.1} parent=11 // pred_check_branch
          %477 = sbr.rel (%p475) target = $region16
        $region15: #{tpu_custom_call.1} parent=11 // pred_region
          %479 = vsyncadd [#allocation15], 0
          %s481 = sshll.u32 %s8, 4
          %s482 = int_to_ptr.hbm [resolvable:$true] %s481
          %s483 = sshll.u32 [#allocation16], 4
          %s484 = int_to_ptr.vmem [resolvable:$true] %s483
          %486 = dma.hbm_to_vmem [thread:$0]  %s482, 32, %s484, [#allocation15]
        $region16: #{tpu_custom_call.1} parent=11 // pred_fallthru
          _
        // Predicated region
        $region17: #{tpu_custom_call.1} parent=11 // pred_check
          %p487 = pneg %p306
        $region18: #{tpu_custom_call.1} parent=11 // pred_check_branch
          %489 = sbr.rel (%p487) target = $region20
        $region19: #{tpu_custom_call.1} parent=11 // pred_region
          %491 = vsyncadd [#allocation18], 0
          %s493 = sshll.u32 %s9, 4
          %s494 = int_to_ptr.hbm [resolvable:$true] %s493
          %s495 = sshll.u32 [#allocation17], 4
          %s496 = int_to_ptr.vmem [resolvable:$true] %s495
          %498 = dma.hbm_to_vmem [thread:$0]  %s494, 32, %s496, [#allocation18]
        $region20: #{tpu_custom_call.1} parent=11 // pred_fallthru
          _
        // Predicated region
        $region21: #{tpu_custom_call.1} parent=11 // pred_check
          %p499 = pneg %p327
        $region22: #{tpu_custom_call.1} parent=11 // pred_check_branch
          %501 = sbr.rel (%p499) target = $region24
        $region23: #{tpu_custom_call.1} parent=11 // pred_region
          %503 = vsyncadd [#allocation18], 0
          %s504 = sshll.u32 %s10, 4
          %s505 = int_to_ptr.hbm [resolvable:$true] %s504
          %s506 = sshll.u32 [#allocation19], 4
          %s507 = int_to_ptr.vmem [resolvable:$true] %s506
          %512 = dma.hbm_to_vmem [thread:$0]  %s505, 16384, %s507, [#allocation18], 512, 512, 32
        $region24: #{tpu_custom_call.1} parent=11 // pred_fallthru
          _
        // Predicated region
        $region25: #{tpu_custom_call.1} parent=11 // pred_check
          %p513 = pneg %p348
        $region26: #{tpu_custom_call.1} parent=11 // pred_check_branch
          %515 = sbr.rel (%p513) target = $region28
        $region27: #{tpu_custom_call.1} parent=11 // pred_region
          %517 = vsyncadd [#allocation21], 0
          %s519 = sshll.u32 %s11, 4
          %s520 = int_to_ptr.hbm [resolvable:$true] %s519
          %s521 = sshll.u32 [#allocation20], 4
          %s522 = int_to_ptr.vmem [resolvable:$true] %s521
          %524 = dma.hbm_to_vmem [thread:$0]  %s520, 64, %s522, [#allocation21]
        $region28: #{tpu_custom_call.1} parent=11 // pred_fallthru
          _
        // Predicated region
        $region29: #{tpu_custom_call.1} parent=11 // pred_check
          %p525 = pneg %p369
        $region30: #{tpu_custom_call.1} parent=11 // pred_check_branch
          %527 = sbr.rel (%p525) target = $region32
        $region31: #{tpu_custom_call.1} parent=11 // pred_region
          %529 = vsyncadd [#allocation21], 0
          %s530 = sshll.u32 %s12, 4
          %s531 = int_to_ptr.hbm [resolvable:$true] %s530
          %s532 = sshll.u32 [#allocation22], 4
          %s533 = int_to_ptr.vmem [resolvable:$true] %s532
          %538 = dma.hbm_to_vmem [thread:$0]  %s531, 16384, %s533, [#allocation21], 256, 256, 16
        $region32: #{tpu_custom_call.1} parent=11 // pred_fallthru
          _
        // Predicated region
        $region33: #{tpu_custom_call.1} parent=11 // pred_check
          %p539 = pneg %p390
        $region34: #{tpu_custom_call.1} parent=11 // pred_check_branch
          %541 = sbr.rel (%p539) target = $region36
        $region35: #{tpu_custom_call.1} parent=11 // pred_region
          %543 = vsyncadd [#allocation24], 0
          %s545 = sshll.u32 %s13, 4
          %s546 = int_to_ptr.hbm [resolvable:$true] %s545
          %s547 = sshll.u32 [#allocation23], 4
          %s548 = int_to_ptr.vmem [resolvable:$true] %s547
          %550 = dma.hbm_to_vmem [thread:$0]  %s546, 32, %s548, [#allocation24]
        $region36: #{tpu_custom_call.1} parent=11 // pred_fallthru
          _
        // Predicated region
        $region37: #{tpu_custom_call.1} parent=11 // pred_check
          %p551 = pneg %p411
        $region38: #{tpu_custom_call.1} parent=11 // pred_check_branch
          %553 = sbr.rel (%p551) target = $region40
        $region39: #{tpu_custom_call.1} parent=11 // pred_region
          %555 = vsyncadd [#allocation24], 0
          %s557 = sshll.u32 %s14, 4
          %s558 = int_to_ptr.hbm [resolvable:$true] %s557
          %s559 = sshll.u32 [#allocation25], 4
          %s560 = int_to_ptr.vmem [resolvable:$true] %s559
          %562 = dma.hbm_to_vmem [thread:$0]  %s558, 32, %s560, [#allocation24]
        $region40: #{tpu_custom_call.1} parent=11 // pred_fallthru
          _
        // Predicated region
        $region41: #{tpu_custom_call.1} parent=11 // pred_check
          %p563 = pneg %p432
        $region42: #{tpu_custom_call.1} parent=11 // pred_check_branch
          %565 = sbr.rel (%p563) target = $region44
        $region43: #{tpu_custom_call.1} parent=11 // pred_region
          %567 = vsyncadd [#allocation27], 0
          %s569 = sshll.u32 %s15, 4
          %s570 = int_to_ptr.hbm [resolvable:$true] %s569
          %s571 = sshll.u32 [#allocation26], 4
          %s572 = int_to_ptr.vmem [resolvable:$true] %s571
          %574 = dma.hbm_to_vmem [thread:$0]  %s570, 32, %s572, [#allocation27]
        $region44: #{tpu_custom_call.1} parent=11 // pred_fallthru
          _
      $region12: #{tpu_custom_call.1} parent=5 // pred_fallthru
        _
      %p575 = scmp.lt.s32.totalorder %s44, 12
      // Predicated region
      $region45: #{tpu_custom_call.1} parent=5 // pred_check
        %p576 = pneg %p575
      $region46: #{tpu_custom_call.1} parent=5 // pred_check_branch
        %578 = sbr.rel (%p576) target = $region48
      $region47: #{tpu_custom_call.1} parent=5 // pred_region
        // Predicated region
        $region49: #{tpu_custom_call.1} parent=47 // pred_check
          %p579 = pneg %p76
        $region50: #{tpu_custom_call.1} parent=47 // pred_check_branch
          %581 = sbr.rel (%p579) target = $region52
        $region51: #{tpu_custom_call.1} parent=47 // pred_region
          %s582 = sand.u32 %s66, 1
          %s583 = scalar_lea.sflag [#allocation3], %s582
          %s584 = sand.u32 %s66, 1
          %s585 = smul.addr %s584, 16
          %s586 = scalar_lea.vmem [#allocation2], %s585
          %588 = vsyncadd %s583, 0
          %s589 = smul.addr %s52, 2
          %s590 = smul.addr %s589, 8
          %s591 = scalar_lea.hbm %s0, %s590
          %s593 = sshll.u32 %s591, 4
          %s594 = int_to_ptr.hbm [resolvable:$true] %s593
          %s595 = sshll.u32 %s586, 4
          %s596 = int_to_ptr.vmem [resolvable:$true] %s595
          %598 = dma.hbm_to_vmem [thread:$0]  %s594, 256, %s596, %s583
        $region52: #{tpu_custom_call.1} parent=47 // pred_fallthru
          _
        // Predicated region
        $region53: #{tpu_custom_call.1} parent=47 // pred_check
          %p599 = pneg %p102
        $region54: #{tpu_custom_call.1} parent=47 // pred_check_branch
          %601 = sbr.rel (%p599) target = $region56
        $region55: #{tpu_custom_call.1} parent=47 // pred_region
          %s602 = sand.u32 %s44, 1
          %s603 = scalar_lea.sflag [#allocation6], %s602
          %s604 = sand.u32 %s92, 1
          %s605 = smul.addr %s604, 32
          %s606 = scalar_lea.vmem [#allocation5], %s605
          %608 = vsyncadd %s603, 0
          %s609 = smul.addr %s52, 4
          %s610 = smul.addr %s609, 8
          %s611 = scalar_lea.hbm %s1, %s610
          %s612 = sshll.u32 %s611, 4
          %s613 = int_to_ptr.hbm [resolvable:$true] %s612
          %s614 = sshll.u32 %s606, 4
          %s615 = int_to_ptr.vmem [resolvable:$true] %s614
          %620 = dma.hbm_to_vmem [thread:$0]  %s613, 512, %s615, %s603, 256, 256, 16
        $region56: #{tpu_custom_call.1} parent=47 // pred_fallthru
          _
        // Predicated region
        $region57: #{tpu_custom_call.1} parent=47 // pred_check
          %p621 = pneg %p128
        $region58: #{tpu_custom_call.1} parent=47 // pred_check_branch
          %623 = sbr.rel (%p621) target = $region60
        $region59: #{tpu_custom_call.1} parent=47 // pred_region
          %s624 = sand.u32 %s44, 1
          %s625 = scalar_lea.sflag [#allocation6], %s624
          %s626 = sand.u32 %s118, 1
          %s627 = smul.addr %s626, 32
          %s628 = scalar_lea.vmem [#allocation7], %s627
          %630 = vsyncadd %s625, 0
          %s631 = smul.addr %s52, 4
          %s632 = smul.addr %s631, 8
          %s633 = scalar_lea.hbm %s2, %s632
          %s634 = sshll.u32 %s633, 4
          %s635 = int_to_ptr.hbm [resolvable:$true] %s634
          %s636 = sshll.u32 %s628, 4
          %s637 = int_to_ptr.vmem [resolvable:$true] %s636
          %642 = dma.hbm_to_vmem [thread:$0]  %s635, 512, %s637, %s625, 256, 256, 16
        $region60: #{tpu_custom_call.1} parent=47 // pred_fallthru
          _
        // Predicated region
        $region61: #{tpu_custom_call.1} parent=47 // pred_check
          %p643 = pneg %p154
        $region62: #{tpu_custom_call.1} parent=47 // pred_check_branch
          %645 = sbr.rel (%p643) target = $region64
        $region63: #{tpu_custom_call.1} parent=47 // pred_region
          %s646 = sand.u32 %s44, 1
          %s647 = scalar_lea.sflag [#allocation9], %s646
          %s648 = sand.u32 %s144, 1
          %s649 = scalar_lea.vmem [#allocation8], %s648
          %651 = vsyncadd %s647, 0
          %s652 = scalar_lea.hbm %s3, %s52
          %s654 = sshll.u32 %s652, 4
          %s655 = int_to_ptr.hbm [resolvable:$true] %s654
          %s656 = sshll.u32 %s649, 4
          %s657 = int_to_ptr.vmem [resolvable:$true] %s656
          %659 = dma.hbm_to_vmem [thread:$0]  %s655, 16, %s657, %s647
        $region64: #{tpu_custom_call.1} parent=47 // pred_fallthru
          _
        // Predicated region
        $region65: #{tpu_custom_call.1} parent=47 // pred_check
          %p660 = pneg %p180
        $region66: #{tpu_custom_call.1} parent=47 // pred_check_branch
          %662 = sbr.rel (%p660) target = $region68
        $region67: #{tpu_custom_call.1} parent=47 // pred_region
          %s663 = sand.u32 %s44, 1
          %s664 = scalar_lea.sflag [#allocation9], %s663
          %s665 = sand.u32 %s170, 1
          %s666 = smul.addr %s665, 1536
          %s667 = scalar_lea.vmem [#allocation10], %s666
          %669 = vsyncadd %s664, 0
          %s670 = smul.addr %s51, 192
          %s671 = smul.addr %s670, 8
          %s672 = scalar_lea.hbm %s4, %s671
          %s673 = sshll.u32 %s672, 4
          %s674 = int_to_ptr.hbm [resolvable:$true] %s673
          %s675 = sshll.u32 %s667, 4
          %s676 = int_to_ptr.vmem [resolvable:$true] %s675
          %681 = dma.hbm_to_vmem [thread:$0]  %s674, 24576, %s676, %s664, 768, 768, 48
        $region68: #{tpu_custom_call.1} parent=47 // pred_fallthru
          _
        // Predicated region
        $region69: #{tpu_custom_call.1} parent=47 // pred_check
          %p682 = pneg %p206
        $region70: #{tpu_custom_call.1} parent=47 // pred_check_branch
          %684 = sbr.rel (%p682) target = $region72
        $region71: #{tpu_custom_call.1} parent=47 // pred_region
          %s685 = sand.u32 %s44, 1
          %s686 = scalar_lea.sflag [#allocation12], %s685
          %s687 = sand.u32 %s196, 1
          %s688 = smul.addr %s687, 6
          %s689 = scalar_lea.vmem [#allocation11], %s688
          %691 = vsyncadd %s686, 0
          %s692 = smul.addr %s51, 6
          %s693 = scalar_lea.hbm %s5, %s692
          %s695 = sshll.u32 %s693, 4
          %s696 = int_to_ptr.hbm [resolvable:$true] %s695
          %s697 = sshll.u32 %s689, 4
          %s698 = int_to_ptr.vmem [resolvable:$true] %s697
          %700 = dma.hbm_to_vmem [thread:$0]  %s696, 96, %s698, %s686
        $region72: #{tpu_custom_call.1} parent=47 // pred_fallthru
          _
        // Predicated region
        $region73: #{tpu_custom_call.1} parent=47 // pred_check
          %p701 = pneg %p232
        $region74: #{tpu_custom_call.1} parent=47 // pred_check_branch
          %703 = sbr.rel (%p701) target = $region76
        $region75: #{tpu_custom_call.1} parent=47 // pred_region
          %s704 = sand.u32 %s44, 1
          %s705 = scalar_lea.sflag [#allocation12], %s704
          %s706 = sand.u32 %s222, 1
          %s707 = smul.addr %s706, 512
          %s708 = scalar_lea.vmem [#allocation13], %s707
          %710 = vsyncadd %s705, 0
          %s711 = smul.addr %s51, 64
          %s712 = smul.addr %s711, 8
          %s713 = scalar_lea.hbm %s6, %s712
          %s714 = sshll.u32 %s713, 4
          %s715 = int_to_ptr.hbm [resolvable:$true] %s714
          %s716 = sshll.u32 %s708, 4
          %s717 = int_to_ptr.vmem [resolvable:$true] %s716
          %722 = dma.hbm_to_vmem [thread:$0]  %s715, 8192, %s717, %s705, 256, 256, 16
        $region76: #{tpu_custom_call.1} parent=47 // pred_fallthru
          _
        // Predicated region
        $region77: #{tpu_custom_call.1} parent=47 // pred_check
          %p723 = pneg %p258
        $region78: #{tpu_custom_call.1} parent=47 // pred_check_branch
          %725 = sbr.rel (%p723) target = $region80
        $region79: #{tpu_custom_call.1} parent=47 // pred_region
          %s726 = sand.u32 %s44, 1
          %s727 = scalar_lea.sflag [#allocation15], %s726
          %s728 = sand.u32 %s248, 1
          %s729 = smul.addr %s728, 2
          %s730 = scalar_lea.vmem [#allocation14], %s729
          %732 = vsyncadd %s727, 0
          %s733 = smul.addr %s51, 2
          %s734 = scalar_lea.hbm %s7, %s733
          %s736 = sshll.u32 %s734, 4
          %s737 = int_to_ptr.hbm [resolvable:$true] %s736
          %s738 = sshll.u32 %s730, 4
          %s739 = int_to_ptr.vmem [resolvable:$true] %s738
          %741 = dma.hbm_to_vmem [thread:$0]  %s737, 32, %s739, %s727
        $region80: #{tpu_custom_call.1} parent=47 // pred_fallthru
          _
      $region48: #{tpu_custom_call.1} parent=5 // pred_fallthru
        _
      %p742 = scmp.le.s32.totalorder 1, %s44
      %p743 = scmp.lt.s32.totalorder %s44, 13
      %p744 = pnand %p742, %p743
      %p745 = pneg %p744
      // Predicated region
      $region81: #{tpu_custom_call.1} parent=5 // pred_check
        _
      $region82: #{tpu_custom_call.1} parent=5 // pred_check_branch
        %747 = sbr.rel (%p744) target = $region84
      $region83: #{tpu_custom_call.1} parent=5 // pred_region
        %s748 = ssub.s32 %s44, 1
        %s749 = sand.u32 %s69, 1
        %s750 = scalar_lea.sflag [#allocation3], %s749
        %s751 = sand.u32 %s69, 1
        %s752 = smul.addr %s751, 16
        %s753 = scalar_lea.vmem [#allocation2], %s752
        // Predicated region
        $region85: #{tpu_custom_call.1} parent=83 // pred_check
          %p754 = pneg %p82
        $region86: #{tpu_custom_call.1} parent=83 // pred_check_branch
          %756 = sbr.rel (%p754) target = $region88
        $region87: #{tpu_custom_call.1} parent=83 // pred_region
          %758 = dma.done %s750, 256
        $region88: #{tpu_custom_call.1} parent=83 // pred_fallthru
          _
        %s759 = sand.u32 %s49, 1
        %s760 = scalar_lea.sflag [#allocation6], %s759
        %s761 = sand.u32 %s95, 1
        %s762 = smul.addr %s761, 32
        %s763 = scalar_lea.vmem [#allocation5], %s762
        // Predicated region
        $region89: #{tpu_custom_call.1} parent=83 // pred_check
          %p764 = pneg %p108
        $region90: #{tpu_custom_call.1} parent=83 // pred_check_branch
          %766 = sbr.rel (%p764) target = $region92
        $region91: #{tpu_custom_call.1} parent=83 // pred_region
          %768 = dma.done %s760, 512
        $region92: #{tpu_custom_call.1} parent=83 // pred_fallthru
          _
        %s769 = sand.u32 %s49, 1
        %s770 = scalar_lea.sflag [#allocation6], %s769
        %s771 = sand.u32 %s121, 1
        %s772 = smul.addr %s771, 32
        %s773 = scalar_lea.vmem [#allocation7], %s772
        // Predicated region
        $region93: #{tpu_custom_call.1} parent=83 // pred_check
          %p774 = pneg %p134
        $region94: #{tpu_custom_call.1} parent=83 // pred_check_branch
          %776 = sbr.rel (%p774) target = $region96
        $region95: #{tpu_custom_call.1} parent=83 // pred_region
          %778 = dma.done %s770, 512
        $region96: #{tpu_custom_call.1} parent=83 // pred_fallthru
          _
        %s779 = sand.u32 %s49, 1
        %s780 = scalar_lea.sflag [#allocation9], %s779
        %s781 = sand.u32 %s147, 1
        %s782 = scalar_lea.vmem [#allocation8], %s781
        // Predicated region
        $region97: #{tpu_custom_call.1} parent=83 // pred_check
          %p783 = pneg %p160
        $region98: #{tpu_custom_call.1} parent=83 // pred_check_branch
          %785 = sbr.rel (%p783) target = $region100
        $region99: #{tpu_custom_call.1} parent=83 // pred_region
          %787 = dma.done %s780, 16
        $region100: #{tpu_custom_call.1} parent=83 // pred_fallthru
          _
        %s788 = sand.u32 %s49, 1
        %s789 = scalar_lea.sflag [#allocation9], %s788
        %s790 = sand.u32 %s173, 1
        %s791 = smul.addr %s790, 1536
        %s792 = scalar_lea.vmem [#allocation10], %s791
        // Predicated region
        $region101: #{tpu_custom_call.1} parent=83 // pred_check
          %p793 = pneg %p186
        $region102: #{tpu_custom_call.1} parent=83 // pred_check_branch
          %795 = sbr.rel (%p793) target = $region104
        $region103: #{tpu_custom_call.1} parent=83 // pred_region
          %797 = dma.done %s789, 24576
        $region104: #{tpu_custom_call.1} parent=83 // pred_fallthru
          _
        %s798 = sand.u32 %s49, 1
        %s799 = scalar_lea.sflag [#allocation12], %s798
        %s800 = sand.u32 %s199, 1
        %s801 = smul.addr %s800, 6
        %s802 = scalar_lea.vmem [#allocation11], %s801
        // Predicated region
        $region105: #{tpu_custom_call.1} parent=83 // pred_check
          %p803 = pneg %p212
        $region106: #{tpu_custom_call.1} parent=83 // pred_check_branch
          %805 = sbr.rel (%p803) target = $region108
        $region107: #{tpu_custom_call.1} parent=83 // pred_region
          %807 = dma.done %s799, 96
        $region108: #{tpu_custom_call.1} parent=83 // pred_fallthru
          _
        %s808 = sand.u32 %s49, 1
        %s809 = scalar_lea.sflag [#allocation12], %s808
        %s810 = sand.u32 %s225, 1
        %s811 = smul.addr %s810, 512
        %s812 = scalar_lea.vmem [#allocation13], %s811
        // Predicated region
        $region109: #{tpu_custom_call.1} parent=83 // pred_check
          %p813 = pneg %p238
        $region110: #{tpu_custom_call.1} parent=83 // pred_check_branch
          %815 = sbr.rel (%p813) target = $region112
        $region111: #{tpu_custom_call.1} parent=83 // pred_region
          %817 = dma.done %s809, 8192
        $region112: #{tpu_custom_call.1} parent=83 // pred_fallthru
          _
        %s818 = sand.u32 %s49, 1
        %s819 = scalar_lea.sflag [#allocation15], %s818
        %s820 = sand.u32 %s251, 1
        %s821 = smul.addr %s820, 2
        %s822 = scalar_lea.vmem [#allocation14], %s821
        // Predicated region
        $region113: #{tpu_custom_call.1} parent=83 // pred_check
          %p823 = pneg %p264
        $region114: #{tpu_custom_call.1} parent=83 // pred_check_branch
          %825 = sbr.rel (%p823) target = $region116
        $region115: #{tpu_custom_call.1} parent=83 // pred_region
          %827 = dma.done %s819, 32
        $region116: #{tpu_custom_call.1} parent=83 // pred_fallthru
          _
        // Predicated region
        $region117: #{tpu_custom_call.1} parent=83 // pred_check
          %p828 = pneg %p285
        $region118: #{tpu_custom_call.1} parent=83 // pred_check_branch
          %830 = sbr.rel (%p828) target = $region120
        $region119: #{tpu_custom_call.1} parent=83 // pred_region
          %832 = dma.done [#allocation15], 32
        $region120: #{tpu_custom_call.1} parent=83 // pred_fallthru
          _
        // Predicated region
        $region121: #{tpu_custom_call.1} parent=83 // pred_check
          %p833 = pneg %p306
        $region122: #{tpu_custom_call.1} parent=83 // pred_check_branch
          %835 = sbr.rel (%p833) target = $region124
        $region123: #{tpu_custom_call.1} parent=83 // pred_region
          %837 = dma.done [#allocation18], 32
        $region124: #{tpu_custom_call.1} parent=83 // pred_fallthru
          _
        // Predicated region
        $region125: #{tpu_custom_call.1} parent=83 // pred_check
          %p838 = pneg %p327
        $region126: #{tpu_custom_call.1} parent=83 // pred_check_branch
          %840 = sbr.rel (%p838) target = $region128
        $region127: #{tpu_custom_call.1} parent=83 // pred_region
          %842 = dma.done [#allocation18], 16384
        $region128: #{tpu_custom_call.1} parent=83 // pred_fallthru
          _
        // Predicated region
        $region129: #{tpu_custom_call.1} parent=83 // pred_check
          %p843 = pneg %p348
        $region130: #{tpu_custom_call.1} parent=83 // pred_check_branch
          %845 = sbr.rel (%p843) target = $region132
        $region131: #{tpu_custom_call.1} parent=83 // pred_region
          %847 = dma.done [#allocation21], 64
        $region132: #{tpu_custom_call.1} parent=83 // pred_fallthru
          _
        // Predicated region
        $region133: #{tpu_custom_call.1} parent=83 // pred_check
          %p848 = pneg %p369
        $region134: #{tpu_custom_call.1} parent=83 // pred_check_branch
          %850 = sbr.rel (%p848) target = $region136
        $region135: #{tpu_custom_call.1} parent=83 // pred_region
          %852 = dma.done [#allocation21], 16384
        $region136: #{tpu_custom_call.1} parent=83 // pred_fallthru
          _
        // Predicated region
        $region137: #{tpu_custom_call.1} parent=83 // pred_check
          %p853 = pneg %p390
        $region138: #{tpu_custom_call.1} parent=83 // pred_check_branch
          %855 = sbr.rel (%p853) target = $region140
        $region139: #{tpu_custom_call.1} parent=83 // pred_region
          %857 = dma.done [#allocation24], 32
        $region140: #{tpu_custom_call.1} parent=83 // pred_fallthru
          _
        // Predicated region
        $region141: #{tpu_custom_call.1} parent=83 // pred_check
          %p858 = pneg %p411
        $region142: #{tpu_custom_call.1} parent=83 // pred_check_branch
          %860 = sbr.rel (%p858) target = $region144
        $region143: #{tpu_custom_call.1} parent=83 // pred_region
          %862 = dma.done [#allocation24], 32
        $region144: #{tpu_custom_call.1} parent=83 // pred_fallthru
          _
        // Predicated region
        $region145: #{tpu_custom_call.1} parent=83 // pred_check
          %p863 = pneg %p432
        $region146: #{tpu_custom_call.1} parent=83 // pred_check_branch
          %865 = sbr.rel (%p863) target = $region148
        $region147: #{tpu_custom_call.1} parent=83 // pred_region
          %867 = dma.done [#allocation27], 32
        $region148: #{tpu_custom_call.1} parent=83 // pred_fallthru
          _
        %s868 = sand.u32 %s69, 1
        %s869 = scalar_lea.sflag [#allocation3], %s868
        %s870 = sand.u32 %s69, 1
        %s871 = smul.addr %s870, 16
        %s872 = scalar_lea.vmem [#allocation2], %s871
        %p873 = pneg %p82
        %p874 = pneg %p79
        %s875 = sand.u32 %s49, 1
        %s876 = scalar_lea.sflag [#allocation6], %s875
        %s877 = sand.u32 %s95, 1
        %s878 = smul.addr %s877, 32
        %s879 = scalar_lea.vmem [#allocation5], %s878
        %p880 = pneg %p108
        %p881 = pneg %p105
        %s882 = sand.u32 %s49, 1
        %s883 = scalar_lea.sflag [#allocation6], %s882
        %s884 = sand.u32 %s121, 1
        %s885 = smul.addr %s884, 32
        %s886 = scalar_lea.vmem [#allocation7], %s885
        %p887 = pneg %p134
        %p888 = pneg %p131
        %s889 = sand.u32 %s49, 1
        %s890 = scalar_lea.sflag [#allocation9], %s889
        %s891 = sand.u32 %s147, 1
        %s892 = scalar_lea.vmem [#allocation8], %s891
        %p893 = pneg %p160
        %p894 = pneg %p157
        %s895 = sand.u32 %s49, 1
        %s896 = scalar_lea.sflag [#allocation9], %s895
        %s897 = sand.u32 %s173, 1
        %s898 = smul.addr %s897, 1536
        %s899 = scalar_lea.vmem [#allocation10], %s898
        %p900 = pneg %p186
        %p901 = pneg %p183
        %s902 = sand.u32 %s49, 1
        %s903 = scalar_lea.sflag [#allocation12], %s902
        %s904 = sand.u32 %s199, 1
        %s905 = smul.addr %s904, 6
        %s906 = scalar_lea.vmem [#allocation11], %s905
        %p907 = pneg %p212
        %p908 = pneg %p209
        %s909 = sand.u32 %s49, 1
        %s910 = scalar_lea.sflag [#allocation12], %s909
        %s911 = sand.u32 %s225, 1
        %s912 = smul.addr %s911, 512
        %s913 = scalar_lea.vmem [#allocation13], %s912
        %p914 = pneg %p238
        %p915 = pneg %p235
        %s916 = sand.u32 %s49, 1
        %s917 = scalar_lea.sflag [#allocation15], %s916
        %s918 = sand.u32 %s251, 1
        %s919 = smul.addr %s918, 2
        %s920 = scalar_lea.vmem [#allocation14], %s919
        %p921 = pneg %p264
        %p922 = pneg %p261
        %p923 = pneg %p285
        %p924 = pneg %p282
        %p925 = pneg %p306
        %p926 = pneg %p303
        %p927 = pneg %p327
        %p928 = pneg %p324
        %p929 = pneg %p348
        %p930 = pneg %p345
        %p931 = pneg %p369
        %p932 = pneg %p366
        %p933 = pneg %p390
        %p934 = pneg %p387
        %p935 = pneg %p411
        %p936 = pneg %p408
        %p937 = pneg %p432
        %p938 = pneg %p429
        %p939 = pneg %p460
        %p940 = pneg %p457
        %s941 = sand.u32 %s447, 1
        %s942 = scalar_lea.sflag [#allocation4], %s941
        %s943 = sand.u32 %s447, 1
        %s944 = smul.addr %s943, 16
        %s945 = scalar_lea.vmem [#allocation28], %s944
        %v946 = vld [vmem:[%s753] sm:$0xff]
        %v947 = vld [vmem:[%s753 + $0x8] sm:$0xff]
        %v948 = vld [vmem:[%s763] sm:$0xff]
        %v949 = vld [vmem:[%s763 + $0x8] sm:$0xff]
        %v950 = vld [vmem:[%s763 + $0x10] sm:$0xff]
        %v951 = vld [vmem:[%s763 + $0x18] sm:$0xff]
        %v952 = vld [vmem:[%s773] sm:$0xff]
        %v953 = vld [vmem:[%s773 + $0x8] sm:$0xff]
        %v954 = vld [vmem:[%s773 + $0x10] sm:$0xff]
        %v955 = vld [vmem:[%s773 + $0x18] sm:$0xff]
        %v956 = vld [vmem:[%s782] sm:$0x1]
        %v957 = vld [vmem:[%s792] sm:$0xff]
        %v958 = vld [vmem:[%s792 + $0x8] sm:$0xff]
        %v959 = vld [vmem:[%s792 + $0x30] sm:$0xff]
        %v960 = vld [vmem:[%s792 + $0x38] sm:$0xff]
        %v961 = vld [vmem:[%s792 + $0x60] sm:$0xff]
        %v962 = vld [vmem:[%s792 + $0x68] sm:$0xff]
        %v963 = vld [vmem:[%s792 + $0x90] sm:$0xff]
        %v964 = vld [vmem:[%s792 + $0x98] sm:$0xff]
        %v965 = vld [vmem:[%s792 + $0xc0] sm:$0xff]
        %v966 = vld [vmem:[%s792 + $0xc8] sm:$0xff]
        %v967 = vld [vmem:[%s792 + $0xf0] sm:$0xff]
        %v968 = vld [vmem:[%s792 + $0xf8] sm:$0xff]
        %v969 = vld [vmem:[%s792 + $0x120] sm:$0xff]
        %v970 = vld [vmem:[%s792 + $0x128] sm:$0xff]
        %v971 = vld [vmem:[%s792 + $0x150] sm:$0xff]
        %v972 = vld [vmem:[%s792 + $0x158] sm:$0xff]
        %v973 = vld [vmem:[%s792 + $0x180] sm:$0xff]
        %v974 = vld [vmem:[%s792 + $0x188] sm:$0xff]
        %v975 = vld [vmem:[%s792 + $0x1b0] sm:$0xff]
        %v976 = vld [vmem:[%s792 + $0x1b8] sm:$0xff]
        %v977 = vld [vmem:[%s792 + $0x1e0] sm:$0xff]
        %v978 = vld [vmem:[%s792 + $0x1e8] sm:$0xff]
        %v979 = vld [vmem:[%s792 + $0x210] sm:$0xff]
        %v980 = vld [vmem:[%s792 + $0x218] sm:$0xff]
        %v981 = vld [vmem:[%s792 + $0x240] sm:$0xff]
        %v982 = vld [vmem:[%s792 + $0x248] sm:$0xff]
        %v983 = vld [vmem:[%s792 + $0x270] sm:$0xff]
        %v984 = vld [vmem:[%s792 + $0x278] sm:$0xff]
        %v985 = vld [vmem:[%s792 + $0x2a0] sm:$0xff]
        %v986 = vld [vmem:[%s792 + $0x2a8] sm:$0xff]
        %v987 = vld [vmem:[%s792 + $0x2d0] sm:$0xff]
        %v988 = vld [vmem:[%s792 + $0x2d8] sm:$0xff]
        %v989 = vld [vmem:[%s792 + $0x300] sm:$0xff]
        %v990 = vld [vmem:[%s792 + $0x308] sm:$0xff]
        %v991 = vld [vmem:[%s792 + $0x330] sm:$0xff]
        %v992 = vld [vmem:[%s792 + $0x338] sm:$0xff]
        %v993 = vld [vmem:[%s792 + $0x360] sm:$0xff]
        %v994 = vld [vmem:[%s792 + $0x368] sm:$0xff]
        %v995 = vld [vmem:[%s792 + $0x390] sm:$0xff]
        %v996 = vld [vmem:[%s792 + $0x398] sm:$0xff]
        %v997 = vld [vmem:[%s792 + $0x3c0] sm:$0xff]
        %v998 = vld [vmem:[%s792 + $0x3c8] sm:$0xff]
        %v999 = vld [vmem:[%s792 + $0x3f0] sm:$0xff]
        %v1000 = vld [vmem:[%s792 + $0x3f8] sm:$0xff]
        %v1001 = vld [vmem:[%s792 + $0x420] sm:$0xff]
        %v1002 = vld [vmem:[%s792 + $0x428] sm:$0xff]
        %v1003 = vld [vmem:[%s792 + $0x450] sm:$0xff]
        %v1004 = vld [vmem:[%s792 + $0x458] sm:$0xff]
        %v1005 = vld [vmem:[%s792 + $0x480] sm:$0xff]
        %v1006 = vld [vmem:[%s792 + $0x488] sm:$0xff]
        %v1007 = vld [vmem:[%s792 + $0x4b0] sm:$0xff]
        %v1008 = vld [vmem:[%s792 + $0x4b8] sm:$0xff]
        %v1009 = vld [vmem:[%s792 + $0x4e0] sm:$0xff]
        %v1010 = vld [vmem:[%s792 + $0x4e8] sm:$0xff]
        %v1011 = vld [vmem:[%s792 + $0x510] sm:$0xff]
        %v1012 = vld [vmem:[%s792 + $0x518] sm:$0xff]
        %v1013 = vld [vmem:[%s792 + $0x540] sm:$0xff]
        %v1014 = vld [vmem:[%s792 + $0x548] sm:$0xff]
        %v1015 = vld [vmem:[%s792 + $0x570] sm:$0xff]
        %v1016 = vld [vmem:[%s792 + $0x578] sm:$0xff]
        %v1017 = vld [vmem:[%s792 + $0x5a0] sm:$0xff]
        %v1018 = vld [vmem:[%s792 + $0x5a8] sm:$0xff]
        %v1019 = vld [vmem:[%s792 + $0x5d0] sm:$0xff]
        %v1020 = vld [vmem:[%s792 + $0x5d8] sm:$0xff]
        %v1021 = vld [vmem:[%s802] sm:$0x3]
        %v1023 = vperm.slane %v1021, 0
        %v1024 = vperm.slane %v1021, 1
        %1027 = vmatpush.msra.mxu0 %v987
        %1028 = vmatpush.msra.mxu0 %v985
        %1029 = vmatpush.msra.mxu0 %v983
        %1030 = vmatpush.msra.mxu0 %v981
        %1031 = vmatpush.msra.mxu0 %v979
        %1032 = vmatpush.msra.mxu0 %v977
        %1033 = vmatpush.msra.mxu0 %v975
        %1034 = vmatpush.msra.mxu0 %v973
        %1035 = vmatpush.msra.mxu0 %v971
        %1036 = vmatpush.msra.mxu0 %v969
        %1037 = vmatpush.msra.mxu0 %v967
        %1038 = vmatpush.msra.mxu0 %v965
        %1039 = vmatpush.msra.mxu0 %v963
        %1040 = vmatpush.msra.mxu0 %v961
        %1041 = vmatpush.msra.mxu0 %v959
        %1042 = vmatpush.msra.mxu0 %v957
        %1043 = vmatmul.f32.gmra.mxu0 %v946
        %v1044 = vpop.f32.mrf.mxu0
        %v1045 = vadd.f32 %v1023, %v1044
        %1046 = vdwg.mxu0
        %1047 = vmatpush.msra.mxu0 %v1019
        %1048 = vmatpush.msra.mxu0 %v1017
        %1049 = vmatpush.msra.mxu0 %v1015
        %1050 = vmatpush.msra.mxu0 %v1013
        %1051 = vmatpush.msra.mxu0 %v1011
        %1052 = vmatpush.msra.mxu0 %v1009
        %1053 = vmatpush.msra.mxu0 %v1007
        %1054 = vmatpush.msra.mxu0 %v1005
        %1055 = vmatpush.msra.mxu0 %v1003
        %1056 = vmatpush.msra.mxu0 %v1001
        %1057 = vmatpush.msra.mxu0 %v999
        %1058 = vmatpush.msra.mxu0 %v997
        %1059 = vmatpush.msra.mxu0 %v995
        %1060 = vmatpush.msra.mxu0 %v993
        %1061 = vmatpush.msra.mxu0 %v991
        %1062 = vmatpush.msra.mxu0 %v989
        %1063 = vmatmul.f32.gmra.mxu0 %v947
        %v1064 = vpop.f32.mrf.mxu0
        %v1065 = vadd.f32 %v1045, %v1064
        %1066 = vdwg.mxu0
        %1067 = vmatpush.msra.mxu0 %v988
        %1068 = vmatpush.msra.mxu0 %v986
        %1069 = vmatpush.msra.mxu0 %v984
        %1070 = vmatpush.msra.mxu0 %v982
        %1071 = vmatpush.msra.mxu0 %v980
        %1072 = vmatpush.msra.mxu0 %v978
        %1073 = vmatpush.msra.mxu0 %v976
        %1074 = vmatpush.msra.mxu0 %v974
        %1075 = vmatpush.msra.mxu0 %v972
        %1076 = vmatpush.msra.mxu0 %v970
        %1077 = vmatpush.msra.mxu0 %v968
        %1078 = vmatpush.msra.mxu0 %v966
        %1079 = vmatpush.msra.mxu0 %v964
        %1080 = vmatpush.msra.mxu0 %v962
        %1081 = vmatpush.msra.mxu0 %v960
        %1082 = vmatpush.msra.mxu0 %v958
        %1083 = vmatmul.f32.gmra.mxu0 %v946
        %v1084 = vpop.f32.mrf.mxu0
        %v1085 = vadd.f32 %v1024, %v1084
        %1086 = vdwg.mxu0
        %1087 = vmatpush.msra.mxu0 %v1020
        %1088 = vmatpush.msra.mxu0 %v1018
        %1089 = vmatpush.msra.mxu0 %v1016
        %1090 = vmatpush.msra.mxu0 %v1014
        %1091 = vmatpush.msra.mxu0 %v1012
        %1092 = vmatpush.msra.mxu0 %v1010
        %1093 = vmatpush.msra.mxu0 %v1008
        %1094 = vmatpush.msra.mxu0 %v1006
        %1095 = vmatpush.msra.mxu0 %v1004
        %1096 = vmatpush.msra.mxu0 %v1002
        %1097 = vmatpush.msra.mxu0 %v1000
        %1098 = vmatpush.msra.mxu0 %v998
        %1099 = vmatpush.msra.mxu0 %v996
        %1100 = vmatpush.msra.mxu0 %v994
        %1101 = vmatpush.msra.mxu0 %v992
        %1102 = vmatpush.msra.mxu0 %v990
        %1103 = vmatmul.f32.gmra.mxu0 %v947
        %v1104 = vpop.f32.mrf.mxu0
        %v1105 = vadd.f32 %v1085, %v1104
        %1106 = vdwg.mxu0
        %v1107 = vld [vmem:[%s792 + $0x10] sm:$0xff]
        %v1108 = vld [vmem:[%s792 + $0x18] sm:$0xff]
        %v1109 = vld [vmem:[%s792 + $0x40] sm:$0xff]
        %v1110 = vld [vmem:[%s792 + $0x48] sm:$0xff]
        %v1111 = vld [vmem:[%s792 + $0x70] sm:$0xff]
        %v1112 = vld [vmem:[%s792 + $0x78] sm:$0xff]
        %v1113 = vld [vmem:[%s792 + $0xa0] sm:$0xff]
        %v1114 = vld [vmem:[%s792 + $0xa8] sm:$0xff]
        %v1115 = vld [vmem:[%s792 + $0xd0] sm:$0xff]
        %v1116 = vld [vmem:[%s792 + $0xd8] sm:$0xff]
        %v1117 = vld [vmem:[%s792 + $0x100] sm:$0xff]
        %v1118 = vld [vmem:[%s792 + $0x108] sm:$0xff]
        %v1119 = vld [vmem:[%s792 + $0x130] sm:$0xff]
        %v1120 = vld [vmem:[%s792 + $0x138] sm:$0xff]
        %v1121 = vld [vmem:[%s792 + $0x160] sm:$0xff]
        %v1122 = vld [vmem:[%s792 + $0x168] sm:$0xff]
        %v1123 = vld [vmem:[%s792 + $0x190] sm:$0xff]
        %v1124 = vld [vmem:[%s792 + $0x198] sm:$0xff]
        %v1125 = vld [vmem:[%s792 + $0x1c0] sm:$0xff]
        %v1126 = vld [vmem:[%s792 + $0x1c8] sm:$0xff]
        %v1127 = vld [vmem:[%s792 + $0x1f0] sm:$0xff]
        %v1128 = vld [vmem:[%s792 + $0x1f8] sm:$0xff]
        %v1129 = vld [vmem:[%s792 + $0x220] sm:$0xff]
        %v1130 = vld [vmem:[%s792 + $0x228] sm:$0xff]
        %v1131 = vld [vmem:[%s792 + $0x250] sm:$0xff]
        %v1132 = vld [vmem:[%s792 + $0x258] sm:$0xff]
        %v1133 = vld [vmem:[%s792 + $0x280] sm:$0xff]
        %v1134 = vld [vmem:[%s792 + $0x288] sm:$0xff]
        %v1135 = vld [vmem:[%s792 + $0x2b0] sm:$0xff]
        %v1136 = vld [vmem:[%s792 + $0x2b8] sm:$0xff]
        %v1137 = vld [vmem:[%s792 + $0x2e0] sm:$0xff]
        %v1138 = vld [vmem:[%s792 + $0x2e8] sm:$0xff]
        %v1139 = vld [vmem:[%s792 + $0x310] sm:$0xff]
        %v1140 = vld [vmem:[%s792 + $0x318] sm:$0xff]
        %v1141 = vld [vmem:[%s792 + $0x340] sm:$0xff]
        %v1142 = vld [vmem:[%s792 + $0x348] sm:$0xff]
        %v1143 = vld [vmem:[%s792 + $0x370] sm:$0xff]
        %v1144 = vld [vmem:[%s792 + $0x378] sm:$0xff]
        %v1145 = vld [vmem:[%s792 + $0x3a0] sm:$0xff]
        %v1146 = vld [vmem:[%s792 + $0x3a8] sm:$0xff]
        %v1147 = vld [vmem:[%s792 + $0x3d0] sm:$0xff]
        %v1148 = vld [vmem:[%s792 + $0x3d8] sm:$0xff]
        %v1149 = vld [vmem:[%s792 + $0x400] sm:$0xff]
        %v1150 = vld [vmem:[%s792 + $0x408] sm:$0xff]
        %v1151 = vld [vmem:[%s792 + $0x430] sm:$0xff]
        %v1152 = vld [vmem:[%s792 + $0x438] sm:$0xff]
        %v1153 = vld [vmem:[%s792 + $0x460] sm:$0xff]
        %v1154 = vld [vmem:[%s792 + $0x468] sm:$0xff]
        %v1155 = vld [vmem:[%s792 + $0x490] sm:$0xff]
        %v1156 = vld [vmem:[%s792 + $0x498] sm:$0xff]
        %v1157 = vld [vmem:[%s792 + $0x4c0] sm:$0xff]
        %v1158 = vld [vmem:[%s792 + $0x4c8] sm:$0xff]
        %v1159 = vld [vmem:[%s792 + $0x4f0] sm:$0xff]
        %v1160 = vld [vmem:[%s792 + $0x4f8] sm:$0xff]
        %v1161 = vld [vmem:[%s792 + $0x520] sm:$0xff]
        %v1162 = vld [vmem:[%s792 + $0x528] sm:$0xff]
        %v1163 = vld [vmem:[%s792 + $0x550] sm:$0xff]
        %v1164 = vld [vmem:[%s792 + $0x558] sm:$0xff]
        %v1165 = vld [vmem:[%s792 + $0x580] sm:$0xff]
        %v1166 = vld [vmem:[%s792 + $0x588] sm:$0xff]
        %v1167 = vld [vmem:[%s792 + $0x5b0] sm:$0xff]
        %v1168 = vld [vmem:[%s792 + $0x5b8] sm:$0xff]
        %v1169 = vld [vmem:[%s792 + $0x5e0] sm:$0xff]
        %v1170 = vld [vmem:[%s792 + $0x5e8] sm:$0xff]
        %v1171 = vld [vmem:[%s802 + $0x2] sm:$0x3]
        %v1173 = vperm.slane %v1171, 0
        %v1174 = vperm.slane %v1171, 1
        %1177 = vmatpush.msra.mxu0 %v1137
        %1178 = vmatpush.msra.mxu0 %v1135
        %1179 = vmatpush.msra.mxu0 %v1133
        %1180 = vmatpush.msra.mxu0 %v1131
        %1181 = vmatpush.msra.mxu0 %v1129
        %1182 = vmatpush.msra.mxu0 %v1127
        %1183 = vmatpush.msra.mxu0 %v1125
        %1184 = vmatpush.msra.mxu0 %v1123
        %1185 = vmatpush.msra.mxu0 %v1121
        %1186 = vmatpush.msra.mxu0 %v1119
        %1187 = vmatpush.msra.mxu0 %v1117
        %1188 = vmatpush.msra.mxu0 %v1115
        %1189 = vmatpush.msra.mxu0 %v1113
        %1190 = vmatpush.msra.mxu0 %v1111
        %1191 = vmatpush.msra.mxu0 %v1109
        %1192 = vmatpush.msra.mxu0 %v1107
        %1193 = vmatmul.f32.gmra.mxu0 %v948
        %v1194 = vpop.f32.mrf.mxu0
        %v1195 = vadd.f32 %v1173, %v1194
        %1196 = vmatmul.f32.gmra.mxu0 %v950
        %v1197 = vpop.f32.mrf.mxu0
        %v1198 = vadd.f32 %v1173, %v1197
        %1199 = vdwg.mxu0
        %1200 = vmatpush.msra.mxu0 %v1169
        %1201 = vmatpush.msra.mxu0 %v1167
        %1202 = vmatpush.msra.mxu0 %v1165
        %1203 = vmatpush.msra.mxu0 %v1163
        %1204 = vmatpush.msra.mxu0 %v1161
        %1205 = vmatpush.msra.mxu0 %v1159
        %1206 = vmatpush.msra.mxu0 %v1157
        %1207 = vmatpush.msra.mxu0 %v1155
        %1208 = vmatpush.msra.mxu0 %v1153
        %1209 = vmatpush.msra.mxu0 %v1151
        %1210 = vmatpush.msra.mxu0 %v1149
        %1211 = vmatpush.msra.mxu0 %v1147
        %1212 = vmatpush.msra.mxu0 %v1145
        %1213 = vmatpush.msra.mxu0 %v1143
        %1214 = vmatpush.msra.mxu0 %v1141
        %1215 = vmatpush.msra.mxu0 %v1139
        %1216 = vmatmul.f32.gmra.mxu0 %v949
        %v1217 = vpop.f32.mrf.mxu0
        %v1218 = vadd.f32 %v1195, %v1217
        %1219 = vmatmul.f32.gmra.mxu0 %v951
        %v1220 = vpop.f32.mrf.mxu0
        %v1221 = vadd.f32 %v1198, %v1220
        %1222 = vdwg.mxu0
        %1223 = vmatpush.msra.mxu0 %v1138
        %1224 = vmatpush.msra.mxu0 %v1136
        %1225 = vmatpush.msra.mxu0 %v1134
        %1226 = vmatpush.msra.mxu0 %v1132
        %1227 = vmatpush.msra.mxu0 %v1130
        %1228 = vmatpush.msra.mxu0 %v1128
        %1229 = vmatpush.msra.mxu0 %v1126
        %1230 = vmatpush.msra.mxu0 %v1124
        %1231 = vmatpush.msra.mxu0 %v1122
        %1232 = vmatpush.msra.mxu0 %v1120
        %1233 = vmatpush.msra.mxu0 %v1118
        %1234 = vmatpush.msra.mxu0 %v1116
        %1235 = vmatpush.msra.mxu0 %v1114
        %1236 = vmatpush.msra.mxu0 %v1112
        %1237 = vmatpush.msra.mxu0 %v1110
        %1238 = vmatpush.msra.mxu0 %v1108
        %1239 = vmatmul.f32.gmra.mxu0 %v948
        %v1240 = vpop.f32.mrf.mxu0
        %v1241 = vadd.f32 %v1174, %v1240
        %1242 = vmatmul.f32.gmra.mxu0 %v950
        %v1243 = vpop.f32.mrf.mxu0
        %v1244 = vadd.f32 %v1174, %v1243
        %1245 = vdwg.mxu0
        %1246 = vmatpush.msra.mxu0 %v1170
        %1247 = vmatpush.msra.mxu0 %v1168
        %1248 = vmatpush.msra.mxu0 %v1166
        %1249 = vmatpush.msra.mxu0 %v1164
        %1250 = vmatpush.msra.mxu0 %v1162
        %1251 = vmatpush.msra.mxu0 %v1160
        %1252 = vmatpush.msra.mxu0 %v1158
        %1253 = vmatpush.msra.mxu0 %v1156
        %1254 = vmatpush.msra.mxu0 %v1154
        %1255 = vmatpush.msra.mxu0 %v1152
        %1256 = vmatpush.msra.mxu0 %v1150
        %1257 = vmatpush.msra.mxu0 %v1148
        %1258 = vmatpush.msra.mxu0 %v1146
        %1259 = vmatpush.msra.mxu0 %v1144
        %1260 = vmatpush.msra.mxu0 %v1142
        %1261 = vmatpush.msra.mxu0 %v1140
        %1262 = vmatmul.f32.gmra.mxu0 %v949
        %v1263 = vpop.f32.mrf.mxu0
        %v1264 = vadd.f32 %v1241, %v1263
        %1265 = vmatmul.f32.gmra.mxu0 %v951
        %v1266 = vpop.f32.mrf.mxu0
        %v1267 = vadd.f32 %v1244, %v1266
        %1268 = vdwg.mxu0
        %v1269 = vld [vmem:[%s792 + $0x20] sm:$0xff]
        %v1270 = vld [vmem:[%s792 + $0x28] sm:$0xff]
        %v1271 = vld [vmem:[%s792 + $0x50] sm:$0xff]
        %v1272 = vld [vmem:[%s792 + $0x58] sm:$0xff]
        %v1273 = vld [vmem:[%s792 + $0x80] sm:$0xff]
        %v1274 = vld [vmem:[%s792 + $0x88] sm:$0xff]
        %v1275 = vld [vmem:[%s792 + $0xb0] sm:$0xff]
        %v1276 = vld [vmem:[%s792 + $0xb8] sm:$0xff]
        %v1277 = vld [vmem:[%s792 + $0xe0] sm:$0xff]
        %v1278 = vld [vmem:[%s792 + $0xe8] sm:$0xff]
        %v1279 = vld [vmem:[%s792 + $0x110] sm:$0xff]
        %v1280 = vld [vmem:[%s792 + $0x118] sm:$0xff]
        %v1281 = vld [vmem:[%s792 + $0x140] sm:$0xff]
        %v1282 = vld [vmem:[%s792 + $0x148] sm:$0xff]
        %v1283 = vld [vmem:[%s792 + $0x170] sm:$0xff]
        %v1284 = vld [vmem:[%s792 + $0x178] sm:$0xff]
        %v1285 = vld [vmem:[%s792 + $0x1a0] sm:$0xff]
        %v1286 = vld [vmem:[%s792 + $0x1a8] sm:$0xff]
        %v1287 = vld [vmem:[%s792 + $0x1d0] sm:$0xff]
        %v1288 = vld [vmem:[%s792 + $0x1d8] sm:$0xff]
        %v1289 = vld [vmem:[%s792 + $0x200] sm:$0xff]
        %v1290 = vld [vmem:[%s792 + $0x208] sm:$0xff]
        %v1291 = vld [vmem:[%s792 + $0x230] sm:$0xff]
        %v1292 = vld [vmem:[%s792 + $0x238] sm:$0xff]
        %v1293 = vld [vmem:[%s792 + $0x260] sm:$0xff]
        %v1294 = vld [vmem:[%s792 + $0x268] sm:$0xff]
        %v1295 = vld [vmem:[%s792 + $0x290] sm:$0xff]
        %v1296 = vld [vmem:[%s792 + $0x298] sm:$0xff]
        %v1297 = vld [vmem:[%s792 + $0x2c0] sm:$0xff]
        %v1298 = vld [vmem:[%s792 + $0x2c8] sm:$0xff]
        %v1299 = vld [vmem:[%s792 + $0x2f0] sm:$0xff]
        %v1300 = vld [vmem:[%s792 + $0x2f8] sm:$0xff]
        %v1301 = vld [vmem:[%s792 + $0x320] sm:$0xff]
        %v1302 = vld [vmem:[%s792 + $0x328] sm:$0xff]
        %v1303 = vld [vmem:[%s792 + $0x350] sm:$0xff]
        %v1304 = vld [vmem:[%s792 + $0x358] sm:$0xff]
        %v1305 = vld [vmem:[%s792 + $0x380] sm:$0xff]
        %v1306 = vld [vmem:[%s792 + $0x388] sm:$0xff]
        %v1307 = vld [vmem:[%s792 + $0x3b0] sm:$0xff]
        %v1308 = vld [vmem:[%s792 + $0x3b8] sm:$0xff]
        %v1309 = vld [vmem:[%s792 + $0x3e0] sm:$0xff]
        %v1310 = vld [vmem:[%s792 + $0x3e8] sm:$0xff]
        %v1311 = vld [vmem:[%s792 + $0x410] sm:$0xff]
        %v1312 = vld [vmem:[%s792 + $0x418] sm:$0xff]
        %v1313 = vld [vmem:[%s792 + $0x440] sm:$0xff]
        %v1314 = vld [vmem:[%s792 + $0x448] sm:$0xff]
        %v1315 = vld [vmem:[%s792 + $0x470] sm:$0xff]
        %v1316 = vld [vmem:[%s792 + $0x478] sm:$0xff]
        %v1317 = vld [vmem:[%s792 + $0x4a0] sm:$0xff]
        %v1318 = vld [vmem:[%s792 + $0x4a8] sm:$0xff]
        %v1319 = vld [vmem:[%s792 + $0x4d0] sm:$0xff]
        %v1320 = vld [vmem:[%s792 + $0x4d8] sm:$0xff]
        %v1321 = vld [vmem:[%s792 + $0x500] sm:$0xff]
        %v1322 = vld [vmem:[%s792 + $0x508] sm:$0xff]
        %v1323 = vld [vmem:[%s792 + $0x530] sm:$0xff]
        %v1324 = vld [vmem:[%s792 + $0x538] sm:$0xff]
        %v1325 = vld [vmem:[%s792 + $0x560] sm:$0xff]
        %v1326 = vld [vmem:[%s792 + $0x568] sm:$0xff]
        %v1327 = vld [vmem:[%s792 + $0x590] sm:$0xff]
        %v1328 = vld [vmem:[%s792 + $0x598] sm:$0xff]
        %v1329 = vld [vmem:[%s792 + $0x5c0] sm:$0xff]
        %v1330 = vld [vmem:[%s792 + $0x5c8] sm:$0xff]
        %v1331 = vld [vmem:[%s792 + $0x5f0] sm:$0xff]
        %v1332 = vld [vmem:[%s792 + $0x5f8] sm:$0xff]
        %v1333 = vld [vmem:[%s802 + $0x4] sm:$0x3]
        %v1335 = vperm.slane %v1333, 0
        %v1336 = vperm.slane %v1333, 1
        %1339 = vmatpush.msra.mxu0 %v1299
        %1340 = vmatpush.msra.mxu0 %v1297
        %1341 = vmatpush.msra.mxu0 %v1295
        %1342 = vmatpush.msra.mxu0 %v1293
        %1343 = vmatpush.msra.mxu0 %v1291
        %1344 = vmatpush.msra.mxu0 %v1289
        %1345 = vmatpush.msra.mxu0 %v1287
        %1346 = vmatpush.msra.mxu0 %v1285
        %1347 = vmatpush.msra.mxu0 %v1283
        %1348 = vmatpush.msra.mxu0 %v1281
        %1349 = vmatpush.msra.mxu0 %v1279
        %1350 = vmatpush.msra.mxu0 %v1277
        %1351 = vmatpush.msra.mxu0 %v1275
        %1352 = vmatpush.msra.mxu0 %v1273
        %1353 = vmatpush.msra.mxu0 %v1271
        %1354 = vmatpush.msra.mxu0 %v1269
        %1355 = vmatmul.f32.gmra.mxu0 %v952
        %v1356 = vpop.f32.mrf.mxu0
        %v1357 = vadd.f32 %v1335, %v1356
        %1358 = vmatmul.f32.gmra.mxu0 %v954
        %v1359 = vpop.f32.mrf.mxu0
        %v1360 = vadd.f32 %v1335, %v1359
        %1361 = vdwg.mxu0
        %1362 = vmatpush.msra.mxu0 %v1331
        %1363 = vmatpush.msra.mxu0 %v1329
        %1364 = vmatpush.msra.mxu0 %v1327
        %1365 = vmatpush.msra.mxu0 %v1325
        %1366 = vmatpush.msra.mxu0 %v1323
        %1367 = vmatpush.msra.mxu0 %v1321
        %1368 = vmatpush.msra.mxu0 %v1319
        %1369 = vmatpush.msra.mxu0 %v1317
        %1370 = vmatpush.msra.mxu0 %v1315
        %1371 = vmatpush.msra.mxu0 %v1313
        %1372 = vmatpush.msra.mxu0 %v1311
        %1373 = vmatpush.msra.mxu0 %v1309
        %1374 = vmatpush.msra.mxu0 %v1307
        %1375 = vmatpush.msra.mxu0 %v1305
        %1376 = vmatpush.msra.mxu0 %v1303
        %1377 = vmatpush.msra.mxu0 %v1301
        %1378 = vmatmul.f32.gmra.mxu0 %v953
        %v1379 = vpop.f32.mrf.mxu0
        %v1380 = vadd.f32 %v1357, %v1379
        %1381 = vmatmul.f32.gmra.mxu0 %v955
        %v1382 = vpop.f32.mrf.mxu0
        %v1383 = vadd.f32 %v1360, %v1382
        %1384 = vdwg.mxu0
        %1385 = vmatpush.msra.mxu0 %v1300
        %1386 = vmatpush.msra.mxu0 %v1298
        %1387 = vmatpush.msra.mxu0 %v1296
        %1388 = vmatpush.msra.mxu0 %v1294
        %1389 = vmatpush.msra.mxu0 %v1292
        %1390 = vmatpush.msra.mxu0 %v1290
        %1391 = vmatpush.msra.mxu0 %v1288
        %1392 = vmatpush.msra.mxu0 %v1286
        %1393 = vmatpush.msra.mxu0 %v1284
        %1394 = vmatpush.msra.mxu0 %v1282
        %1395 = vmatpush.msra.mxu0 %v1280
        %1396 = vmatpush.msra.mxu0 %v1278
        %1397 = vmatpush.msra.mxu0 %v1276
        %1398 = vmatpush.msra.mxu0 %v1274
        %1399 = vmatpush.msra.mxu0 %v1272
        %1400 = vmatpush.msra.mxu0 %v1270
        %1401 = vmatmul.f32.gmra.mxu0 %v952
        %v1402 = vpop.f32.mrf.mxu0
        %v1403 = vadd.f32 %v1336, %v1402
        %1404 = vmatmul.f32.gmra.mxu0 %v954
        %v1405 = vpop.f32.mrf.mxu0
        %v1406 = vadd.f32 %v1336, %v1405
        %1407 = vdwg.mxu0
        %1408 = vmatpush.msra.mxu0 %v1332
        %1409 = vmatpush.msra.mxu0 %v1330
        %1410 = vmatpush.msra.mxu0 %v1328
        %1411 = vmatpush.msra.mxu0 %v1326
        %1412 = vmatpush.msra.mxu0 %v1324
        %1413 = vmatpush.msra.mxu0 %v1322
        %1414 = vmatpush.msra.mxu0 %v1320
        %1415 = vmatpush.msra.mxu0 %v1318
        %1416 = vmatpush.msra.mxu0 %v1316
        %1417 = vmatpush.msra.mxu0 %v1314
        %1418 = vmatpush.msra.mxu0 %v1312
        %1419 = vmatpush.msra.mxu0 %v1310
        %1420 = vmatpush.msra.mxu0 %v1308
        %1421 = vmatpush.msra.mxu0 %v1306
        %1422 = vmatpush.msra.mxu0 %v1304
        %1423 = vmatpush.msra.mxu0 %v1302
        %1424 = vmatmul.f32.gmra.mxu0 %v953
        %v1425 = vpop.f32.mrf.mxu0
        %v1426 = vadd.f32 %v1403, %v1425
        %1427 = vmatmul.f32.gmra.mxu0 %v955
        %v1428 = vpop.f32.mrf.mxu0
        %v1429 = vadd.f32 %v1406, %v1428
        %1430 = vdwg.mxu0
        %vm1431 = vcmask 523264
        %v1433 = vsel %vm1431, %v1065, 0
        %v1436 = vsel %vm1431, %v1218, 0
        %v1439 = vsel %vm1431, %v1221, 0
        %1441 = vmatpush.xpose.msra.mxu0 0.0
        %1442 = vmatpush.xpose.msra.mxu0 0.0
        %1443 = vmatpush.xpose.msra.mxu0 0.0
        %1444 = vmatpush.xpose.msra.mxu0 0.0
        %1445 = vmatpush.xpose.msra.mxu0 0.0
        %1446 = vmatpush.xpose.msra.mxu0 0.0
        %1447 = vmatpush.xpose.msra.mxu0 0.0
        %1448 = vmatpush.xpose.msra.mxu0 0.0
        %1449 = vmatpush.xpose.msra.mxu0 0.0
        %1450 = vmatpush.xpose.msra.mxu0 0.0
        %1451 = vmatpush.xpose.msra.mxu0 0.0
        %1452 = vmatpush.xpose.msra.mxu0 0.0
        %1453 = vmatpush.xpose.msra.mxu0 0.0
        %1454 = vmatpush.xpose.msra.mxu0 0.0
        %1455 = vmatpush.xpose.msra.mxu0 %v1439
        %1456 = vmatpush.xpose.msra.mxu0 %v1436
        %1457 = vmatmul.f32.gmra.mxu0 %v1433
        %v1458 = vpop.f32.mrf.mxu0
        %v1459 = vadd.f32 0.0, %v1458
        %1460 = vdwg.mxu0
        %v1461 = vmul.f32 %v1459, 0.125
        %v1463 = vperm.slane %v956, 0
        %v1465 = vadd.f32 %v1461, %v1463
        %vm1466 = vcmask 130048
        %v1467 = vsel %vm1466, %v1465, -inf
        %1468 = vmax.xlane.f32.xlu0 %v1467
        %v1469 = vpop.xlane.xlu0 %1468
        %v1470 = vsub.f32 %v1465, %v1469
        %v1471 = vmul.f32 %v1470, 1.442695
        %v1472 = vpow.pop %v1471
        %v1473 = vsel %vm1466, %v1472, 0.0
        %1474 = vadd.xlane.f32.xlu0 %v1473
        %v1475 = vpop.xlane.xlu0 %1474
        %v1476 = vrcp.pop %v1475
        %v1477 = vmul.f32 %v1475, %v1476
        %v1478 = vsub.f32 1.0, %v1477
        %v1479 = vmul.f32 %v1476, %v1478
        %v1480 = vadd.f32 %v1476, %v1479
        %vm1481 = vweird.f32 %v1475
        %vm1482 = vweird.f32 %v1476
        %vm1483 = vmor %vm1481, %vm1482
        %v1484 = vsel %vm1483, %v1476, %v1480
        %v1485 = vand.u32 2147483647, %v1475
        %vm1486 = vcmp.eq.f32.partialorder %v1485, 8.507059e+37
        %v1487 = vand.u32 %v1475, 2147483648
        %v1488 = vor.u32 1.1754944e-38, %v1487
        %v1489 = vsel %vm1486, %v1488, %v1484
        %v1490 = vmul.f32 %v1472, %v1489
        %v1492 = vsel %vm1466, %v1490, 0
        %1494 = vmatpush.msra.mxu0 0.0
        %1495 = vmatpush.msra.mxu0 0.0
        %1496 = vmatpush.msra.mxu0 0.0
        %1497 = vmatpush.msra.mxu0 0.0
        %1498 = vmatpush.msra.mxu0 0.0
        %1499 = vmatpush.msra.mxu0 0.0
        %1500 = vmatpush.msra.mxu0 0.0
        %1501 = vmatpush.msra.mxu0 0.0
        %1502 = vmatpush.msra.mxu0 0.0
        %1503 = vmatpush.msra.mxu0 0.0
        %1504 = vmatpush.msra.mxu0 0.0
        %1505 = vmatpush.msra.mxu0 0.0
        %1506 = vmatpush.msra.mxu0 0.0
        %1507 = vmatpush.msra.mxu0 0.0
        %1508 = vmatpush.msra.mxu0 %v1383
        %1509 = vmatpush.msra.mxu0 %v1380
        %1510 = vmatmul.f32.gmra.mxu0 %v1492
        %v1511 = vpop.f32.mrf.mxu0
        %v1512 = vadd.f32 0.0, %v1511
        %1513 = vdwg.mxu0
        %1514 = vrot.lane.b32.xlu0 %v1065, 64
        %v1515 = vpop.permute.xlu0 %1514
        %1516 = vrot.lane.b32.xlu0 %v1218, 64
        %v1517 = vpop.permute.xlu0 %1516
        %1518 = vrot.lane.b32.xlu0 %v1221, 64
        %v1519 = vpop.permute.xlu0 %1518
        %v1520 = vsel %vm1431, %v1515, 0
        %v1522 = vsel %vm1431, %v1517, 0
        %v1524 = vsel %vm1431, %v1519, 0
        %1526 = vmatpush.xpose.msra.mxu0 0.0
        %1527 = vmatpush.xpose.msra.mxu0 0.0
        %1528 = vmatpush.xpose.msra.mxu0 0.0
        %1529 = vmatpush.xpose.msra.mxu0 0.0
        %1530 = vmatpush.xpose.msra.mxu0 0.0
        %1531 = vmatpush.xpose.msra.mxu0 0.0
        %1532 = vmatpush.xpose.msra.mxu0 0.0
        %1533 = vmatpush.xpose.msra.mxu0 0.0
        %1534 = vmatpush.xpose.msra.mxu0 0.0
        %1535 = vmatpush.xpose.msra.mxu0 0.0
        %1536 = vmatpush.xpose.msra.mxu0 0.0
        %1537 = vmatpush.xpose.msra.mxu0 0.0
        %1538 = vmatpush.xpose.msra.mxu0 0.0
        %1539 = vmatpush.xpose.msra.mxu0 0.0
        %1540 = vmatpush.xpose.msra.mxu0 %v1524
        %1541 = vmatpush.xpose.msra.mxu0 %v1522
        %1542 = vmatmul.f32.gmra.mxu0 %v1520
        %v1543 = vpop.f32.mrf.mxu0
        %v1544 = vadd.f32 0.0, %v1543
        %1545 = vdwg.mxu0
        %v1546 = vmul.f32 %v1544, 0.125
        %v1547 = vadd.f32 %v1546, %v1463
        %v1548 = vsel %vm1466, %v1547, -inf
        %1549 = vmax.xlane.f32.xlu0 %v1548
        %v1550 = vpop.xlane.xlu0 %1549
        %v1551 = vsub.f32 %v1547, %v1550
        %v1552 = vmul.f32 %v1551, 1.442695
        %v1553 = vpow.pop %v1552
        %v1554 = vsel %vm1466, %v1553, 0.0
        %1555 = vadd.xlane.f32.xlu0 %v1554
        %v1556 = vpop.xlane.xlu0 %1555
        %v1557 = vrcp.pop %v1556
        %v1558 = vmul.f32 %v1556, %v1557
        %v1559 = vsub.f32 1.0, %v1558
        %v1560 = vmul.f32 %v1557, %v1559
        %v1561 = vadd.f32 %v1557, %v1560
        %vm1562 = vweird.f32 %v1556
        %vm1563 = vweird.f32 %v1557
        %vm1564 = vmor %vm1562, %vm1563
        %v1565 = vsel %vm1564, %v1557, %v1561
        %v1566 = vand.u32 2147483647, %v1556
        %vm1567 = vcmp.eq.f32.partialorder %v1566, 8.507059e+37
        %v1568 = vand.u32 %v1556, 2147483648
        %v1569 = vor.u32 1.1754944e-38, %v1568
        %v1570 = vsel %vm1567, %v1569, %v1565
        %v1571 = vmul.f32 %v1553, %v1570
        %1574 = vrot.lane.b32.xlu0 %v1380, 64
        %v1575 = vpop.permute.xlu0 %1574
        %1576 = vrot.lane.b32.xlu0 %v1383, 64
        %v1577 = vpop.permute.xlu0 %1576
        %v1581 = vsel %vm1466, %v1571, 0
        %1583 = vmatpush.msra.mxu0 0.0
        %1584 = vmatpush.msra.mxu0 0.0
        %1585 = vmatpush.msra.mxu0 0.0
        %1586 = vmatpush.msra.mxu0 0.0
        %1587 = vmatpush.msra.mxu0 0.0
        %1588 = vmatpush.msra.mxu0 0.0
        %1589 = vmatpush.msra.mxu0 0.0
        %1590 = vmatpush.msra.mxu0 0.0
        %1591 = vmatpush.msra.mxu0 0.0
        %1592 = vmatpush.msra.mxu0 0.0
        %1593 = vmatpush.msra.mxu0 0.0
        %1594 = vmatpush.msra.mxu0 0.0
        %1595 = vmatpush.msra.mxu0 0.0
        %1596 = vmatpush.msra.mxu0 0.0
        %1597 = vmatpush.msra.mxu0 %v1577
        %1598 = vmatpush.msra.mxu0 %v1575
        %1599 = vmatmul.f32.gmra.mxu0 %v1581
        %v1600 = vpop.f32.mrf.mxu0
        %v1601 = vadd.f32 0.0, %v1600
        %1602 = vdwg.mxu0
        %v1604 = vsel %vm1431, %v1105, 0
        %v1607 = vsel %vm1431, %v1264, 0
        %v1610 = vsel %vm1431, %v1267, 0
        %1612 = vmatpush.xpose.msra.mxu0 0.0
        %1613 = vmatpush.xpose.msra.mxu0 0.0
        %1614 = vmatpush.xpose.msra.mxu0 0.0
        %1615 = vmatpush.xpose.msra.mxu0 0.0
        %1616 = vmatpush.xpose.msra.mxu0 0.0
        %1617 = vmatpush.xpose.msra.mxu0 0.0
        %1618 = vmatpush.xpose.msra.mxu0 0.0
        %1619 = vmatpush.xpose.msra.mxu0 0.0
        %1620 = vmatpush.xpose.msra.mxu0 0.0
        %1621 = vmatpush.xpose.msra.mxu0 0.0
        %1622 = vmatpush.xpose.msra.mxu0 0.0
        %1623 = vmatpush.xpose.msra.mxu0 0.0
        %1624 = vmatpush.xpose.msra.mxu0 0.0
        %1625 = vmatpush.xpose.msra.mxu0 0.0
        %1626 = vmatpush.xpose.msra.mxu0 %v1610
        %1627 = vmatpush.xpose.msra.mxu0 %v1607
        %1628 = vmatmul.f32.gmra.mxu0 %v1604
        %v1629 = vpop.f32.mrf.mxu0
        %v1630 = vadd.f32 0.0, %v1629
        %1631 = vdwg.mxu0
        %v1632 = vmul.f32 %v1630, 0.125
        %v1633 = vadd.f32 %v1632, %v1463
        %v1634 = vsel %vm1466, %v1633, -inf
        %1635 = vmax.xlane.f32.xlu0 %v1634
        %v1636 = vpop.xlane.xlu0 %1635
        %v1637 = vsub.f32 %v1633, %v1636
        %v1638 = vmul.f32 %v1637, 1.442695
        %v1639 = vpow.pop %v1638
        %v1640 = vsel %vm1466, %v1639, 0.0
        %1641 = vadd.xlane.f32.xlu0 %v1640
        %v1642 = vpop.xlane.xlu0 %1641
        %v1643 = vrcp.pop %v1642
        %v1644 = vmul.f32 %v1642, %v1643
        %v1645 = vsub.f32 1.0, %v1644
        %v1646 = vmul.f32 %v1643, %v1645
        %v1647 = vadd.f32 %v1643, %v1646
        %vm1648 = vweird.f32 %v1642
        %vm1649 = vweird.f32 %v1643
        %vm1650 = vmor %vm1648, %vm1649
        %v1651 = vsel %vm1650, %v1643, %v1647
        %v1652 = vand.u32 2147483647, %v1642
        %vm1653 = vcmp.eq.f32.partialorder %v1652, 8.507059e+37
        %v1654 = vand.u32 %v1642, 2147483648
        %v1655 = vor.u32 1.1754944e-38, %v1654
        %v1656 = vsel %vm1653, %v1655, %v1651
        %v1657 = vmul.f32 %v1639, %v1656
        %v1659 = vsel %vm1466, %v1657, 0
        %1661 = vmatpush.msra.mxu0 0.0
        %1662 = vmatpush.msra.mxu0 0.0
        %1663 = vmatpush.msra.mxu0 0.0
        %1664 = vmatpush.msra.mxu0 0.0
        %1665 = vmatpush.msra.mxu0 0.0
        %1666 = vmatpush.msra.mxu0 0.0
        %1667 = vmatpush.msra.mxu0 0.0
        %1668 = vmatpush.msra.mxu0 0.0
        %1669 = vmatpush.msra.mxu0 0.0
        %1670 = vmatpush.msra.mxu0 0.0
        %1671 = vmatpush.msra.mxu0 0.0
        %1672 = vmatpush.msra.mxu0 0.0
        %1673 = vmatpush.msra.mxu0 0.0
        %1674 = vmatpush.msra.mxu0 0.0
        %1675 = vmatpush.msra.mxu0 %v1429
        %1676 = vmatpush.msra.mxu0 %v1426
        %1677 = vmatmul.f32.gmra.mxu0 %v1659
        %v1678 = vpop.f32.mrf.mxu0
        %v1679 = vadd.f32 0.0, %v1678
        %1680 = vdwg.mxu0
        %1681 = vrot.lane.b32.xlu0 %v1105, 64
        %v1682 = vpop.permute.xlu0 %1681
        %1683 = vrot.lane.b32.xlu0 %v1264, 64
        %v1684 = vpop.permute.xlu0 %1683
        %1685 = vrot.lane.b32.xlu0 %v1267, 64
        %v1686 = vpop.permute.xlu0 %1685
        %v1687 = vsel %vm1431, %v1682, 0
        %v1689 = vsel %vm1431, %v1684, 0
        %v1691 = vsel %vm1431, %v1686, 0
        %1693 = vmatpush.xpose.msra.mxu0 0.0
        %1694 = vmatpush.xpose.msra.mxu0 0.0
        %1695 = vmatpush.xpose.msra.mxu0 0.0
        %1696 = vmatpush.xpose.msra.mxu0 0.0
        %1697 = vmatpush.xpose.msra.mxu0 0.0
        %1698 = vmatpush.xpose.msra.mxu0 0.0
        %1699 = vmatpush.xpose.msra.mxu0 0.0
        %1700 = vmatpush.xpose.msra.mxu0 0.0
        %1701 = vmatpush.xpose.msra.mxu0 0.0
        %1702 = vmatpush.xpose.msra.mxu0 0.0
        %1703 = vmatpush.xpose.msra.mxu0 0.0
        %1704 = vmatpush.xpose.msra.mxu0 0.0
        %1705 = vmatpush.xpose.msra.mxu0 0.0
        %1706 = vmatpush.xpose.msra.mxu0 0.0
        %1707 = vmatpush.xpose.msra.mxu0 %v1691
        %1708 = vmatpush.xpose.msra.mxu0 %v1689
        %1709 = vmatmul.f32.gmra.mxu0 %v1687
        %v1710 = vpop.f32.mrf.mxu0
        %v1711 = vadd.f32 0.0, %v1710
        %1712 = vdwg.mxu0
        %v1713 = vmul.f32 %v1711, 0.125
        %v1714 = vadd.f32 %v1713, %v1463
        %v1715 = vsel %vm1466, %v1714, -inf
        %1716 = vmax.xlane.f32.xlu0 %v1715
        %v1717 = vpop.xlane.xlu0 %1716
        %v1718 = vsub.f32 %v1714, %v1717
        %v1719 = vmul.f32 %v1718, 1.442695
        %v1720 = vpow.pop %v1719
        %v1721 = vsel %vm1466, %v1720, 0.0
        %1722 = vadd.xlane.f32.xlu0 %v1721
        %v1723 = vpop.xlane.xlu0 %1722
        %v1724 = vrcp.pop %v1723
        %v1725 = vmul.f32 %v1723, %v1724
        %v1726 = vsub.f32 1.0, %v1725
        %v1727 = vmul.f32 %v1724, %v1726
        %v1728 = vadd.f32 %v1724, %v1727
        %vm1729 = vweird.f32 %v1723
        %vm1730 = vweird.f32 %v1724
        %vm1731 = vmor %vm1729, %vm1730
        %v1732 = vsel %vm1731, %v1724, %v1728
        %v1733 = vand.u32 2147483647, %v1723
        %vm1734 = vcmp.eq.f32.partialorder %v1733, 8.507059e+37
        %v1735 = vand.u32 %v1723, 2147483648
        %v1736 = vor.u32 1.1754944e-38, %v1735
        %v1737 = vsel %vm1734, %v1736, %v1732
        %v1738 = vmul.f32 %v1720, %v1737
        %1741 = vrot.lane.b32.xlu0 %v1426, 64
        %v1742 = vpop.permute.xlu0 %1741
        %1743 = vrot.lane.b32.xlu0 %v1429, 64
        %v1744 = vpop.permute.xlu0 %1743
        %v1748 = vsel %vm1466, %v1738, 0
        %1750 = vmatpush.msra.mxu0 0.0
        %1751 = vmatpush.msra.mxu0 0.0
        %1752 = vmatpush.msra.mxu0 0.0
        %1753 = vmatpush.msra.mxu0 0.0
        %1754 = vmatpush.msra.mxu0 0.0
        %1755 = vmatpush.msra.mxu0 0.0
        %1756 = vmatpush.msra.mxu0 0.0
        %1757 = vmatpush.msra.mxu0 0.0
        %1758 = vmatpush.msra.mxu0 0.0
        %1759 = vmatpush.msra.mxu0 0.0
        %1760 = vmatpush.msra.mxu0 0.0
        %1761 = vmatpush.msra.mxu0 0.0
        %1762 = vmatpush.msra.mxu0 0.0
        %1763 = vmatpush.msra.mxu0 0.0
        %1764 = vmatpush.msra.mxu0 %v1744
        %1765 = vmatpush.msra.mxu0 %v1742
        %1766 = vmatmul.f32.gmra.mxu0 %v1748
        %v1767 = vpop.f32.mrf.mxu0
        %v1768 = vadd.f32 0.0, %v1767
        %1769 = vdwg.mxu0
        %1771 = vrot.lane.b32.xlu0 %v1601, 64
        %v1772 = vpop.permute.xlu0 %1771
        %1775 = vrot.lane.b32.xlu0 %v1768, 64
        %v1776 = vpop.permute.xlu0 %1775
        %v1778 = vsel %vm1431, %v1512, %v1772
        %v1779 = vsel %vm1431, %v1679, %v1776
        %v1780 = vld [vmem:[%s812] sm:$0xff]
        %v1781 = vld [vmem:[%s812 + $0x8] sm:$0xff]
        %v1782 = vld [vmem:[%s812 + $0x10] sm:$0xff]
        %v1783 = vld [vmem:[%s812 + $0x18] sm:$0xff]
        %v1784 = vld [vmem:[%s812 + $0x20] sm:$0xff]
        %v1785 = vld [vmem:[%s812 + $0x28] sm:$0xff]
        %v1786 = vld [vmem:[%s812 + $0x30] sm:$0xff]
        %v1787 = vld [vmem:[%s812 + $0x38] sm:$0xff]
        %v1788 = vld [vmem:[%s812 + $0x40] sm:$0xff]
        %v1789 = vld [vmem:[%s812 + $0x48] sm:$0xff]
        %v1790 = vld [vmem:[%s812 + $0x50] sm:$0xff]
        %v1791 = vld [vmem:[%s812 + $0x58] sm:$0xff]
        %v1792 = vld [vmem:[%s812 + $0x60] sm:$0xff]
        %v1793 = vld [vmem:[%s812 + $0x68] sm:$0xff]
        %v1794 = vld [vmem:[%s812 + $0x70] sm:$0xff]
        %v1795 = vld [vmem:[%s812 + $0x78] sm:$0xff]
        %v1796 = vld [vmem:[%s812 + $0x80] sm:$0xff]
        %v1797 = vld [vmem:[%s812 + $0x88] sm:$0xff]
        %v1798 = vld [vmem:[%s812 + $0x90] sm:$0xff]
        %v1799 = vld [vmem:[%s812 + $0x98] sm:$0xff]
        %v1800 = vld [vmem:[%s812 + $0xa0] sm:$0xff]
        %v1801 = vld [vmem:[%s812 + $0xa8] sm:$0xff]
        %v1802 = vld [vmem:[%s812 + $0xb0] sm:$0xff]
        %v1803 = vld [vmem:[%s812 + $0xb8] sm:$0xff]
        %v1804 = vld [vmem:[%s812 + $0xc0] sm:$0xff]
        %v1805 = vld [vmem:[%s812 + $0xc8] sm:$0xff]
        %v1806 = vld [vmem:[%s812 + $0xd0] sm:$0xff]
        %v1807 = vld [vmem:[%s812 + $0xd8] sm:$0xff]
        %v1808 = vld [vmem:[%s812 + $0xe0] sm:$0xff]
        %v1809 = vld [vmem:[%s812 + $0xe8] sm:$0xff]
        %v1810 = vld [vmem:[%s812 + $0xf0] sm:$0xff]
        %v1811 = vld [vmem:[%s812 + $0xf8] sm:$0xff]
        %v1812 = vld [vmem:[%s812 + $0x100] sm:$0xff]
        %v1813 = vld [vmem:[%s812 + $0x108] sm:$0xff]
        %v1814 = vld [vmem:[%s812 + $0x110] sm:$0xff]
        %v1815 = vld [vmem:[%s812 + $0x118] sm:$0xff]
        %v1816 = vld [vmem:[%s812 + $0x120] sm:$0xff]
        %v1817 = vld [vmem:[%s812 + $0x128] sm:$0xff]
        %v1818 = vld [vmem:[%s812 + $0x130] sm:$0xff]
        %v1819 = vld [vmem:[%s812 + $0x138] sm:$0xff]
        %v1820 = vld [vmem:[%s812 + $0x140] sm:$0xff]
        %v1821 = vld [vmem:[%s812 + $0x148] sm:$0xff]
        %v1822 = vld [vmem:[%s812 + $0x150] sm:$0xff]
        %v1823 = vld [vmem:[%s812 + $0x158] sm:$0xff]
        %v1824 = vld [vmem:[%s812 + $0x160] sm:$0xff]
        %v1825 = vld [vmem:[%s812 + $0x168] sm:$0xff]
        %v1826 = vld [vmem:[%s812 + $0x170] sm:$0xff]
        %v1827 = vld [vmem:[%s812 + $0x178] sm:$0xff]
        %v1828 = vld [vmem:[%s812 + $0x180] sm:$0xff]
        %v1829 = vld [vmem:[%s812 + $0x188] sm:$0xff]
        %v1830 = vld [vmem:[%s812 + $0x190] sm:$0xff]
        %v1831 = vld [vmem:[%s812 + $0x198] sm:$0xff]
        %v1832 = vld [vmem:[%s812 + $0x1a0] sm:$0xff]
        %v1833 = vld [vmem:[%s812 + $0x1a8] sm:$0xff]
        %v1834 = vld [vmem:[%s812 + $0x1b0] sm:$0xff]
        %v1835 = vld [vmem:[%s812 + $0x1b8] sm:$0xff]
        %v1836 = vld [vmem:[%s812 + $0x1c0] sm:$0xff]
        %v1837 = vld [vmem:[%s812 + $0x1c8] sm:$0xff]
        %v1838 = vld [vmem:[%s812 + $0x1d0] sm:$0xff]
        %v1839 = vld [vmem:[%s812 + $0x1d8] sm:$0xff]
        %v1840 = vld [vmem:[%s812 + $0x1e0] sm:$0xff]
        %v1841 = vld [vmem:[%s812 + $0x1e8] sm:$0xff]
        %v1842 = vld [vmem:[%s812 + $0x1f0] sm:$0xff]
        %v1843 = vld [vmem:[%s812 + $0x1f8] sm:$0xff]
        %v1844 = vld [vmem:[%s822] sm:$0x3]
        %v1846 = vperm.slane %v1844, 0
        %v1847 = vperm.slane %v1844, 1
        %1850 = vmatpush.msra.mxu0 %v1810
        %1851 = vmatpush.msra.mxu0 %v1808
        %1852 = vmatpush.msra.mxu0 %v1806
        %1853 = vmatpush.msra.mxu0 %v1804
        %1854 = vmatpush.msra.mxu0 %v1802
        %1855 = vmatpush.msra.mxu0 %v1800
        %1856 = vmatpush.msra.mxu0 %v1798
        %1857 = vmatpush.msra.mxu0 %v1796
        %1858 = vmatpush.msra.mxu0 %v1794
        %1859 = vmatpush.msra.mxu0 %v1792
        %1860 = vmatpush.msra.mxu0 %v1790
        %1861 = vmatpush.msra.mxu0 %v1788
        %1862 = vmatpush.msra.mxu0 %v1786
        %1863 = vmatpush.msra.mxu0 %v1784
        %1864 = vmatpush.msra.mxu0 %v1782
        %1865 = vmatpush.msra.mxu0 %v1780
        %1866 = vmatmul.f32.gmra.mxu0 %v1778
        %v1867 = vpop.f32.mrf.mxu0
        %v1868 = vadd.f32 %v1846, %v1867
        %1869 = vdwg.mxu0
        %1870 = vmatpush.msra.mxu0 %v1842
        %1871 = vmatpush.msra.mxu0 %v1840
        %1872 = vmatpush.msra.mxu0 %v1838
        %1873 = vmatpush.msra.mxu0 %v1836
        %1874 = vmatpush.msra.mxu0 %v1834
        %1875 = vmatpush.msra.mxu0 %v1832
        %1876 = vmatpush.msra.mxu0 %v1830
        %1877 = vmatpush.msra.mxu0 %v1828
        %1878 = vmatpush.msra.mxu0 %v1826
        %1879 = vmatpush.msra.mxu0 %v1824
        %1880 = vmatpush.msra.mxu0 %v1822
        %1881 = vmatpush.msra.mxu0 %v1820
        %1882 = vmatpush.msra.mxu0 %v1818
        %1883 = vmatpush.msra.mxu0 %v1816
        %1884 = vmatpush.msra.mxu0 %v1814
        %1885 = vmatpush.msra.mxu0 %v1812
        %1886 = vmatmul.f32.gmra.mxu0 %v1779
        %v1887 = vpop.f32.mrf.mxu0
        %v1888 = vadd.f32 %v1868, %v1887
        %1889 = vdwg.mxu0
        %1890 = vmatpush.msra.mxu0 %v1811
        %1891 = vmatpush.msra.mxu0 %v1809
        %1892 = vmatpush.msra.mxu0 %v1807
        %1893 = vmatpush.msra.mxu0 %v1805
        %1894 = vmatpush.msra.mxu0 %v1803
        %1895 = vmatpush.msra.mxu0 %v1801
        %1896 = vmatpush.msra.mxu0 %v1799
        %1897 = vmatpush.msra.mxu0 %v1797
        %1898 = vmatpush.msra.mxu0 %v1795
        %1899 = vmatpush.msra.mxu0 %v1793
        %1900 = vmatpush.msra.mxu0 %v1791
        %1901 = vmatpush.msra.mxu0 %v1789
        %1902 = vmatpush.msra.mxu0 %v1787
        %1903 = vmatpush.msra.mxu0 %v1785
        %1904 = vmatpush.msra.mxu0 %v1783
        %1905 = vmatpush.msra.mxu0 %v1781
        %1906 = vmatmul.f32.gmra.mxu0 %v1778
        %v1907 = vpop.f32.mrf.mxu0
        %v1908 = vadd.f32 %v1847, %v1907
        %1909 = vdwg.mxu0
        %1910 = vmatpush.msra.mxu0 %v1843
        %1911 = vmatpush.msra.mxu0 %v1841
        %1912 = vmatpush.msra.mxu0 %v1839
        %1913 = vmatpush.msra.mxu0 %v1837
        %1914 = vmatpush.msra.mxu0 %v1835
        %1915 = vmatpush.msra.mxu0 %v1833
        %1916 = vmatpush.msra.mxu0 %v1831
        %1917 = vmatpush.msra.mxu0 %v1829
        %1918 = vmatpush.msra.mxu0 %v1827
        %1919 = vmatpush.msra.mxu0 %v1825
        %1920 = vmatpush.msra.mxu0 %v1823
        %1921 = vmatpush.msra.mxu0 %v1821
        %1922 = vmatpush.msra.mxu0 %v1819
        %1923 = vmatpush.msra.mxu0 %v1817
        %1924 = vmatpush.msra.mxu0 %v1815
        %1925 = vmatpush.msra.mxu0 %v1813
        %1926 = vmatmul.f32.gmra.mxu0 %v1779
        %v1927 = vpop.f32.mrf.mxu0
        %v1928 = vadd.f32 %v1908, %v1927
        %1929 = vdwg.mxu0
        %v1930 = vld [vmem:[#allocation16] sm:$0x3]
        %v1931 = vld [vmem:[#allocation17] sm:$0x3]
        %v1932 = vadd.f32 %v1888, %v1928
        %1933 = vadd.xlane.f32.xlu0 %v1932
        %v1934 = vpop.xlane.xlu0 %1933
        %v1935 = vrcp.pop 256.0
        %v1936 = vmul.f32 256.0, %v1935
        %v1937 = vsub.f32 1.0, %v1936
        %v1938 = vmul.f32 %v1935, %v1937
        %v1939 = vadd.f32 %v1935, %v1938
        %vm1940 = vweird.f32 %v1935
        %v1941 = vsel %vm1940, %v1935, %v1939
        %v1942 = vmul.f32 %v1934, %v1941
        %v1943 = vsub.f32 %v1888, %v1942
        %v1944 = vsub.f32 %v1928, %v1942
        %v1945 = vmul.f32 %v1943, %v1943
        %v1946 = vmul.f32 %v1944, %v1944
        %v1947 = vadd.f32 %v1945, %v1946
        %1948 = vadd.xlane.f32.xlu0 %v1947
        %v1949 = vpop.xlane.xlu0 %1948
        %v1950 = vmul.f32 %v1949, %v1941
        %v1951 = vadd.f32 %v1950, 1e-05
        %v1952 = vrsqrt.pop %v1951
        %v1953 = vmul.f32 %v1952, %v1951
        %v1954 = vmul.f32 %v1953, %v1952
        %v1955 = vmul.f32 0.5, %v1954
        %v1956 = vsub.f32 1.5, %v1955
        %v1957 = vmul.f32 %v1952, %v1956
        %vm1958 = vweird.f32 %v1951
        %vm1959 = vweird.f32 %v1952
        %vm1960 = vmor %vm1958, %vm1959
        %v1961 = vsel %vm1960, %v1952, %v1957
        %v1962 = vmul.f32 %v1943, %v1961
        %v1963 = vmul.f32 %v1944, %v1961
        %v1965 = vperm.slane %v1930, 0
        %v1966 = vperm.slane %v1930, 1
        %v1969 = vmul.f32 %v1962, %v1965
        %v1970 = vmul.f32 %v1963, %v1966
        %v1972 = vperm.slane %v1931, 0
        %v1973 = vperm.slane %v1931, 1
        %v1976 = vadd.f32 %v1969, %v1972
        %v1977 = vadd.f32 %v1970, %v1973
        %v1978 = vld [vmem:[#allocation19] sm:$0xff]
        %v1979 = vld [vmem:[#allocation19 + $0x8] sm:$0xff]
        %v1980 = vld [vmem:[#allocation19 + $0x10] sm:$0xff]
        %v1981 = vld [vmem:[#allocation19 + $0x18] sm:$0xff]
        %v1982 = vld [vmem:[#allocation19 + $0x20] sm:$0xff]
        %v1983 = vld [vmem:[#allocation19 + $0x28] sm:$0xff]
        %v1984 = vld [vmem:[#allocation19 + $0x30] sm:$0xff]
        %v1985 = vld [vmem:[#allocation19 + $0x38] sm:$0xff]
        %v1986 = vld [vmem:[#allocation19 + $0x40] sm:$0xff]
        %v1987 = vld [vmem:[#allocation19 + $0x48] sm:$0xff]
        %v1988 = vld [vmem:[#allocation19 + $0x50] sm:$0xff]
        %v1989 = vld [vmem:[#allocation19 + $0x58] sm:$0xff]
        %v1990 = vld [vmem:[#allocation19 + $0x60] sm:$0xff]
        %v1991 = vld [vmem:[#allocation19 + $0x68] sm:$0xff]
        %v1992 = vld [vmem:[#allocation19 + $0x70] sm:$0xff]
        %v1993 = vld [vmem:[#allocation19 + $0x78] sm:$0xff]
        %v1994 = vld [vmem:[#allocation19 + $0x80] sm:$0xff]
        %v1995 = vld [vmem:[#allocation19 + $0x88] sm:$0xff]
        %v1996 = vld [vmem:[#allocation19 + $0x90] sm:$0xff]
        %v1997 = vld [vmem:[#allocation19 + $0x98] sm:$0xff]
        %v1998 = vld [vmem:[#allocation19 + $0xa0] sm:$0xff]
        %v1999 = vld [vmem:[#allocation19 + $0xa8] sm:$0xff]
        %v2000 = vld [vmem:[#allocation19 + $0xb0] sm:$0xff]
        %v2001 = vld [vmem:[#allocation19 + $0xb8] sm:$0xff]
        %v2002 = vld [vmem:[#allocation19 + $0xc0] sm:$0xff]
        %v2003 = vld [vmem:[#allocation19 + $0xc8] sm:$0xff]
        %v2004 = vld [vmem:[#allocation19 + $0xd0] sm:$0xff]
        %v2005 = vld [vmem:[#allocation19 + $0xd8] sm:$0xff]
        %v2006 = vld [vmem:[#allocation19 + $0xe0] sm:$0xff]
        %v2007 = vld [vmem:[#allocation19 + $0xe8] sm:$0xff]
        %v2008 = vld [vmem:[#allocation19 + $0xf0] sm:$0xff]
        %v2009 = vld [vmem:[#allocation19 + $0xf8] sm:$0xff]
        %v2010 = vld [vmem:[#allocation19 + $0x100] sm:$0xff]
        %v2011 = vld [vmem:[#allocation19 + $0x108] sm:$0xff]
        %v2012 = vld [vmem:[#allocation19 + $0x110] sm:$0xff]
        %v2013 = vld [vmem:[#allocation19 + $0x118] sm:$0xff]
        %v2014 = vld [vmem:[#allocation19 + $0x120] sm:$0xff]
        %v2015 = vld [vmem:[#allocation19 + $0x128] sm:$0xff]
        %v2016 = vld [vmem:[#allocation19 + $0x130] sm:$0xff]
        %v2017 = vld [vmem:[#allocation19 + $0x138] sm:$0xff]
        %v2018 = vld [vmem:[#allocation19 + $0x140] sm:$0xff]
        %v2019 = vld [vmem:[#allocation19 + $0x148] sm:$0xff]
        %v2020 = vld [vmem:[#allocation19 + $0x150] sm:$0xff]
        %v2021 = vld [vmem:[#allocation19 + $0x158] sm:$0xff]
        %v2022 = vld [vmem:[#allocation19 + $0x160] sm:$0xff]
        %v2023 = vld [vmem:[#allocation19 + $0x168] sm:$0xff]
        %v2024 = vld [vmem:[#allocation19 + $0x170] sm:$0xff]
        %v2025 = vld [vmem:[#allocation19 + $0x178] sm:$0xff]
        %v2026 = vld [vmem:[#allocation19 + $0x180] sm:$0xff]
        %v2027 = vld [vmem:[#allocation19 + $0x188] sm:$0xff]
        %v2028 = vld [vmem:[#allocation19 + $0x190] sm:$0xff]
        %v2029 = vld [vmem:[#allocation19 + $0x198] sm:$0xff]
        %v2030 = vld [vmem:[#allocation19 + $0x1a0] sm:$0xff]
        %v2031 = vld [vmem:[#allocation19 + $0x1a8] sm:$0xff]
        %v2032 = vld [vmem:[#allocation19 + $0x1b0] sm:$0xff]
        %v2033 = vld [vmem:[#allocation19 + $0x1b8] sm:$0xff]
        %v2034 = vld [vmem:[#allocation19 + $0x1c0] sm:$0xff]
        %v2035 = vld [vmem:[#allocation19 + $0x1c8] sm:$0xff]
        %v2036 = vld [vmem:[#allocation19 + $0x1d0] sm:$0xff]
        %v2037 = vld [vmem:[#allocation19 + $0x1d8] sm:$0xff]
        %v2038 = vld [vmem:[#allocation19 + $0x1e0] sm:$0xff]
        %v2039 = vld [vmem:[#allocation19 + $0x1e8] sm:$0xff]
        %v2040 = vld [vmem:[#allocation19 + $0x1f0] sm:$0xff]
        %v2041 = vld [vmem:[#allocation19 + $0x1f8] sm:$0xff]
        %v2042 = vld [vmem:[#allocation19 + $0x200] sm:$0xff]
        %v2043 = vld [vmem:[#allocation19 + $0x208] sm:$0xff]
        %v2044 = vld [vmem:[#allocation19 + $0x210] sm:$0xff]
        %v2045 = vld [vmem:[#allocation19 + $0x218] sm:$0xff]
        %v2046 = vld [vmem:[#allocation19 + $0x220] sm:$0xff]
        %v2047 = vld [vmem:[#allocation19 + $0x228] sm:$0xff]
        %v2048 = vld [vmem:[#allocation19 + $0x230] sm:$0xff]
        %v2049 = vld [vmem:[#allocation19 + $0x238] sm:$0xff]
        %v2050 = vld [vmem:[#allocation19 + $0x240] sm:$0xff]
        %v2051 = vld [vmem:[#allocation19 + $0x248] sm:$0xff]
        %v2052 = vld [vmem:[#allocation19 + $0x250] sm:$0xff]
        %v2053 = vld [vmem:[#allocation19 + $0x258] sm:$0xff]
        %v2054 = vld [vmem:[#allocation19 + $0x260] sm:$0xff]
        %v2055 = vld [vmem:[#allocation19 + $0x268] sm:$0xff]
        %v2056 = vld [vmem:[#allocation19 + $0x270] sm:$0xff]
        %v2057 = vld [vmem:[#allocation19 + $0x278] sm:$0xff]
        %v2058 = vld [vmem:[#allocation19 + $0x280] sm:$0xff]
        %v2059 = vld [vmem:[#allocation19 + $0x288] sm:$0xff]
        %v2060 = vld [vmem:[#allocation19 + $0x290] sm:$0xff]
        %v2061 = vld [vmem:[#allocation19 + $0x298] sm:$0xff]
        %v2062 = vld [vmem:[#allocation19 + $0x2a0] sm:$0xff]
        %v2063 = vld [vmem:[#allocation19 + $0x2a8] sm:$0xff]
        %v2064 = vld [vmem:[#allocation19 + $0x2b0] sm:$0xff]
        %v2065 = vld [vmem:[#allocation19 + $0x2b8] sm:$0xff]
        %v2066 = vld [vmem:[#allocation19 + $0x2c0] sm:$0xff]
        %v2067 = vld [vmem:[#allocation19 + $0x2c8] sm:$0xff]
        %v2068 = vld [vmem:[#allocation19 + $0x2d0] sm:$0xff]
        %v2069 = vld [vmem:[#allocation19 + $0x2d8] sm:$0xff]
        %v2070 = vld [vmem:[#allocation19 + $0x2e0] sm:$0xff]
        %v2071 = vld [vmem:[#allocation19 + $0x2e8] sm:$0xff]
        %v2072 = vld [vmem:[#allocation19 + $0x2f0] sm:$0xff]
        %v2073 = vld [vmem:[#allocation19 + $0x2f8] sm:$0xff]
        %v2074 = vld [vmem:[#allocation19 + $0x300] sm:$0xff]
        %v2075 = vld [vmem:[#allocation19 + $0x308] sm:$0xff]
        %v2076 = vld [vmem:[#allocation19 + $0x310] sm:$0xff]
        %v2077 = vld [vmem:[#allocation19 + $0x318] sm:$0xff]
        %v2078 = vld [vmem:[#allocation19 + $0x320] sm:$0xff]
        %v2079 = vld [vmem:[#allocation19 + $0x328] sm:$0xff]
        %v2080 = vld [vmem:[#allocation19 + $0x330] sm:$0xff]
        %v2081 = vld [vmem:[#allocation19 + $0x338] sm:$0xff]
        %v2082 = vld [vmem:[#allocation19 + $0x340] sm:$0xff]
        %v2083 = vld [vmem:[#allocation19 + $0x348] sm:$0xff]
        %v2084 = vld [vmem:[#allocation19 + $0x350] sm:$0xff]
        %v2085 = vld [vmem:[#allocation19 + $0x358] sm:$0xff]
        %v2086 = vld [vmem:[#allocation19 + $0x360] sm:$0xff]
        %v2087 = vld [vmem:[#allocation19 + $0x368] sm:$0xff]
        %v2088 = vld [vmem:[#allocation19 + $0x370] sm:$0xff]
        %v2089 = vld [vmem:[#allocation19 + $0x378] sm:$0xff]
        %v2090 = vld [vmem:[#allocation19 + $0x380] sm:$0xff]
        %v2091 = vld [vmem:[#allocation19 + $0x388] sm:$0xff]
        %v2092 = vld [vmem:[#allocation19 + $0x390] sm:$0xff]
        %v2093 = vld [vmem:[#allocation19 + $0x398] sm:$0xff]
        %v2094 = vld [vmem:[#allocation19 + $0x3a0] sm:$0xff]
        %v2095 = vld [vmem:[#allocation19 + $0x3a8] sm:$0xff]
        %v2096 = vld [vmem:[#allocation19 + $0x3b0] sm:$0xff]
        %v2097 = vld [vmem:[#allocation19 + $0x3b8] sm:$0xff]
        %v2098 = vld [vmem:[#allocation19 + $0x3c0] sm:$0xff]
        %v2099 = vld [vmem:[#allocation19 + $0x3c8] sm:$0xff]
        %v2100 = vld [vmem:[#allocation19 + $0x3d0] sm:$0xff]
        %v2101 = vld [vmem:[#allocation19 + $0x3d8] sm:$0xff]
        %v2102 = vld [vmem:[#allocation19 + $0x3e0] sm:$0xff]
        %v2103 = vld [vmem:[#allocation19 + $0x3e8] sm:$0xff]
        %v2104 = vld [vmem:[#allocation19 + $0x3f0] sm:$0xff]
        %v2105 = vld [vmem:[#allocation19 + $0x3f8] sm:$0xff]
        %v2106 = vld [vmem:[#allocation20] sm:$0xf]
        %v2108 = vperm.slane %v2106, 0
        %v2109 = vperm.slane %v2106, 1
        %v2110 = vperm.slane %v2106, 2
        %v2111 = vperm.slane %v2106, 3
        %2116 = vmatpush.msra.mxu0 %v2038
        %2117 = vmatpush.msra.mxu0 %v2034
        %2118 = vmatpush.msra.mxu0 %v2030
        %2119 = vmatpush.msra.mxu0 %v2026
        %2120 = vmatpush.msra.mxu0 %v2022
        %2121 = vmatpush.msra.mxu0 %v2018
        %2122 = vmatpush.msra.mxu0 %v2014
        %2123 = vmatpush.msra.mxu0 %v2010
        %2124 = vmatpush.msra.mxu0 %v2006
        %2125 = vmatpush.msra.mxu0 %v2002
        %2126 = vmatpush.msra.mxu0 %v1998
        %2127 = vmatpush.msra.mxu0 %v1994
        %2128 = vmatpush.msra.mxu0 %v1990
        %2129 = vmatpush.msra.mxu0 %v1986
        %2130 = vmatpush.msra.mxu0 %v1982
        %2131 = vmatpush.msra.mxu0 %v1978
        %2132 = vmatmul.f32.gmra.mxu0 %v1976
        %v2133 = vpop.f32.mrf.mxu0
        %v2134 = vadd.f32 %v2108, %v2133
        %2135 = vdwg.mxu0
        %2136 = vmatpush.msra.mxu0 %v2102
        %2137 = vmatpush.msra.mxu0 %v2098
        %2138 = vmatpush.msra.mxu0 %v2094
        %2139 = vmatpush.msra.mxu0 %v2090
        %2140 = vmatpush.msra.mxu0 %v2086
        %2141 = vmatpush.msra.mxu0 %v2082
        %2142 = vmatpush.msra.mxu0 %v2078
        %2143 = vmatpush.msra.mxu0 %v2074
        %2144 = vmatpush.msra.mxu0 %v2070
        %2145 = vmatpush.msra.mxu0 %v2066
        %2146 = vmatpush.msra.mxu0 %v2062
        %2147 = vmatpush.msra.mxu0 %v2058
        %2148 = vmatpush.msra.mxu0 %v2054
        %2149 = vmatpush.msra.mxu0 %v2050
        %2150 = vmatpush.msra.mxu0 %v2046
        %2151 = vmatpush.msra.mxu0 %v2042
        %2152 = vmatmul.f32.gmra.mxu0 %v1977
        %v2153 = vpop.f32.mrf.mxu0
        %v2154 = vadd.f32 %v2134, %v2153
        %2155 = vdwg.mxu0
        %2156 = vmatpush.msra.mxu0 %v2039
        %2157 = vmatpush.msra.mxu0 %v2035
        %2158 = vmatpush.msra.mxu0 %v2031
        %2159 = vmatpush.msra.mxu0 %v2027
        %2160 = vmatpush.msra.mxu0 %v2023
        %2161 = vmatpush.msra.mxu0 %v2019
        %2162 = vmatpush.msra.mxu0 %v2015
        %2163 = vmatpush.msra.mxu0 %v2011
        %2164 = vmatpush.msra.mxu0 %v2007
        %2165 = vmatpush.msra.mxu0 %v2003
        %2166 = vmatpush.msra.mxu0 %v1999
        %2167 = vmatpush.msra.mxu0 %v1995
        %2168 = vmatpush.msra.mxu0 %v1991
        %2169 = vmatpush.msra.mxu0 %v1987
        %2170 = vmatpush.msra.mxu0 %v1983
        %2171 = vmatpush.msra.mxu0 %v1979
        %2172 = vmatmul.f32.gmra.mxu0 %v1976
        %v2173 = vpop.f32.mrf.mxu0
        %v2174 = vadd.f32 %v2109, %v2173
        %2175 = vdwg.mxu0
        %2176 = vmatpush.msra.mxu0 %v2103
        %2177 = vmatpush.msra.mxu0 %v2099
        %2178 = vmatpush.msra.mxu0 %v2095
        %2179 = vmatpush.msra.mxu0 %v2091
        %2180 = vmatpush.msra.mxu0 %v2087
        %2181 = vmatpush.msra.mxu0 %v2083
        %2182 = vmatpush.msra.mxu0 %v2079
        %2183 = vmatpush.msra.mxu0 %v2075
        %2184 = vmatpush.msra.mxu0 %v2071
        %2185 = vmatpush.msra.mxu0 %v2067
        %2186 = vmatpush.msra.mxu0 %v2063
        %2187 = vmatpush.msra.mxu0 %v2059
        %2188 = vmatpush.msra.mxu0 %v2055
        %2189 = vmatpush.msra.mxu0 %v2051
        %2190 = vmatpush.msra.mxu0 %v2047
        %2191 = vmatpush.msra.mxu0 %v2043
        %2192 = vmatmul.f32.gmra.mxu0 %v1977
        %v2193 = vpop.f32.mrf.mxu0
        %v2194 = vadd.f32 %v2174, %v2193
        %2195 = vdwg.mxu0
        %2196 = vmatpush.msra.mxu0 %v2040
        %2197 = vmatpush.msra.mxu0 %v2036
        %2198 = vmatpush.msra.mxu0 %v2032
        %2199 = vmatpush.msra.mxu0 %v2028
        %2200 = vmatpush.msra.mxu0 %v2024
        %2201 = vmatpush.msra.mxu0 %v2020
        %2202 = vmatpush.msra.mxu0 %v2016
        %2203 = vmatpush.msra.mxu0 %v2012
        %2204 = vmatpush.msra.mxu0 %v2008
        %2205 = vmatpush.msra.mxu0 %v2004
        %2206 = vmatpush.msra.mxu0 %v2000
        %2207 = vmatpush.msra.mxu0 %v1996
        %2208 = vmatpush.msra.mxu0 %v1992
        %2209 = vmatpush.msra.mxu0 %v1988
        %2210 = vmatpush.msra.mxu0 %v1984
        %2211 = vmatpush.msra.mxu0 %v1980
        %2212 = vmatmul.f32.gmra.mxu0 %v1976
        %v2213 = vpop.f32.mrf.mxu0
        %v2214 = vadd.f32 %v2110, %v2213
        %2215 = vdwg.mxu0
        %2216 = vmatpush.msra.mxu0 %v2104
        %2217 = vmatpush.msra.mxu0 %v2100
        %2218 = vmatpush.msra.mxu0 %v2096
        %2219 = vmatpush.msra.mxu0 %v2092
        %2220 = vmatpush.msra.mxu0 %v2088
        %2221 = vmatpush.msra.mxu0 %v2084
        %2222 = vmatpush.msra.mxu0 %v2080
        %2223 = vmatpush.msra.mxu0 %v2076
        %2224 = vmatpush.msra.mxu0 %v2072
        %2225 = vmatpush.msra.mxu0 %v2068
        %2226 = vmatpush.msra.mxu0 %v2064
        %2227 = vmatpush.msra.mxu0 %v2060
        %2228 = vmatpush.msra.mxu0 %v2056
        %2229 = vmatpush.msra.mxu0 %v2052
        %2230 = vmatpush.msra.mxu0 %v2048
        %2231 = vmatpush.msra.mxu0 %v2044
        %2232 = vmatmul.f32.gmra.mxu0 %v1977
        %v2233 = vpop.f32.mrf.mxu0
        %v2234 = vadd.f32 %v2214, %v2233
        %2235 = vdwg.mxu0
        %2236 = vmatpush.msra.mxu0 %v2041
        %2237 = vmatpush.msra.mxu0 %v2037
        %2238 = vmatpush.msra.mxu0 %v2033
        %2239 = vmatpush.msra.mxu0 %v2029
        %2240 = vmatpush.msra.mxu0 %v2025
        %2241 = vmatpush.msra.mxu0 %v2021
        %2242 = vmatpush.msra.mxu0 %v2017
        %2243 = vmatpush.msra.mxu0 %v2013
        %2244 = vmatpush.msra.mxu0 %v2009
        %2245 = vmatpush.msra.mxu0 %v2005
        %2246 = vmatpush.msra.mxu0 %v2001
        %2247 = vmatpush.msra.mxu0 %v1997
        %2248 = vmatpush.msra.mxu0 %v1993
        %2249 = vmatpush.msra.mxu0 %v1989
        %2250 = vmatpush.msra.mxu0 %v1985
        %2251 = vmatpush.msra.mxu0 %v1981
        %2252 = vmatmul.f32.gmra.mxu0 %v1976
        %v2253 = vpop.f32.mrf.mxu0
        %v2254 = vadd.f32 %v2111, %v2253
        %2255 = vdwg.mxu0
        %2256 = vmatpush.msra.mxu0 %v2105
        %2257 = vmatpush.msra.mxu0 %v2101
        %2258 = vmatpush.msra.mxu0 %v2097
        %2259 = vmatpush.msra.mxu0 %v2093
        %2260 = vmatpush.msra.mxu0 %v2089
        %2261 = vmatpush.msra.mxu0 %v2085
        %2262 = vmatpush.msra.mxu0 %v2081
        %2263 = vmatpush.msra.mxu0 %v2077
        %2264 = vmatpush.msra.mxu0 %v2073
        %2265 = vmatpush.msra.mxu0 %v2069
        %2266 = vmatpush.msra.mxu0 %v2065
        %2267 = vmatpush.msra.mxu0 %v2061
        %2268 = vmatpush.msra.mxu0 %v2057
        %2269 = vmatpush.msra.mxu0 %v2053
        %2270 = vmatpush.msra.mxu0 %v2049
        %2271 = vmatpush.msra.mxu0 %v2045
        %2272 = vmatmul.f32.gmra.mxu0 %v1977
        %v2273 = vpop.f32.mrf.mxu0
        %v2274 = vadd.f32 %v2254, %v2273
        %2275 = vdwg.mxu0
        %v2276 = vmax.f32 %v2154, 0.0
        %v2277 = vmax.f32 %v2194, 0.0
        %v2278 = vmax.f32 %v2234, 0.0
        %v2279 = vmax.f32 %v2274, 0.0
        %v2280 = vld [vmem:[#allocation22] sm:$0xff]
        %v2281 = vld [vmem:[#allocation22 + $0x8] sm:$0xff]
        %v2282 = vld [vmem:[#allocation22 + $0x10] sm:$0xff]
        %v2283 = vld [vmem:[#allocation22 + $0x18] sm:$0xff]
        %v2284 = vld [vmem:[#allocation22 + $0x20] sm:$0xff]
        %v2285 = vld [vmem:[#allocation22 + $0x28] sm:$0xff]
        %v2286 = vld [vmem:[#allocation22 + $0x30] sm:$0xff]
        %v2287 = vld [vmem:[#allocation22 + $0x38] sm:$0xff]
        %v2288 = vld [vmem:[#allocation22 + $0x40] sm:$0xff]
        %v2289 = vld [vmem:[#allocation22 + $0x48] sm:$0xff]
        %v2290 = vld [vmem:[#allocation22 + $0x50] sm:$0xff]
        %v2291 = vld [vmem:[#allocation22 + $0x58] sm:$0xff]
        %v2292 = vld [vmem:[#allocation22 + $0x60] sm:$0xff]
        %v2293 = vld [vmem:[#allocation22 + $0x68] sm:$0xff]
        %v2294 = vld [vmem:[#allocation22 + $0x70] sm:$0xff]
        %v2295 = vld [vmem:[#allocation22 + $0x78] sm:$0xff]
        %v2296 = vld [vmem:[#allocation22 + $0x80] sm:$0xff]
        %v2297 = vld [vmem:[#allocation22 + $0x88] sm:$0xff]
        %v2298 = vld [vmem:[#allocation22 + $0x90] sm:$0xff]
        %v2299 = vld [vmem:[#allocation22 + $0x98] sm:$0xff]
        %v2300 = vld [vmem:[#allocation22 + $0xa0] sm:$0xff]
        %v2301 = vld [vmem:[#allocation22 + $0xa8] sm:$0xff]
        %v2302 = vld [vmem:[#allocation22 + $0xb0] sm:$0xff]
        %v2303 = vld [vmem:[#allocation22 + $0xb8] sm:$0xff]
        %v2304 = vld [vmem:[#allocation22 + $0xc0] sm:$0xff]
        %v2305 = vld [vmem:[#allocation22 + $0xc8] sm:$0xff]
        %v2306 = vld [vmem:[#allocation22 + $0xd0] sm:$0xff]
        %v2307 = vld [vmem:[#allocation22 + $0xd8] sm:$0xff]
        %v2308 = vld [vmem:[#allocation22 + $0xe0] sm:$0xff]
        %v2309 = vld [vmem:[#allocation22 + $0xe8] sm:$0xff]
        %v2310 = vld [vmem:[#allocation22 + $0xf0] sm:$0xff]
        %v2311 = vld [vmem:[#allocation22 + $0xf8] sm:$0xff]
        %v2312 = vld [vmem:[#allocation22 + $0x100] sm:$0xff]
        %v2313 = vld [vmem:[#allocation22 + $0x108] sm:$0xff]
        %v2314 = vld [vmem:[#allocation22 + $0x110] sm:$0xff]
        %v2315 = vld [vmem:[#allocation22 + $0x118] sm:$0xff]
        %v2316 = vld [vmem:[#allocation22 + $0x120] sm:$0xff]
        %v2317 = vld [vmem:[#allocation22 + $0x128] sm:$0xff]
        %v2318 = vld [vmem:[#allocation22 + $0x130] sm:$0xff]
        %v2319 = vld [vmem:[#allocation22 + $0x138] sm:$0xff]
        %v2320 = vld [vmem:[#allocation22 + $0x140] sm:$0xff]
        %v2321 = vld [vmem:[#allocation22 + $0x148] sm:$0xff]
        %v2322 = vld [vmem:[#allocation22 + $0x150] sm:$0xff]
        %v2323 = vld [vmem:[#allocation22 + $0x158] sm:$0xff]
        %v2324 = vld [vmem:[#allocation22 + $0x160] sm:$0xff]
        %v2325 = vld [vmem:[#allocation22 + $0x168] sm:$0xff]
        %v2326 = vld [vmem:[#allocation22 + $0x170] sm:$0xff]
        %v2327 = vld [vmem:[#allocation22 + $0x178] sm:$0xff]
        %v2328 = vld [vmem:[#allocation22 + $0x180] sm:$0xff]
        %v2329 = vld [vmem:[#allocation22 + $0x188] sm:$0xff]
        %v2330 = vld [vmem:[#allocation22 + $0x190] sm:$0xff]
        %v2331 = vld [vmem:[#allocation22 + $0x198] sm:$0xff]
        %v2332 = vld [vmem:[#allocation22 + $0x1a0] sm:$0xff]
        %v2333 = vld [vmem:[#allocation22 + $0x1a8] sm:$0xff]
        %v2334 = vld [vmem:[#allocation22 + $0x1b0] sm:$0xff]
        %v2335 = vld [vmem:[#allocation22 + $0x1b8] sm:$0xff]
        %v2336 = vld [vmem:[#allocation22 + $0x1c0] sm:$0xff]
        %v2337 = vld [vmem:[#allocation22 + $0x1c8] sm:$0xff]
        %v2338 = vld [vmem:[#allocation22 + $0x1d0] sm:$0xff]
        %v2339 = vld [vmem:[#allocation22 + $0x1d8] sm:$0xff]
        %v2340 = vld [vmem:[#allocation22 + $0x1e0] sm:$0xff]
        %v2341 = vld [vmem:[#allocation22 + $0x1e8] sm:$0xff]
        %v2342 = vld [vmem:[#allocation22 + $0x1f0] sm:$0xff]
        %v2343 = vld [vmem:[#allocation22 + $0x1f8] sm:$0xff]
        %v2344 = vld [vmem:[#allocation22 + $0x200] sm:$0xff]
        %v2345 = vld [vmem:[#allocation22 + $0x208] sm:$0xff]
        %v2346 = vld [vmem:[#allocation22 + $0x210] sm:$0xff]
        %v2347 = vld [vmem:[#allocation22 + $0x218] sm:$0xff]
        %v2348 = vld [vmem:[#allocation22 + $0x220] sm:$0xff]
        %v2349 = vld [vmem:[#allocation22 + $0x228] sm:$0xff]
        %v2350 = vld [vmem:[#allocation22 + $0x230] sm:$0xff]
        %v2351 = vld [vmem:[#allocation22 + $0x238] sm:$0xff]
        %v2352 = vld [vmem:[#allocation22 + $0x240] sm:$0xff]
        %v2353 = vld [vmem:[#allocation22 + $0x248] sm:$0xff]
        %v2354 = vld [vmem:[#allocation22 + $0x250] sm:$0xff]
        %v2355 = vld [vmem:[#allocation22 + $0x258] sm:$0xff]
        %v2356 = vld [vmem:[#allocation22 + $0x260] sm:$0xff]
        %v2357 = vld [vmem:[#allocation22 + $0x268] sm:$0xff]
        %v2358 = vld [vmem:[#allocation22 + $0x270] sm:$0xff]
        %v2359 = vld [vmem:[#allocation22 + $0x278] sm:$0xff]
        %v2360 = vld [vmem:[#allocation22 + $0x280] sm:$0xff]
        %v2361 = vld [vmem:[#allocation22 + $0x288] sm:$0xff]
        %v2362 = vld [vmem:[#allocation22 + $0x290] sm:$0xff]
        %v2363 = vld [vmem:[#allocation22 + $0x298] sm:$0xff]
        %v2364 = vld [vmem:[#allocation22 + $0x2a0] sm:$0xff]
        %v2365 = vld [vmem:[#allocation22 + $0x2a8] sm:$0xff]
        %v2366 = vld [vmem:[#allocation22 + $0x2b0] sm:$0xff]
        %v2367 = vld [vmem:[#allocation22 + $0x2b8] sm:$0xff]
        %v2368 = vld [vmem:[#allocation22 + $0x2c0] sm:$0xff]
        %v2369 = vld [vmem:[#allocation22 + $0x2c8] sm:$0xff]
        %v2370 = vld [vmem:[#allocation22 + $0x2d0] sm:$0xff]
        %v2371 = vld [vmem:[#allocation22 + $0x2d8] sm:$0xff]
        %v2372 = vld [vmem:[#allocation22 + $0x2e0] sm:$0xff]
        %v2373 = vld [vmem:[#allocation22 + $0x2e8] sm:$0xff]
        %v2374 = vld [vmem:[#allocation22 + $0x2f0] sm:$0xff]
        %v2375 = vld [vmem:[#allocation22 + $0x2f8] sm:$0xff]
        %v2376 = vld [vmem:[#allocation22 + $0x300] sm:$0xff]
        %v2377 = vld [vmem:[#allocation22 + $0x308] sm:$0xff]
        %v2378 = vld [vmem:[#allocation22 + $0x310] sm:$0xff]
        %v2379 = vld [vmem:[#allocation22 + $0x318] sm:$0xff]
        %v2380 = vld [vmem:[#allocation22 + $0x320] sm:$0xff]
        %v2381 = vld [vmem:[#allocation22 + $0x328] sm:$0xff]
        %v2382 = vld [vmem:[#allocation22 + $0x330] sm:$0xff]
        %v2383 = vld [vmem:[#allocation22 + $0x338] sm:$0xff]
        %v2384 = vld [vmem:[#allocation22 + $0x340] sm:$0xff]
        %v2385 = vld [vmem:[#allocation22 + $0x348] sm:$0xff]
        %v2386 = vld [vmem:[#allocation22 + $0x350] sm:$0xff]
        %v2387 = vld [vmem:[#allocation22 + $0x358] sm:$0xff]
        %v2388 = vld [vmem:[#allocation22 + $0x360] sm:$0xff]
        %v2389 = vld [vmem:[#allocation22 + $0x368] sm:$0xff]
        %v2390 = vld [vmem:[#allocation22 + $0x370] sm:$0xff]
        %v2391 = vld [vmem:[#allocation22 + $0x378] sm:$0xff]
        %v2392 = vld [vmem:[#allocation22 + $0x380] sm:$0xff]
        %v2393 = vld [vmem:[#allocation22 + $0x388] sm:$0xff]
        %v2394 = vld [vmem:[#allocation22 + $0x390] sm:$0xff]
        %v2395 = vld [vmem:[#allocation22 + $0x398] sm:$0xff]
        %v2396 = vld [vmem:[#allocation22 + $0x3a0] sm:$0xff]
        %v2397 = vld [vmem:[#allocation22 + $0x3a8] sm:$0xff]
        %v2398 = vld [vmem:[#allocation22 + $0x3b0] sm:$0xff]
        %v2399 = vld [vmem:[#allocation22 + $0x3b8] sm:$0xff]
        %v2400 = vld [vmem:[#allocation22 + $0x3c0] sm:$0xff]
        %v2401 = vld [vmem:[#allocation22 + $0x3c8] sm:$0xff]
        %v2402 = vld [vmem:[#allocation22 + $0x3d0] sm:$0xff]
        %v2403 = vld [vmem:[#allocation22 + $0x3d8] sm:$0xff]
        %v2404 = vld [vmem:[#allocation22 + $0x3e0] sm:$0xff]
        %v2405 = vld [vmem:[#allocation22 + $0x3e8] sm:$0xff]
        %v2406 = vld [vmem:[#allocation22 + $0x3f0] sm:$0xff]
        %v2407 = vld [vmem:[#allocation22 + $0x3f8] sm:$0xff]
        %v2408 = vld [vmem:[#allocation23] sm:$0x3]
        %v2410 = vperm.slane %v2408, 0
        %v2411 = vperm.slane %v2408, 1
        %2414 = vmatpush.msra.mxu0 %v2310
        %2415 = vmatpush.msra.mxu0 %v2308
        %2416 = vmatpush.msra.mxu0 %v2306
        %2417 = vmatpush.msra.mxu0 %v2304
        %2418 = vmatpush.msra.mxu0 %v2302
        %2419 = vmatpush.msra.mxu0 %v2300
        %2420 = vmatpush.msra.mxu0 %v2298
        %2421 = vmatpush.msra.mxu0 %v2296
        %2422 = vmatpush.msra.mxu0 %v2294
        %2423 = vmatpush.msra.mxu0 %v2292
        %2424 = vmatpush.msra.mxu0 %v2290
        %2425 = vmatpush.msra.mxu0 %v2288
        %2426 = vmatpush.msra.mxu0 %v2286
        %2427 = vmatpush.msra.mxu0 %v2284
        %2428 = vmatpush.msra.mxu0 %v2282
        %2429 = vmatpush.msra.mxu0 %v2280
        %2430 = vmatmul.f32.gmra.mxu0 %v2276
        %v2431 = vpop.f32.mrf.mxu0
        %v2432 = vadd.f32 %v2410, %v2431
        %2433 = vdwg.mxu0
        %2434 = vmatpush.msra.mxu0 %v2342
        %2435 = vmatpush.msra.mxu0 %v2340
        %2436 = vmatpush.msra.mxu0 %v2338
        %2437 = vmatpush.msra.mxu0 %v2336
        %2438 = vmatpush.msra.mxu0 %v2334
        %2439 = vmatpush.msra.mxu0 %v2332
        %2440 = vmatpush.msra.mxu0 %v2330
        %2441 = vmatpush.msra.mxu0 %v2328
        %2442 = vmatpush.msra.mxu0 %v2326
        %2443 = vmatpush.msra.mxu0 %v2324
        %2444 = vmatpush.msra.mxu0 %v2322
        %2445 = vmatpush.msra.mxu0 %v2320
        %2446 = vmatpush.msra.mxu0 %v2318
        %2447 = vmatpush.msra.mxu0 %v2316
        %2448 = vmatpush.msra.mxu0 %v2314
        %2449 = vmatpush.msra.mxu0 %v2312
        %2450 = vmatmul.f32.gmra.mxu0 %v2277
        %v2451 = vpop.f32.mrf.mxu0
        %v2452 = vadd.f32 %v2432, %v2451
        %2453 = vdwg.mxu0
        %2454 = vmatpush.msra.mxu0 %v2374
        %2455 = vmatpush.msra.mxu0 %v2372
        %2456 = vmatpush.msra.mxu0 %v2370
        %2457 = vmatpush.msra.mxu0 %v2368
        %2458 = vmatpush.msra.mxu0 %v2366
        %2459 = vmatpush.msra.mxu0 %v2364
        %2460 = vmatpush.msra.mxu0 %v2362
        %2461 = vmatpush.msra.mxu0 %v2360
        %2462 = vmatpush.msra.mxu0 %v2358
        %2463 = vmatpush.msra.mxu0 %v2356
        %2464 = vmatpush.msra.mxu0 %v2354
        %2465 = vmatpush.msra.mxu0 %v2352
        %2466 = vmatpush.msra.mxu0 %v2350
        %2467 = vmatpush.msra.mxu0 %v2348
        %2468 = vmatpush.msra.mxu0 %v2346
        %2469 = vmatpush.msra.mxu0 %v2344
        %2470 = vmatmul.f32.gmra.mxu0 %v2278
        %v2471 = vpop.f32.mrf.mxu0
        %v2472 = vadd.f32 %v2452, %v2471
        %2473 = vdwg.mxu0
        %2474 = vmatpush.msra.mxu0 %v2406
        %2475 = vmatpush.msra.mxu0 %v2404
        %2476 = vmatpush.msra.mxu0 %v2402
        %2477 = vmatpush.msra.mxu0 %v2400
        %2478 = vmatpush.msra.mxu0 %v2398
        %2479 = vmatpush.msra.mxu0 %v2396
        %2480 = vmatpush.msra.mxu0 %v2394
        %2481 = vmatpush.msra.mxu0 %v2392
        %2482 = vmatpush.msra.mxu0 %v2390
        %2483 = vmatpush.msra.mxu0 %v2388
        %2484 = vmatpush.msra.mxu0 %v2386
        %2485 = vmatpush.msra.mxu0 %v2384
        %2486 = vmatpush.msra.mxu0 %v2382
        %2487 = vmatpush.msra.mxu0 %v2380
        %2488 = vmatpush.msra.mxu0 %v2378
        %2489 = vmatpush.msra.mxu0 %v2376
        %2490 = vmatmul.f32.gmra.mxu0 %v2279
        %v2491 = vpop.f32.mrf.mxu0
        %v2492 = vadd.f32 %v2472, %v2491
        %2493 = vdwg.mxu0
        %2494 = vmatpush.msra.mxu0 %v2311
        %2495 = vmatpush.msra.mxu0 %v2309
        %2496 = vmatpush.msra.mxu0 %v2307
        %2497 = vmatpush.msra.mxu0 %v2305
        %2498 = vmatpush.msra.mxu0 %v2303
        %2499 = vmatpush.msra.mxu0 %v2301
        %2500 = vmatpush.msra.mxu0 %v2299
        %2501 = vmatpush.msra.mxu0 %v2297
        %2502 = vmatpush.msra.mxu0 %v2295
        %2503 = vmatpush.msra.mxu0 %v2293
        %2504 = vmatpush.msra.mxu0 %v2291
        %2505 = vmatpush.msra.mxu0 %v2289
        %2506 = vmatpush.msra.mxu0 %v2287
        %2507 = vmatpush.msra.mxu0 %v2285
        %2508 = vmatpush.msra.mxu0 %v2283
        %2509 = vmatpush.msra.mxu0 %v2281
        %2510 = vmatmul.f32.gmra.mxu0 %v2276
        %v2511 = vpop.f32.mrf.mxu0
        %v2512 = vadd.f32 %v2411, %v2511
        %2513 = vdwg.mxu0
        %2514 = vmatpush.msra.mxu0 %v2343
        %2515 = vmatpush.msra.mxu0 %v2341
        %2516 = vmatpush.msra.mxu0 %v2339
        %2517 = vmatpush.msra.mxu0 %v2337
        %2518 = vmatpush.msra.mxu0 %v2335
        %2519 = vmatpush.msra.mxu0 %v2333
        %2520 = vmatpush.msra.mxu0 %v2331
        %2521 = vmatpush.msra.mxu0 %v2329
        %2522 = vmatpush.msra.mxu0 %v2327
        %2523 = vmatpush.msra.mxu0 %v2325
        %2524 = vmatpush.msra.mxu0 %v2323
        %2525 = vmatpush.msra.mxu0 %v2321
        %2526 = vmatpush.msra.mxu0 %v2319
        %2527 = vmatpush.msra.mxu0 %v2317
        %2528 = vmatpush.msra.mxu0 %v2315
        %2529 = vmatpush.msra.mxu0 %v2313
        %2530 = vmatmul.f32.gmra.mxu0 %v2277
        %v2531 = vpop.f32.mrf.mxu0
        %v2532 = vadd.f32 %v2512, %v2531
        %2533 = vdwg.mxu0
        %2534 = vmatpush.msra.mxu0 %v2375
        %2535 = vmatpush.msra.mxu0 %v2373
        %2536 = vmatpush.msra.mxu0 %v2371
        %2537 = vmatpush.msra.mxu0 %v2369
        %2538 = vmatpush.msra.mxu0 %v2367
        %2539 = vmatpush.msra.mxu0 %v2365
        %2540 = vmatpush.msra.mxu0 %v2363
        %2541 = vmatpush.msra.mxu0 %v2361
        %2542 = vmatpush.msra.mxu0 %v2359
        %2543 = vmatpush.msra.mxu0 %v2357
        %2544 = vmatpush.msra.mxu0 %v2355
        %2545 = vmatpush.msra.mxu0 %v2353
        %2546 = vmatpush.msra.mxu0 %v2351
        %2547 = vmatpush.msra.mxu0 %v2349
        %2548 = vmatpush.msra.mxu0 %v2347
        %2549 = vmatpush.msra.mxu0 %v2345
        %2550 = vmatmul.f32.gmra.mxu0 %v2278
        %v2551 = vpop.f32.mrf.mxu0
        %v2552 = vadd.f32 %v2532, %v2551
        %2553 = vdwg.mxu0
        %2554 = vmatpush.msra.mxu0 %v2407
        %2555 = vmatpush.msra.mxu0 %v2405
        %2556 = vmatpush.msra.mxu0 %v2403
        %2557 = vmatpush.msra.mxu0 %v2401
        %2558 = vmatpush.msra.mxu0 %v2399
        %2559 = vmatpush.msra.mxu0 %v2397
        %2560 = vmatpush.msra.mxu0 %v2395
        %2561 = vmatpush.msra.mxu0 %v2393
        %2562 = vmatpush.msra.mxu0 %v2391
        %2563 = vmatpush.msra.mxu0 %v2389
        %2564 = vmatpush.msra.mxu0 %v2387
        %2565 = vmatpush.msra.mxu0 %v2385
        %2566 = vmatpush.msra.mxu0 %v2383
        %2567 = vmatpush.msra.mxu0 %v2381
        %2568 = vmatpush.msra.mxu0 %v2379
        %2569 = vmatpush.msra.mxu0 %v2377
        %2570 = vmatmul.f32.gmra.mxu0 %v2279
        %v2571 = vpop.f32.mrf.mxu0
        %v2572 = vadd.f32 %v2552, %v2571
        %2573 = vdwg.mxu0
        %v2574 = vld [vmem:[#allocation25] sm:$0x3]
        %v2575 = vld [vmem:[#allocation26] sm:$0x3]
        %v2576 = vadd.f32 %v2492, %v2572
        %2577 = vadd.xlane.f32.xlu0 %v2576
        %v2578 = vpop.xlane.xlu0 %2577
        %v2579 = vmul.f32 %v2578, %v1941
        %v2580 = vsub.f32 %v2492, %v2579
        %v2581 = vsub.f32 %v2572, %v2579
        %v2582 = vmul.f32 %v2580, %v2580
        %v2583 = vmul.f32 %v2581, %v2581
        %v2584 = vadd.f32 %v2582, %v2583
        %2585 = vadd.xlane.f32.xlu0 %v2584
        %v2586 = vpop.xlane.xlu0 %2585
        %v2587 = vmul.f32 %v2586, %v1941
        %v2588 = vadd.f32 %v2587, 1e-05
        %v2589 = vrsqrt.pop %v2588
        %v2590 = vmul.f32 %v2589, %v2588
        %v2591 = vmul.f32 %v2590, %v2589
        %v2592 = vmul.f32 0.5, %v2591
        %v2593 = vsub.f32 1.5, %v2592
        %v2594 = vmul.f32 %v2589, %v2593
        %vm2595 = vweird.f32 %v2588
        %vm2596 = vweird.f32 %v2589
        %vm2597 = vmor %vm2595, %vm2596
        %v2598 = vsel %vm2597, %v2589, %v2594
        %v2599 = vmul.f32 %v2580, %v2598
        %v2600 = vmul.f32 %v2581, %v2598
        %v2602 = vperm.slane %v2574, 0
        %v2603 = vperm.slane %v2574, 1
        %v2606 = vmul.f32 %v2599, %v2602
        %v2607 = vmul.f32 %v2600, %v2603
        %v2609 = vperm.slane %v2575, 0
        %v2610 = vperm.slane %v2575, 1
        %v2613 = vadd.f32 %v2606, %v2609
        %v2614 = vadd.f32 %v2607, %v2610
        %2615 = vst [vmem:[%s945] sm:$0xff] %v2613
        %2616 = vst [vmem:[%s945 + $0x8] sm:$0xff] %v2614
        %s2617 = sand.u32 %s447, 1
        %s2618 = scalar_lea.sflag [#allocation4], %s2617
        %s2619 = sand.u32 %s447, 1
        %s2620 = smul.addr %s2619, 16
        %s2621 = scalar_lea.vmem [#allocation28], %s2620
        // Predicated region
        $region149: #{tpu_custom_call.1} parent=83 // pred_check
          %p2622 = pneg %p457
        $region150: #{tpu_custom_call.1} parent=83 // pred_check_branch
          %2624 = sbr.rel (%p2622) target = $region152
        $region151: #{tpu_custom_call.1} parent=83 // pred_region
          %2626 = vsyncadd %s2618, 0
          %s2627 = smul.addr %s53, 2
          %s2628 = smul.addr %s54, 12
          %s2629 = sadd.s32 %s2627, %s2628
          %s2630 = smul.addr %s2629, 8
          %s2631 = scalar_lea.hbm %s16, %s2630
          %s2633 = sshll.u32 %s2621, 4
          %s2634 = int_to_ptr.vmem [resolvable:$true] %s2633
          %s2635 = sshll.u32 %s2631, 4
          %s2636 = int_to_ptr.hbm [resolvable:$true] %s2635
          %2638 = dma.vmem_to_hbm [thread:$0]  %s2634, 256, %s2636, %s2618
        $region152: #{tpu_custom_call.1} parent=83 // pred_fallthru
          _
      $region84: #{tpu_custom_call.1} parent=5 // pred_fallthru
        _
      %p2639 = scmp.le.s32.totalorder 2, %s44
      // Predicated region
      $region153: #{tpu_custom_call.1} parent=5 // pred_check
        %p2640 = pneg %p2639
      $region154: #{tpu_custom_call.1} parent=5 // pred_check_branch
        %2642 = sbr.rel (%p2640) target = $region156
      $region155: #{tpu_custom_call.1} parent=5 // pred_region
        %s2643 = ssub.s32 %s44, 2
        // Predicated region
        $region157: #{tpu_custom_call.1} parent=155 // pred_check
          %p2644 = pneg %p463
        $region158: #{tpu_custom_call.1} parent=155 // pred_check_branch
          %2646 = sbr.rel (%p2644) target = $region160
        $region159: #{tpu_custom_call.1} parent=155 // pred_region
          %s2647 = sand.u32 %s448, 1
          %s2648 = scalar_lea.sflag [#allocation4], %s2647
          %s2649 = sand.u32 %s448, 1
          %s2650 = smul.addr %s2649, 16
          %s2651 = scalar_lea.vmem [#allocation28], %s2650
          %2653 = dma.done %s2648, 256
        $region160: #{tpu_custom_call.1} parent=155 // pred_fallthru
          _
      $region156: #{tpu_custom_call.1} parent=5 // pred_fallthru
        _
    $region6: #{tpu_custom_call.1} parent=1 // loop_footer
      %s48 = sadd.s32 1, %s44
    $region7: #{tpu_custom_call.1} parent=1 // loop_footer_branch
      %43 = sbr.rel target = $region3
    $region8: #{tpu_custom_call.1} parent=1 // loop_exit
      _
    %2654 = vsyncpa [#allocation3], 1
    %s2655 = scalar_lea.sflag [#allocation3], 1
    %2656 = vsyncpa %s2655, 1
    %2657 = vsyncpa [#allocation6], 1
    %s2658 = scalar_lea.sflag [#allocation6], 1
    %2659 = vsyncpa %s2658, 1
    %2660 = vsyncpa [#allocation9], 1
    %s2661 = scalar_lea.sflag [#allocation9], 1
    %2662 = vsyncpa %s2661, 1
    %2663 = vsyncpa [#allocation12], 1
    %s2664 = scalar_lea.sflag [#allocation12], 1
    %2665 = vsyncpa %s2664, 1
    %2666 = vsyncpa [#allocation15], 1
    %s2667 = scalar_lea.sflag [#allocation15], 1
    %2668 = vsyncpa %s2667, 1
    %2669 = vsyncpa [#allocation18], 1
    %2670 = vsyncpa [#allocation21], 1
    %2671 = vsyncpa [#allocation24], 1
    %2672 = vsyncpa [#allocation27], 1
    %2673 = vsyncpa [#allocation4], 1
    %s2674 = scalar_lea.sflag [#allocation4], 1
    %2675 = vsyncpa %s2674, 1

</llo_original>
